<compile_context>
chip_gen: v6e
topology: v6e:2x2x1
jax: 0.10.0
libtpu: 0.0.40
codegen_flags: <defaults>
</compile_context>

<pallas_src>
import functools

import jax
import jax.numpy as jnp
import numpy as np
from jax.experimental import pallas as pl
from jax.experimental.pallas import tpu as pltpu


def _tap_masks(H, W):
    """Static (49, H*W) boundary masks for a 7x7 conv with padding=3."""
    hh, ww = np.meshgrid(np.arange(H), np.arange(W), indexing="ij")
    hh = hh.reshape(-1)
    ww = ww.reshape(-1)
    masks = np.zeros((49, H * W), np.float32)
    for ki in range(7):
        for kj in range(7):
            valid = ((hh + ki - 3 >= 0) & (hh + ki - 3 < H) &
                     (ww + kj - 3 >= 0) & (ww + kj - 3 < W))
            masks[ki * 7 + kj] = valid.astype(np.float32)
    return masks


def cbam_kernel(x_ref, w1t_ref, w2t_ref, wmask_ref, bsa_ref, o_ref, *, H, W, nb):
    # x_ref block: (nb, C, HW) lane-dense (HW on lanes, C on sublanes)
    # w1t: (C, Cr); w2t: (Cr, C); wmask: (98, HW) = conv-weight * boundary-mask
    # bsa: (1,) f32 in SMEM
    HW = H * W
    x = x_ref[...]                                       # (nb, C, HW)

    # ---------------- channel attention (batched over the block) -------------
    avg_p = jnp.mean(x, axis=2)                          # (nb, C)
    max_p = jnp.max(x, axis=2)                           # (nb, C)
    pooled = jnp.concatenate([avg_p, max_p], axis=0)     # (2*nb, C): fused branches
    h1 = jnp.maximum(
        jnp.dot(pooled, w1t_ref[...], preferred_element_type=jnp.float32), 0.0)
    z = jnp.dot(h1, w2t_ref[...], preferred_element_type=jnp.float32)  # (2*nb, C)
    ca = jax.nn.sigmoid(z[:nb] + z[nb:])                 # (nb, C)

    # ---------------- spatial attention --------------------------------------
    red_a = jnp.mean(x, axis=1)                          # (nb, HW)  avg over C
    red_m = jnp.max(x, axis=1)                           # (nb, HW)  max over C
    bias = bsa_ref[0]

    # 7x7 conv over the 2-channel (avg, max) map, done directly in the flat
    # lane-dense layout: each tap is a lane roll (XLU) + one weighted-mask
    # multiply-accumulate (VALU).  Four partial accumulators expose ILP.
    accs = [jnp.zeros((nb, HW), jnp.float32) for _ in range(4)]
    t = 0
    for ki in range(7):
        for kj in range(7):
            shift = ((3 - ki) * W + (3 - kj)) % HW
            if shift:
                ra = pltpu.roll(red_a, shift=shift, axis=1)
                rm = pltpu.roll(red_m, shift=shift, axis=1)
            else:
                ra, rm = red_a, red_m
            idx = ki * 7 + kj
            wa = wmask_ref[idx:idx + 1, :]               # (1, HW) avg-channel w*mask
            wm = wmask_ref[49 + idx:50 + idx, :]         # (1, HW) max-channel w*mask
            accs[t & 3] = accs[t & 3] + ra * wa + rm * wm
            t += 1
    conv = (accs[0] + accs[1]) + (accs[2] + accs[3])     # (nb, HW)
    sa = jax.nn.sigmoid(conv + bias)                     # (nb, HW)

    # ---- fused epilogue: out = ca*x + x + sa*x + x + x = (ca + sa + 3) * x ---
    o_ref[...] = ((ca[:, :, None] + sa[:, None, :] + 3.0) * x).astype(o_ref.dtype)


def _default_batch_block(N):
    """v5e/v6e (1 TensorCore): one grid step.  v7x (2 TCs): two parallel blocks."""
    kind = ""
    try:
        kind = jax.devices()[0].device_kind.lower()
    except Exception:
        pass
    bb = N // 2 if ("v7" in kind and N >= 2) else N
    bb = max(bb, 1)
    while N % bb:
        bb -= 1
    return bb


def cbam_pallas(x, w1, w2, wsa, bsa, *, batch_block=None):
    N, C, H, W = x.shape
    HW = H * W
    Cr = w1.shape[0]

    nb = batch_block if batch_block is not None else _default_batch_block(N)
    nb = max(1, min(nb, N))
    while N % nb:
        nb -= 1

    xf = x.reshape(N, C, HW)                 # lane-dense view (HW multiple of 128)
    w1t = w1.T                               # (C, Cr)
    w2t = w2.T                               # (Cr, C)

    # Fuse the 7x7 conv weights with the static zero-padding boundary masks
    # into one small (98, HW) table (rows 0..48 = avg channel, 49..97 = max).
    masks = jnp.asarray(_tap_masks(H, W))                          # (49, HW)
    wmask = (wsa.reshape(2, 49, 1).astype(jnp.float32)
             * masks[None, :, :]).reshape(2 * 49, HW)              # (98, HW)

    kernel = functools.partial(cbam_kernel, H=H, W=W, nb=nb)
    out = pl.pallas_call(
        kernel,
        out_shape=jax.ShapeDtypeStruct((N, C, HW), x.dtype),
        grid=(N // nb,),
        in_specs=[
            pl.BlockSpec((nb, C, HW), lambda b: (b, 0, 0)),
            pl.BlockSpec((C, Cr), lambda b: (0, 0)),
            pl.BlockSpec((Cr, C), lambda b: (0, 0)),
            pl.BlockSpec((2 * 49, HW), lambda b: (0, 0)),
            pl.BlockSpec(memory_space=pltpu.MemorySpace.SMEM),
        ],
        out_specs=pl.BlockSpec((nb, C, HW), lambda b: (b, 0, 0)),
        compiler_params=pltpu.CompilerParams(
            dimension_semantics=("parallel",)),
    )(xf, w1t, w2t, wmask, bsa)
    return out.reshape(N, C, H, W)


def cbam_ref(x, w1, w2, wsa, bsa):
    """Pure-JAX reference of the PyTorch forward (NCHW)."""
    avg_p = x.mean(axis=(2, 3))                       # (N, C)
    max_p = x.max(axis=(2, 3))                        # (N, C)

    def mlp(v):
        h = jnp.maximum(v @ w1.T, 0.0)                # (N, Cr)
        return h @ w2.T                               # (N, C)

    ca = jax.nn.sigmoid(mlp(avg_p) + mlp(max_p))[:, :, None, None]

    avg_c = x.mean(axis=1, keepdims=True)             # (N, 1, H, W)
    max_c = x.max(axis=1, keepdims=True)              # (N, 1, H, W)
    stacked = jnp.concatenate([avg_c, max_c], axis=1)  # (N, 2, H, W)
    conv = jax.lax.conv_general_dilated(
        stacked, wsa, window_strides=(1, 1), padding=((3, 3), (3, 3)),
        dimension_numbers=("NCHW", "OIHW", "NCHW"))
    sa = jax.nn.sigmoid(conv + bsa.reshape(1, 1, 1, 1))  # (N, 1, H, W)

    return ca * x + sa * x + 3.0 * x


if __name__ == "__main__":
    N, C, H, W = 4, 16, 16, 16
    ratio = 8
    Cr = C // ratio

    key = jax.random.PRNGKey(0)
    kx, k1, k2, k3, k4 = jax.random.split(key, 5)

    x = jax.random.normal(kx, (N, C, H, W), dtype=jnp.float32)
    # Conv2d(C, C//ratio, 1, bias=False) -> (Cr, C); Conv2d(Cr, C, 1, bias=False) -> (C, Cr)
    w1 = jax.random.normal(k1, (Cr, C), dtype=jnp.float32) * 0.2
    w2 = jax.random.normal(k2, (C, Cr), dtype=jnp.float32) * 0.2
    # Conv2d(2, 1, 7, padding=3) -> weight (1, 2, 7, 7), bias (1,)
    wsa = jax.random.normal(k3, (1, 2, 7, 7), dtype=jnp.float32) * 0.1
    bsa = jax.random.normal(k4, (1,), dtype=jnp.float32) * 0.1

    out = jax.jit(cbam_pallas)(x, w1, w2, wsa, bsa)
    out = jax.block_until_ready(out)

    ref = cbam_ref(x, w1, w2, wsa, bsa)
    assert out.shape == (N, C, H, W)
    np.testing.assert_allclose(np.asarray(out), np.asarray(ref),
                               rtol=1e-5, atol=1e-5)
    print("KERNEL_OK")
</pallas_src>

<mosaic_0001>
module attributes {stable_mosaic.version = 11 : i64} {
  func.func @cbam_kernel(%arg0: i32, %arg1: memref<4x16x256xf32, #tpu.memory_space<vmem>>, %arg2: memref<16x2xf32, #tpu.memory_space<vmem>>, %arg3: memref<2x16xf32, #tpu.memory_space<vmem>>, %arg4: memref<98x256xf32, #tpu.memory_space<vmem>>, %arg5: memref<1xf32, #tpu.memory_space<smem>>, %arg6: memref<4x16x256xf32, #tpu.memory_space<vmem>>) attributes {dimension_semantics = [#tpu.dimension_semantics<parallel>], iteration_bounds = array<i64: 1>, scalar_prefetch = 0 : i64, scratch_operands = 0 : i64, tpu.core_type = #tpu.core_type<tc>, window_params = [{transform_indices = @transform_0, window_bounds = array<i64: 4, 16, 256>}, {pipeline_mode = #tpu.pipeline_mode<synchronous>, transform_indices = @transform_1, window_bounds = array<i64: 16, 2>}, {pipeline_mode = #tpu.pipeline_mode<synchronous>, transform_indices = @transform_2, window_bounds = array<i64: 2, 16>}, {pipeline_mode = #tpu.pipeline_mode<synchronous>, transform_indices = @transform_3, window_bounds = array<i64: 98, 256>}, {transform_indices = @transform_4, window_bounds = array<i64: 1>}, {transform_indices = @transform_5, window_bounds = array<i64: 4, 16, 256>}]} {
    %c0 = arith.constant 0 : index
    %c0_0 = arith.constant 0 : index
    %c0_1 = arith.constant 0 : index
    %0 = vector.load %arg1[%c0, %c0_0, %c0_1] : memref<4x16x256xf32, #tpu.memory_space<vmem>>, vector<4x16x256xf32>
    %cst = arith.constant dense<0.000000e+00> : vector<4x16xf32>
    %1 = vector.multi_reduction <add>, %0, %cst [2] : vector<4x16x256xf32> to vector<4x16xf32>
    %cst_2 = arith.constant 2.560000e+02 : f32
    %2 = vector.broadcast %cst_2 : f32 to vector<4x16xf32>
    %3 = arith.divf %1, %2 : vector<4x16xf32>
    %cst_3 = arith.constant dense<0xFF800000> : vector<4x16xf32>
    %4 = vector.multi_reduction <maximumf>, %0, %cst_3 [2] : vector<4x16x256xf32> to vector<4x16xf32>
    %5 = tpu.concatenate %3, %4 in 0 : vector<4x16xf32>, vector<4x16xf32> -> vector<8x16xf32>
    %c0_4 = arith.constant 0 : index
    %c0_5 = arith.constant 0 : index
    %6 = vector.load %arg2[%c0_4, %c0_5] : memref<16x2xf32, #tpu.memory_space<vmem>>, vector<16x2xf32>
    %cst_6 = arith.constant dense<0.000000e+00> : vector<8x2xf32>
    %7 = tpu.matmul %5, %6, %cst_6 {dimension_numbers = #tpu.dot_dimension_numbers<[1], [0], [0], [1], [0, 0, 1, 1], [], []>} : vector<8x16xf32>, vector<16x2xf32>, vector<8x2xf32> -> vector<8x2xf32>
    %cst_7 = arith.constant 0.000000e+00 : f32
    %8 = vector.broadcast %cst_7 : f32 to vector<8x2xf32>
    %9 = arith.maximumf %7, %8 : vector<8x2xf32>
    %c0_8 = arith.constant 0 : index
    %c0_9 = arith.constant 0 : index
    %10 = vector.load %arg3[%c0_8, %c0_9] : memref<2x16xf32, #tpu.memory_space<vmem>>, vector<2x16xf32>
    %cst_10 = arith.constant dense<0.000000e+00> : vector<8x16xf32>
    %11 = tpu.matmul %9, %10, %cst_10 {dimension_numbers = #tpu.dot_dimension_numbers<[1], [0], [0], [1], [0, 0, 1, 1], [], []>} : vector<8x2xf32>, vector<2x16xf32>, vector<8x16xf32> -> vector<8x16xf32>
    %12 = vector.extract_strided_slice %11 {offsets = [0, 0], sizes = [4, 16], strides = [1, 1]} : vector<8x16xf32> to vector<4x16xf32>
    %13 = vector.extract_strided_slice %11 {offsets = [4, 0], sizes = [4, 16], strides = [1, 1]} : vector<8x16xf32> to vector<4x16xf32>
    %14 = arith.addf %12, %13 : vector<4x16xf32>
    %15 = arith.negf %14 : vector<4x16xf32>
    %16 = math.exp %15 : vector<4x16xf32>
    %cst_11 = arith.constant 1.000000e+00 : f32
    %17 = vector.broadcast %cst_11 : f32 to vector<4x16xf32>
    %18 = arith.addf %17, %16 : vector<4x16xf32>
    %19 = arith.divf %17, %18 : vector<4x16xf32>
    %cst_12 = arith.constant dense<0.000000e+00> : vector<4x256xf32>
    %20 = vector.multi_reduction <add>, %0, %cst_12 [1] : vector<4x16x256xf32> to vector<4x256xf32>
    %cst_13 = arith.constant 1.600000e+01 : f32
    %21 = vector.broadcast %cst_13 : f32 to vector<4x256xf32>
    %22 = arith.divf %20, %21 : vector<4x256xf32>
    %cst_14 = arith.constant dense<0xFF800000> : vector<4x256xf32>
    %23 = vector.multi_reduction <maximumf>, %0, %cst_14 [1] : vector<4x16x256xf32> to vector<4x256xf32>
    %c0_15 = arith.constant 0 : index
    %24 = memref.load %arg5[%c0_15] : memref<1xf32, #tpu.memory_space<smem>>
    %cst_16 = arith.constant 0.000000e+00 : f32
    %25 = vector.broadcast %cst_16 : f32 to vector<4x256xf32>
    %cst_17 = arith.constant 0.000000e+00 : f32
    %26 = vector.broadcast %cst_17 : f32 to vector<4x256xf32>
    %cst_18 = arith.constant 0.000000e+00 : f32
    %27 = vector.broadcast %cst_18 : f32 to vector<4x256xf32>
    %cst_19 = arith.constant 0.000000e+00 : f32
    %28 = vector.broadcast %cst_19 : f32 to vector<4x256xf32>
    %c51_i32 = arith.constant 51 : i32
    %29 = tpu.dynamic_rotate %22 by %c51_i32 dim 1 : vector<4x256xf32>, i32 -> vector<4x256xf32>
    %c51_i32_20 = arith.constant 51 : i32
    %30 = tpu.dynamic_rotate %23 by %c51_i32_20 dim 1 : vector<4x256xf32>, i32 -> vector<4x256xf32>
    %c0_21 = arith.constant 0 : index
    %c0_22 = arith.constant 0 : index
    %31 = vector.load %arg4[%c0_21, %c0_22] : memref<98x256xf32, #tpu.memory_space<vmem>>, vector<1x256xf32>
    %c49 = arith.constant 49 : index
    %c0_23 = arith.constant 0 : index
    %32 = vector.load %arg4[%c49, %c0_23] : memref<98x256xf32, #tpu.memory_space<vmem>>, vector<1x256xf32>
    %33 = vector.broadcast %31 : vector<1x256xf32> to vector<4x256xf32>
    %34 = arith.mulf %29, %33 : vector<4x256xf32>
    %35 = arith.addf %25, %34 : vector<4x256xf32>
    %36 = vector.broadcast %32 : vector<1x256xf32> to vector<4x256xf32>
    %37 = arith.mulf %30, %36 : vector<4x256xf32>
    %38 = arith.addf %35, %37 : vector<4x256xf32>
    %c50_i32 = arith.constant 50 : i32
    %39 = tpu.dynamic_rotate %22 by %c50_i32 dim 1 : vector<4x256xf32>, i32 -> vector<4x256xf32>
    %c50_i32_24 = arith.constant 50 : i32
    %40 = tpu.dynamic_rotate %23 by %c50_i32_24 dim 1 : vector<4x256xf32>, i32 -> vector<4x256xf32>
    %c1 = arith.constant 1 : index
    %c0_25 = arith.constant 0 : index
    %41 = vector.load %arg4[%c1, %c0_25] : memref<98x256xf32, #tpu.memory_space<vmem>>, vector<1x256xf32>
    %c50 = arith.constant 50 : index
    %c0_26 = arith.constant 0 : index
    %42 = vector.load %arg4[%c50, %c0_26] : memref<98x256xf32, #tpu.memory_space<vmem>>, vector<1x256xf32>
    %43 = vector.broadcast %41 : vector<1x256xf32> to vector<4x256xf32>
    %44 = arith.mulf %39, %43 : vector<4x256xf32>
    %45 = arith.addf %26, %44 : vector<4x256xf32>
    %46 = vector.broadcast %42 : vector<1x256xf32> to vector<4x256xf32>
    %47 = arith.mulf %40, %46 : vector<4x256xf32>
    %48 = arith.addf %45, %47 : vector<4x256xf32>
    %c49_i32 = arith.constant 49 : i32
    %49 = tpu.dynamic_rotate %22 by %c49_i32 dim 1 : vector<4x256xf32>, i32 -> vector<4x256xf32>
    %c49_i32_27 = arith.constant 49 : i32
    %50 = tpu.dynamic_rotate %23 by %c49_i32_27 dim 1 : vector<4x256xf32>, i32 -> vector<4x256xf32>
    %c2 = arith.constant 2 : index
    %c0_28 = arith.constant 0 : index
    %51 = vector.load %arg4[%c2, %c0_28] : memref<98x256xf32, #tpu.memory_space<vmem>>, vector<1x256xf32>
    %c51 = arith.constant 51 : index
    %c0_29 = arith.constant 0 : index
    %52 = vector.load %arg4[%c51, %c0_29] : memref<98x256xf32, #tpu.memory_space<vmem>>, vector<1x256xf32>
    %53 = vector.broadcast %51 : vector<1x256xf32> to vector<4x256xf32>
    %54 = arith.mulf %49, %53 : vector<4x256xf32>
    %55 = arith.addf %27, %54 : vector<4x256xf32>
    %56 = vector.broadcast %52 : vector<1x256xf32> to vector<4x256xf32>
    %57 = arith.mulf %50, %56 : vector<4x256xf32>
    %58 = arith.addf %55, %57 : vector<4x256xf32>
    %c48_i32 = arith.constant 48 : i32
    %59 = tpu.dynamic_rotate %22 by %c48_i32 dim 1 : vector<4x256xf32>, i32 -> vector<4x256xf32>
    %c48_i32_30 = arith.constant 48 : i32
    %60 = tpu.dynamic_rotate %23 by %c48_i32_30 dim 1 : vector<4x256xf32>, i32 -> vector<4x256xf32>
    %c3 = arith.constant 3 : index
    %c0_31 = arith.constant 0 : index
    %61 = vector.load %arg4[%c3, %c0_31] : memref<98x256xf32, #tpu.memory_space<vmem>>, vector<1x256xf32>
    %c52 = arith.constant 52 : index
    %c0_32 = arith.constant 0 : index
    %62 = vector.load %arg4[%c52, %c0_32] : memref<98x256xf32, #tpu.memory_space<vmem>>, vector<1x256xf32>
    %63 = vector.broadcast %61 : vector<1x256xf32> to vector<4x256xf32>
    %64 = arith.mulf %59, %63 : vector<4x256xf32>
    %65 = arith.addf %28, %64 : vector<4x256xf32>
    %66 = vector.broadcast %62 : vector<1x256xf32> to vector<4x256xf32>
    %67 = arith.mulf %60, %66 : vector<4x256xf32>
    %68 = arith.addf %65, %67 : vector<4x256xf32>
    %c47_i32 = arith.constant 47 : i32
    %69 = tpu.dynamic_rotate %22 by %c47_i32 dim 1 : vector<4x256xf32>, i32 -> vector<4x256xf32>
    %c47_i32_33 = arith.constant 47 : i32
    %70 = tpu.dynamic_rotate %23 by %c47_i32_33 dim 1 : vector<4x256xf32>, i32 -> vector<4x256xf32>
    %c4 = arith.constant 4 : index
    %c0_34 = arith.constant 0 : index
    %71 = vector.load %arg4[%c4, %c0_34] : memref<98x256xf32, #tpu.memory_space<vmem>>, vector<1x256xf32>
    %c53 = arith.constant 53 : index
    %c0_35 = arith.constant 0 : index
    %72 = vector.load %arg4[%c53, %c0_35] : memref<98x256xf32, #tpu.memory_space<vmem>>, vector<1x256xf32>
    %73 = vector.broadcast %71 : vector<1x256xf32> to vector<4x256xf32>
    %74 = arith.mulf %69, %73 : vector<4x256xf32>
    %75 = arith.addf %38, %74 : vector<4x256xf32>
    %76 = vector.broadcast %72 : vector<1x256xf32> to vector<4x256xf32>
    %77 = arith.mulf %70, %76 : vector<4x256xf32>
    %78 = arith.addf %75, %77 : vector<4x256xf32>
    %c46_i32 = arith.constant 46 : i32
    %79 = tpu.dynamic_rotate %22 by %c46_i32 dim 1 : vector<4x256xf32>, i32 -> vector<4x256xf32>
    %c46_i32_36 = arith.constant 46 : i32
    %80 = tpu.dynamic_rotate %23 by %c46_i32_36 dim 1 : vector<4x256xf32>, i32 -> vector<4x256xf32>
    %c5 = arith.constant 5 : index
    %c0_37 = arith.constant 0 : index
    %81 = vector.load %arg4[%c5, %c0_37] : memref<98x256xf32, #tpu.memory_space<vmem>>, vector<1x256xf32>
    %c54 = arith.constant 54 : index
    %c0_38 = arith.constant 0 : index
    %82 = vector.load %arg4[%c54, %c0_38] : memref<98x256xf32, #tpu.memory_space<vmem>>, vector<1x256xf32>
    %83 = vector.broadcast %81 : vector<1x256xf32> to vector<4x256xf32>
    %84 = arith.mulf %79, %83 : vector<4x256xf32>
    %85 = arith.addf %48, %84 : vector<4x256xf32>
    %86 = vector.broadcast %82 : vector<1x256xf32> to vector<4x256xf32>
    %87 = arith.mulf %80, %86 : vector<4x256xf32>
    %88 = arith.addf %85, %87 : vector<4x256xf32>
    %c45_i32 = arith.constant 45 : i32
    %89 = tpu.dynamic_rotate %22 by %c45_i32 dim 1 : vector<4x256xf32>, i32 -> vector<4x256xf32>
    %c45_i32_39 = arith.constant 45 : i32
    %90 = tpu.dynamic_rotate %23 by %c45_i32_39 dim 1 : vector<4x256xf32>, i32 -> vector<4x256xf32>
    %c6 = arith.constant 6 : index
    %c0_40 = arith.constant 0 : index
    %91 = vector.load %arg4[%c6, %c0_40] : memref<98x256xf32, #tpu.memory_space<vmem>>, vector<1x256xf32>
    %c55 = arith.constant 55 : index
    %c0_41 = arith.constant 0 : index
    %92 = vector.load %arg4[%c55, %c0_41] : memref<98x256xf32, #tpu.memory_space<vmem>>, vector<1x256xf32>
    %93 = vector.broadcast %91 : vector<1x256xf32> to vector<4x256xf32>
    %94 = arith.mulf %89, %93 : vector<4x256xf32>
    %95 = arith.addf %58, %94 : vector<4x256xf32>
    %96 = vector.broadcast %92 : vector<1x256xf32> to vector<4x256xf32>
    %97 = arith.mulf %90, %96 : vector<4x256xf32>
    %98 = arith.addf %95, %97 : vector<4x256xf32>
    %c35_i32 = arith.constant 35 : i32
    %99 = tpu.dynamic_rotate %22 by %c35_i32 dim 1 : vector<4x256xf32>, i32 -> vector<4x256xf32>
    %c35_i32_42 = arith.constant 35 : i32
    %100 = tpu.dynamic_rotate %23 by %c35_i32_42 dim 1 : vector<4x256xf32>, i32 -> vector<4x256xf32>
    %c7 = arith.constant 7 : index
    %c0_43 = arith.constant 0 : index
    %101 = vector.load %arg4[%c7, %c0_43] : memref<98x256xf32, #tpu.memory_space<vmem>>, vector<1x256xf32>
    %c56 = arith.constant 56 : index
    %c0_44 = arith.constant 0 : index
    %102 = vector.load %arg4[%c56, %c0_44] : memref<98x256xf32, #tpu.memory_space<vmem>>, vector<1x256xf32>
    %103 = vector.broadcast %101 : vector<1x256xf32> to vector<4x256xf32>
    %104 = arith.mulf %99, %103 : vector<4x256xf32>
    %105 = arith.addf %68, %104 : vector<4x256xf32>
    %106 = vector.broadcast %102 : vector<1x256xf32> to vector<4x256xf32>
    %107 = arith.mulf %100, %106 : vector<4x256xf32>
    %108 = arith.addf %105, %107 : vector<4x256xf32>
    %c34_i32 = arith.constant 34 : i32
    %109 = tpu.dynamic_rotate %22 by %c34_i32 dim 1 : vector<4x256xf32>, i32 -> vector<4x256xf32>
    %c34_i32_45 = arith.constant 34 : i32
    %110 = tpu.dynamic_rotate %23 by %c34_i32_45 dim 1 : vector<4x256xf32>, i32 -> vector<4x256xf32>
    %c8 = arith.constant 8 : index
    %c0_46 = arith.constant 0 : index
    %111 = vector.load %arg4[%c8, %c0_46] : memref<98x256xf32, #tpu.memory_space<vmem>>, vector<1x256xf32>
    %c57 = arith.constant 57 : index
    %c0_47 = arith.constant 0 : index
    %112 = vector.load %arg4[%c57, %c0_47] : memref<98x256xf32, #tpu.memory_space<vmem>>, vector<1x256xf32>
    %113 = vector.broadcast %111 : vector<1x256xf32> to vector<4x256xf32>
    %114 = arith.mulf %109, %113 : vector<4x256xf32>
    %115 = arith.addf %78, %114 : vector<4x256xf32>
    %116 = vector.broadcast %112 : vector<1x256xf32> to vector<4x256xf32>
    %117 = arith.mulf %110, %116 : vector<4x256xf32>
    %118 = arith.addf %115, %117 : vector<4x256xf32>
    %c33_i32 = arith.constant 33 : i32
    %119 = tpu.dynamic_rotate %22 by %c33_i32 dim 1 : vector<4x256xf32>, i32 -> vector<4x256xf32>
    %c33_i32_48 = arith.constant 33 : i32
    %120 = tpu.dynamic_rotate %23 by %c33_i32_48 dim 1 : vector<4x256xf32>, i32 -> vector<4x256xf32>
    %c9 = arith.constant 9 : index
    %c0_49 = arith.constant 0 : index
    %121 = vector.load %arg4[%c9, %c0_49] : memref<98x256xf32, #tpu.memory_space<vmem>>, vector<1x256xf32>
    %c58 = arith.constant 58 : index
    %c0_50 = arith.constant 0 : index
    %122 = vector.load %arg4[%c58, %c0_50] : memref<98x256xf32, #tpu.memory_space<vmem>>, vector<1x256xf32>
    %123 = vector.broadcast %121 : vector<1x256xf32> to vector<4x256xf32>
    %124 = arith.mulf %119, %123 : vector<4x256xf32>
    %125 = arith.addf %88, %124 : vector<4x256xf32>
    %126 = vector.broadcast %122 : vector<1x256xf32> to vector<4x256xf32>
    %127 = arith.mulf %120, %126 : vector<4x256xf32>
    %128 = arith.addf %125, %127 : vector<4x256xf32>
    %c32_i32 = arith.constant 32 : i32
    %129 = tpu.dynamic_rotate %22 by %c32_i32 dim 1 : vector<4x256xf32>, i32 -> vector<4x256xf32>
    %c32_i32_51 = arith.constant 32 : i32
    %130 = tpu.dynamic_rotate %23 by %c32_i32_51 dim 1 : vector<4x256xf32>, i32 -> vector<4x256xf32>
    %c10 = arith.constant 10 : index
    %c0_52 = arith.constant 0 : index
    %131 = vector.load %arg4[%c10, %c0_52] : memref<98x256xf32, #tpu.memory_space<vmem>>, vector<1x256xf32>
    %c59 = arith.constant 59 : index
    %c0_53 = arith.constant 0 : index
    %132 = vector.load %arg4[%c59, %c0_53] : memref<98x256xf32, #tpu.memory_space<vmem>>, vector<1x256xf32>
    %133 = vector.broadcast %131 : vector<1x256xf32> to vector<4x256xf32>
    %134 = arith.mulf %129, %133 : vector<4x256xf32>
    %135 = arith.addf %98, %134 : vector<4x256xf32>
    %136 = vector.broadcast %132 : vector<1x256xf32> to vector<4x256xf32>
    %137 = arith.mulf %130, %136 : vector<4x256xf32>
    %138 = arith.addf %135, %137 : vector<4x256xf32>
    %c31_i32 = arith.constant 31 : i32
    %139 = tpu.dynamic_rotate %22 by %c31_i32 dim 1 : vector<4x256xf32>, i32 -> vector<4x256xf32>
    %c31_i32_54 = arith.constant 31 : i32
    %140 = tpu.dynamic_rotate %23 by %c31_i32_54 dim 1 : vector<4x256xf32>, i32 -> vector<4x256xf32>
    %c11 = arith.constant 11 : index
    %c0_55 = arith.constant 0 : index
    %141 = vector.load %arg4[%c11, %c0_55] : memref<98x256xf32, #tpu.memory_space<vmem>>, vector<1x256xf32>
    %c60 = arith.constant 60 : index
    %c0_56 = arith.constant 0 : index
    %142 = vector.load %arg4[%c60, %c0_56] : memref<98x256xf32, #tpu.memory_space<vmem>>, vector<1x256xf32>
    %143 = vector.broadcast %141 : vector<1x256xf32> to vector<4x256xf32>
    %144 = arith.mulf %139, %143 : vector<4x256xf32>
    %145 = arith.addf %108, %144 : vector<4x256xf32>
    %146 = vector.broadcast %142 : vector<1x256xf32> to vector<4x256xf32>
    %147 = arith.mulf %140, %146 : vector<4x256xf32>
    %148 = arith.addf %145, %147 : vector<4x256xf32>
    %c30_i32 = arith.constant 30 : i32
    %149 = tpu.dynamic_rotate %22 by %c30_i32 dim 1 : vector<4x256xf32>, i32 -> vector<4x256xf32>
    %c30_i32_57 = arith.constant 30 : i32
    %150 = tpu.dynamic_rotate %23 by %c30_i32_57 dim 1 : vector<4x256xf32>, i32 -> vector<4x256xf32>
    %c12 = arith.constant 12 : index
    %c0_58 = arith.constant 0 : index
    %151 = vector.load %arg4[%c12, %c0_58] : memref<98x256xf32, #tpu.memory_space<vmem>>, vector<1x256xf32>
    %c61 = arith.constant 61 : index
    %c0_59 = arith.constant 0 : index
    %152 = vector.load %arg4[%c61, %c0_59] : memref<98x256xf32, #tpu.memory_space<vmem>>, vector<1x256xf32>
    %153 = vector.broadcast %151 : vector<1x256xf32> to vector<4x256xf32>
    %154 = arith.mulf %149, %153 : vector<4x256xf32>
    %155 = arith.addf %118, %154 : vector<4x256xf32>
    %156 = vector.broadcast %152 : vector<1x256xf32> to vector<4x256xf32>
    %157 = arith.mulf %150, %156 : vector<4x256xf32>
    %158 = arith.addf %155, %157 : vector<4x256xf32>
    %c29_i32 = arith.constant 29 : i32
    %159 = tpu.dynamic_rotate %22 by %c29_i32 dim 1 : vector<4x256xf32>, i32 -> vector<4x256xf32>
    %c29_i32_60 = arith.constant 29 : i32
    %160 = tpu.dynamic_rotate %23 by %c29_i32_60 dim 1 : vector<4x256xf32>, i32 -> vector<4x256xf32>
    %c13 = arith.constant 13 : index
    %c0_61 = arith.constant 0 : index
    %161 = vector.load %arg4[%c13, %c0_61] : memref<98x256xf32, #tpu.memory_space<vmem>>, vector<1x256xf32>
    %c62 = arith.constant 62 : index
    %c0_62 = arith.constant 0 : index
    %162 = vector.load %arg4[%c62, %c0_62] : memref<98x256xf32, #tpu.memory_space<vmem>>, vector<1x256xf32>
    %163 = vector.broadcast %161 : vector<1x256xf32> to vector<4x256xf32>
    %164 = arith.mulf %159, %163 : vector<4x256xf32>
    %165 = arith.addf %128, %164 : vector<4x256xf32>
    %166 = vector.broadcast %162 : vector<1x256xf32> to vector<4x256xf32>
    %167 = arith.mulf %160, %166 : vector<4x256xf32>
    %168 = arith.addf %165, %167 : vector<4x256xf32>
    %c19_i32 = arith.constant 19 : i32
    %169 = tpu.dynamic_rotate %22 by %c19_i32 dim 1 : vector<4x256xf32>, i32 -> vector<4x256xf32>
    %c19_i32_63 = arith.constant 19 : i32
    %170 = tpu.dynamic_rotate %23 by %c19_i32_63 dim 1 : vector<4x256xf32>, i32 -> vector<4x256xf32>
    %c14 = arith.constant 14 : index
    %c0_64 = arith.constant 0 : index
    %171 = vector.load %arg4[%c14, %c0_64] : memref<98x256xf32, #tpu.memory_space<vmem>>, vector<1x256xf32>
    %c63 = arith.constant 63 : index
    %c0_65 = arith.constant 0 : index
    %172 = vector.load %arg4[%c63, %c0_65] : memref<98x256xf32, #tpu.memory_space<vmem>>, vector<1x256xf32>
    %173 = vector.broadcast %171 : vector<1x256xf32> to vector<4x256xf32>
    %174 = arith.mulf %169, %173 : vector<4x256xf32>
    %175 = arith.addf %138, %174 : vector<4x256xf32>
    %176 = vector.broadcast %172 : vector<1x256xf32> to vector<4x256xf32>
    %177 = arith.mulf %170, %176 : vector<4x256xf32>
    %178 = arith.addf %175, %177 : vector<4x256xf32>
    %c18_i32 = arith.constant 18 : i32
    %179 = tpu.dynamic_rotate %22 by %c18_i32 dim 1 : vector<4x256xf32>, i32 -> vector<4x256xf32>
    %c18_i32_66 = arith.constant 18 : i32
    %180 = tpu.dynamic_rotate %23 by %c18_i32_66 dim 1 : vector<4x256xf32>, i32 -> vector<4x256xf32>
    %c15 = arith.constant 15 : index
    %c0_67 = arith.constant 0 : index
    %181 = vector.load %arg4[%c15, %c0_67] : memref<98x256xf32, #tpu.memory_space<vmem>>, vector<1x256xf32>
    %c64 = arith.constant 64 : index
    %c0_68 = arith.constant 0 : index
    %182 = vector.load %arg4[%c64, %c0_68] : memref<98x256xf32, #tpu.memory_space<vmem>>, vector<1x256xf32>
    %183 = vector.broadcast %181 : vector<1x256xf32> to vector<4x256xf32>
    %184 = arith.mulf %179, %183 : vector<4x256xf32>
    %185 = arith.addf %148, %184 : vector<4x256xf32>
    %186 = vector.broadcast %182 : vector<1x256xf32> to vector<4x256xf32>
    %187 = arith.mulf %180, %186 : vector<4x256xf32>
    %188 = arith.addf %185, %187 : vector<4x256xf32>
    %c17_i32 = arith.constant 17 : i32
    %189 = tpu.dynamic_rotate %22 by %c17_i32 dim 1 : vector<4x256xf32>, i32 -> vector<4x256xf32>
    %c17_i32_69 = arith.constant 17 : i32
    %190 = tpu.dynamic_rotate %23 by %c17_i32_69 dim 1 : vector<4x256xf32>, i32 -> vector<4x256xf32>
    %c16 = arith.constant 16 : index
    %c0_70 = arith.constant 0 : index
    %191 = vector.load %arg4[%c16, %c0_70] : memref<98x256xf32, #tpu.memory_space<vmem>>, vector<1x256xf32>
    %c65 = arith.constant 65 : index
    %c0_71 = arith.constant 0 : index
    %192 = vector.load %arg4[%c65, %c0_71] : memref<98x256xf32, #tpu.memory_space<vmem>>, vector<1x256xf32>
    %193 = vector.broadcast %191 : vector<1x256xf32> to vector<4x256xf32>
    %194 = arith.mulf %189, %193 : vector<4x256xf32>
    %195 = arith.addf %158, %194 : vector<4x256xf32>
    %196 = vector.broadcast %192 : vector<1x256xf32> to vector<4x256xf32>
    %197 = arith.mulf %190, %196 : vector<4x256xf32>
    %198 = arith.addf %195, %197 : vector<4x256xf32>
    %c16_i32 = arith.constant 16 : i32
    %199 = tpu.dynamic_rotate %22 by %c16_i32 dim 1 : vector<4x256xf32>, i32 -> vector<4x256xf32>
    %c16_i32_72 = arith.constant 16 : i32
    %200 = tpu.dynamic_rotate %23 by %c16_i32_72 dim 1 : vector<4x256xf32>, i32 -> vector<4x256xf32>
    %c17 = arith.constant 17 : index
    %c0_73 = arith.constant 0 : index
    %201 = vector.load %arg4[%c17, %c0_73] : memref<98x256xf32, #tpu.memory_space<vmem>>, vector<1x256xf32>
    %c66 = arith.constant 66 : index
    %c0_74 = arith.constant 0 : index
    %202 = vector.load %arg4[%c66, %c0_74] : memref<98x256xf32, #tpu.memory_space<vmem>>, vector<1x256xf32>
    %203 = vector.broadcast %201 : vector<1x256xf32> to vector<4x256xf32>
    %204 = arith.mulf %199, %203 : vector<4x256xf32>
    %205 = arith.addf %168, %204 : vector<4x256xf32>
    %206 = vector.broadcast %202 : vector<1x256xf32> to vector<4x256xf32>
    %207 = arith.mulf %200, %206 : vector<4x256xf32>
    %208 = arith.addf %205, %207 : vector<4x256xf32>
    %c15_i32 = arith.constant 15 : i32
    %209 = tpu.dynamic_rotate %22 by %c15_i32 dim 1 : vector<4x256xf32>, i32 -> vector<4x256xf32>
    %c15_i32_75 = arith.constant 15 : i32
    %210 = tpu.dynamic_rotate %23 by %c15_i32_75 dim 1 : vector<4x256xf32>, i32 -> vector<4x256xf32>
    %c18 = arith.constant 18 : index
    %c0_76 = arith.constant 0 : index
    %211 = vector.load %arg4[%c18, %c0_76] : memref<98x256xf32, #tpu.memory_space<vmem>>, vector<1x256xf32>
    %c67 = arith.constant 67 : index
    %c0_77 = arith.constant 0 : index
    %212 = vector.load %arg4[%c67, %c0_77] : memref<98x256xf32, #tpu.memory_space<vmem>>, vector<1x256xf32>
    %213 = vector.broadcast %211 : vector<1x256xf32> to vector<4x256xf32>
    %214 = arith.mulf %209, %213 : vector<4x256xf32>
    %215 = arith.addf %178, %214 : vector<4x256xf32>
    %216 = vector.broadcast %212 : vector<1x256xf32> to vector<4x256xf32>
    %217 = arith.mulf %210, %216 : vector<4x256xf32>
    %218 = arith.addf %215, %217 : vector<4x256xf32>
    %c14_i32 = arith.constant 14 : i32
    %219 = tpu.dynamic_rotate %22 by %c14_i32 dim 1 : vector<4x256xf32>, i32 -> vector<4x256xf32>
    %c14_i32_78 = arith.constant 14 : i32
    %220 = tpu.dynamic_rotate %23 by %c14_i32_78 dim 1 : vector<4x256xf32>, i32 -> vector<4x256xf32>
    %c19 = arith.constant 19 : index
    %c0_79 = arith.constant 0 : index
    %221 = vector.load %arg4[%c19, %c0_79] : memref<98x256xf32, #tpu.memory_space<vmem>>, vector<1x256xf32>
    %c68 = arith.constant 68 : index
    %c0_80 = arith.constant 0 : index
    %222 = vector.load %arg4[%c68, %c0_80] : memref<98x256xf32, #tpu.memory_space<vmem>>, vector<1x256xf32>
    %223 = vector.broadcast %221 : vector<1x256xf32> to vector<4x256xf32>
    %224 = arith.mulf %219, %223 : vector<4x256xf32>
    %225 = arith.addf %188, %224 : vector<4x256xf32>
    %226 = vector.broadcast %222 : vector<1x256xf32> to vector<4x256xf32>
    %227 = arith.mulf %220, %226 : vector<4x256xf32>
    %228 = arith.addf %225, %227 : vector<4x256xf32>
    %c13_i32 = arith.constant 13 : i32
    %229 = tpu.dynamic_rotate %22 by %c13_i32 dim 1 : vector<4x256xf32>, i32 -> vector<4x256xf32>
    %c13_i32_81 = arith.constant 13 : i32
    %230 = tpu.dynamic_rotate %23 by %c13_i32_81 dim 1 : vector<4x256xf32>, i32 -> vector<4x256xf32>
    %c20 = arith.constant 20 : index
    %c0_82 = arith.constant 0 : index
    %231 = vector.load %arg4[%c20, %c0_82] : memref<98x256xf32, #tpu.memory_space<vmem>>, vector<1x256xf32>
    %c69 = arith.constant 69 : index
    %c0_83 = arith.constant 0 : index
    %232 = vector.load %arg4[%c69, %c0_83] : memref<98x256xf32, #tpu.memory_space<vmem>>, vector<1x256xf32>
    %233 = vector.broadcast %231 : vector<1x256xf32> to vector<4x256xf32>
    %234 = arith.mulf %229, %233 : vector<4x256xf32>
    %235 = arith.addf %198, %234 : vector<4x256xf32>
    %236 = vector.broadcast %232 : vector<1x256xf32> to vector<4x256xf32>
    %237 = arith.mulf %230, %236 : vector<4x256xf32>
    %238 = arith.addf %235, %237 : vector<4x256xf32>
    %c3_i32 = arith.constant 3 : i32
    %239 = tpu.dynamic_rotate %22 by %c3_i32 dim 1 : vector<4x256xf32>, i32 -> vector<4x256xf32>
    %c3_i32_84 = arith.constant 3 : i32
    %240 = tpu.dynamic_rotate %23 by %c3_i32_84 dim 1 : vector<4x256xf32>, i32 -> vector<4x256xf32>
    %c21 = arith.constant 21 : index
    %c0_85 = arith.constant 0 : index
    %241 = vector.load %arg4[%c21, %c0_85] : memref<98x256xf32, #tpu.memory_space<vmem>>, vector<1x256xf32>
    %c70 = arith.constant 70 : index
    %c0_86 = arith.constant 0 : index
    %242 = vector.load %arg4[%c70, %c0_86] : memref<98x256xf32, #tpu.memory_space<vmem>>, vector<1x256xf32>
    %243 = vector.broadcast %241 : vector<1x256xf32> to vector<4x256xf32>
    %244 = arith.mulf %239, %243 : vector<4x256xf32>
    %245 = arith.addf %208, %244 : vector<4x256xf32>
    %246 = vector.broadcast %242 : vector<1x256xf32> to vector<4x256xf32>
    %247 = arith.mulf %240, %246 : vector<4x256xf32>
    %248 = arith.addf %245, %247 : vector<4x256xf32>
    %c2_i32 = arith.constant 2 : i32
    %249 = tpu.dynamic_rotate %22 by %c2_i32 dim 1 : vector<4x256xf32>, i32 -> vector<4x256xf32>
    %c2_i32_87 = arith.constant 2 : i32
    %250 = tpu.dynamic_rotate %23 by %c2_i32_87 dim 1 : vector<4x256xf32>, i32 -> vector<4x256xf32>
    %c22 = arith.constant 22 : index
    %c0_88 = arith.constant 0 : index
    %251 = vector.load %arg4[%c22, %c0_88] : memref<98x256xf32, #tpu.memory_space<vmem>>, vector<1x256xf32>
    %c71 = arith.constant 71 : index
    %c0_89 = arith.constant 0 : index
    %252 = vector.load %arg4[%c71, %c0_89] : memref<98x256xf32, #tpu.memory_space<vmem>>, vector<1x256xf32>
    %253 = vector.broadcast %251 : vector<1x256xf32> to vector<4x256xf32>
    %254 = arith.mulf %249, %253 : vector<4x256xf32>
    %255 = arith.addf %218, %254 : vector<4x256xf32>
    %256 = vector.broadcast %252 : vector<1x256xf32> to vector<4x256xf32>
    %257 = arith.mulf %250, %256 : vector<4x256xf32>
    %258 = arith.addf %255, %257 : vector<4x256xf32>
    %c1_i32 = arith.constant 1 : i32
    %259 = tpu.dynamic_rotate %22 by %c1_i32 dim 1 : vector<4x256xf32>, i32 -> vector<4x256xf32>
    %c1_i32_90 = arith.constant 1 : i32
    %260 = tpu.dynamic_rotate %23 by %c1_i32_90 dim 1 : vector<4x256xf32>, i32 -> vector<4x256xf32>
    %c23 = arith.constant 23 : index
    %c0_91 = arith.constant 0 : index
    %261 = vector.load %arg4[%c23, %c0_91] : memref<98x256xf32, #tpu.memory_space<vmem>>, vector<1x256xf32>
    %c72 = arith.constant 72 : index
    %c0_92 = arith.constant 0 : index
    %262 = vector.load %arg4[%c72, %c0_92] : memref<98x256xf32, #tpu.memory_space<vmem>>, vector<1x256xf32>
    %263 = vector.broadcast %261 : vector<1x256xf32> to vector<4x256xf32>
    %264 = arith.mulf %259, %263 : vector<4x256xf32>
    %265 = arith.addf %228, %264 : vector<4x256xf32>
    %266 = vector.broadcast %262 : vector<1x256xf32> to vector<4x256xf32>
    %267 = arith.mulf %260, %266 : vector<4x256xf32>
    %268 = arith.addf %265, %267 : vector<4x256xf32>
    %c24 = arith.constant 24 : index
    %c0_93 = arith.constant 0 : index
    %269 = vector.load %arg4[%c24, %c0_93] : memref<98x256xf32, #tpu.memory_space<vmem>>, vector<1x256xf32>
    %c73 = arith.constant 73 : index
    %c0_94 = arith.constant 0 : index
    %270 = vector.load %arg4[%c73, %c0_94] : memref<98x256xf32, #tpu.memory_space<vmem>>, vector<1x256xf32>
    %271 = vector.broadcast %269 : vector<1x256xf32> to vector<4x256xf32>
    %272 = arith.mulf %22, %271 : vector<4x256xf32>
    %273 = arith.addf %238, %272 : vector<4x256xf32>
    %274 = vector.broadcast %270 : vector<1x256xf32> to vector<4x256xf32>
    %275 = arith.mulf %23, %274 : vector<4x256xf32>
    %276 = arith.addf %273, %275 : vector<4x256xf32>
    %c255_i32 = arith.constant 255 : i32
    %277 = tpu.dynamic_rotate %22 by %c255_i32 dim 1 : vector<4x256xf32>, i32 -> vector<4x256xf32>
    %c255_i32_95 = arith.constant 255 : i32
    %278 = tpu.dynamic_rotate %23 by %c255_i32_95 dim 1 : vector<4x256xf32>, i32 -> vector<4x256xf32>
    %c25 = arith.constant 25 : index
    %c0_96 = arith.constant 0 : index
    %279 = vector.load %arg4[%c25, %c0_96] : memref<98x256xf32, #tpu.memory_space<vmem>>, vector<1x256xf32>
    %c74 = arith.constant 74 : index
    %c0_97 = arith.constant 0 : index
    %280 = vector.load %arg4[%c74, %c0_97] : memref<98x256xf32, #tpu.memory_space<vmem>>, vector<1x256xf32>
    %281 = vector.broadcast %279 : vector<1x256xf32> to vector<4x256xf32>
    %282 = arith.mulf %277, %281 : vector<4x256xf32>
    %283 = arith.addf %248, %282 : vector<4x256xf32>
    %284 = vector.broadcast %280 : vector<1x256xf32> to vector<4x256xf32>
    %285 = arith.mulf %278, %284 : vector<4x256xf32>
    %286 = arith.addf %283, %285 : vector<4x256xf32>
    %c254_i32 = arith.constant 254 : i32
    %287 = tpu.dynamic_rotate %22 by %c254_i32 dim 1 : vector<4x256xf32>, i32 -> vector<4x256xf32>
    %c254_i32_98 = arith.constant 254 : i32
    %288 = tpu.dynamic_rotate %23 by %c254_i32_98 dim 1 : vector<4x256xf32>, i32 -> vector<4x256xf32>
    %c26 = arith.constant 26 : index
    %c0_99 = arith.constant 0 : index
    %289 = vector.load %arg4[%c26, %c0_99] : memref<98x256xf32, #tpu.memory_space<vmem>>, vector<1x256xf32>
    %c75 = arith.constant 75 : index
    %c0_100 = arith.constant 0 : index
    %290 = vector.load %arg4[%c75, %c0_100] : memref<98x256xf32, #tpu.memory_space<vmem>>, vector<1x256xf32>
    %291 = vector.broadcast %289 : vector<1x256xf32> to vector<4x256xf32>
    %292 = arith.mulf %287, %291 : vector<4x256xf32>
    %293 = arith.addf %258, %292 : vector<4x256xf32>
    %294 = vector.broadcast %290 : vector<1x256xf32> to vector<4x256xf32>
    %295 = arith.mulf %288, %294 : vector<4x256xf32>
    %296 = arith.addf %293, %295 : vector<4x256xf32>
    %c253_i32 = arith.constant 253 : i32
    %297 = tpu.dynamic_rotate %22 by %c253_i32 dim 1 : vector<4x256xf32>, i32 -> vector<4x256xf32>
    %c253_i32_101 = arith.constant 253 : i32
    %298 = tpu.dynamic_rotate %23 by %c253_i32_101 dim 1 : vector<4x256xf32>, i32 -> vector<4x256xf32>
    %c27 = arith.constant 27 : index
    %c0_102 = arith.constant 0 : index
    %299 = vector.load %arg4[%c27, %c0_102] : memref<98x256xf32, #tpu.memory_space<vmem>>, vector<1x256xf32>
    %c76 = arith.constant 76 : index
    %c0_103 = arith.constant 0 : index
    %300 = vector.load %arg4[%c76, %c0_103] : memref<98x256xf32, #tpu.memory_space<vmem>>, vector<1x256xf32>
    %301 = vector.broadcast %299 : vector<1x256xf32> to vector<4x256xf32>
    %302 = arith.mulf %297, %301 : vector<4x256xf32>
    %303 = arith.addf %268, %302 : vector<4x256xf32>
    %304 = vector.broadcast %300 : vector<1x256xf32> to vector<4x256xf32>
    %305 = arith.mulf %298, %304 : vector<4x256xf32>
    %306 = arith.addf %303, %305 : vector<4x256xf32>
    %c243_i32 = arith.constant 243 : i32
    %307 = tpu.dynamic_rotate %22 by %c243_i32 dim 1 : vector<4x256xf32>, i32 -> vector<4x256xf32>
    %c243_i32_104 = arith.constant 243 : i32
    %308 = tpu.dynamic_rotate %23 by %c243_i32_104 dim 1 : vector<4x256xf32>, i32 -> vector<4x256xf32>
    %c28 = arith.constant 28 : index
    %c0_105 = arith.constant 0 : index
    %309 = vector.load %arg4[%c28, %c0_105] : memref<98x256xf32, #tpu.memory_space<vmem>>, vector<1x256xf32>
    %c77 = arith.constant 77 : index
    %c0_106 = arith.constant 0 : index
    %310 = vector.load %arg4[%c77, %c0_106] : memref<98x256xf32, #tpu.memory_space<vmem>>, vector<1x256xf32>
    %311 = vector.broadcast %309 : vector<1x256xf32> to vector<4x256xf32>
    %312 = arith.mulf %307, %311 : vector<4x256xf32>
    %313 = arith.addf %276, %312 : vector<4x256xf32>
    %314 = vector.broadcast %310 : vector<1x256xf32> to vector<4x256xf32>
    %315 = arith.mulf %308, %314 : vector<4x256xf32>
    %316 = arith.addf %313, %315 : vector<4x256xf32>
    %c242_i32 = arith.constant 242 : i32
    %317 = tpu.dynamic_rotate %22 by %c242_i32 dim 1 : vector<4x256xf32>, i32 -> vector<4x256xf32>
    %c242_i32_107 = arith.constant 242 : i32
    %318 = tpu.dynamic_rotate %23 by %c242_i32_107 dim 1 : vector<4x256xf32>, i32 -> vector<4x256xf32>
    %c29 = arith.constant 29 : index
    %c0_108 = arith.constant 0 : index
    %319 = vector.load %arg4[%c29, %c0_108] : memref<98x256xf32, #tpu.memory_space<vmem>>, vector<1x256xf32>
    %c78 = arith.constant 78 : index
    %c0_109 = arith.constant 0 : index
    %320 = vector.load %arg4[%c78, %c0_109] : memref<98x256xf32, #tpu.memory_space<vmem>>, vector<1x256xf32>
    %321 = vector.broadcast %319 : vector<1x256xf32> to vector<4x256xf32>
    %322 = arith.mulf %317, %321 : vector<4x256xf32>
    %323 = arith.addf %286, %322 : vector<4x256xf32>
    %324 = vector.broadcast %320 : vector<1x256xf32> to vector<4x256xf32>
    %325 = arith.mulf %318, %324 : vector<4x256xf32>
    %326 = arith.addf %323, %325 : vector<4x256xf32>
    %c241_i32 = arith.constant 241 : i32
    %327 = tpu.dynamic_rotate %22 by %c241_i32 dim 1 : vector<4x256xf32>, i32 -> vector<4x256xf32>
    %c241_i32_110 = arith.constant 241 : i32
    %328 = tpu.dynamic_rotate %23 by %c241_i32_110 dim 1 : vector<4x256xf32>, i32 -> vector<4x256xf32>
    %c30 = arith.constant 30 : index
    %c0_111 = arith.constant 0 : index
    %329 = vector.load %arg4[%c30, %c0_111] : memref<98x256xf32, #tpu.memory_space<vmem>>, vector<1x256xf32>
    %c79 = arith.constant 79 : index
    %c0_112 = arith.constant 0 : index
    %330 = vector.load %arg4[%c79, %c0_112] : memref<98x256xf32, #tpu.memory_space<vmem>>, vector<1x256xf32>
    %331 = vector.broadcast %329 : vector<1x256xf32> to vector<4x256xf32>
    %332 = arith.mulf %327, %331 : vector<4x256xf32>
    %333 = arith.addf %296, %332 : vector<4x256xf32>
    %334 = vector.broadcast %330 : vector<1x256xf32> to vector<4x256xf32>
    %335 = arith.mulf %328, %334 : vector<4x256xf32>
    %336 = arith.addf %333, %335 : vector<4x256xf32>
    %c240_i32 = arith.constant 240 : i32
    %337 = tpu.dynamic_rotate %22 by %c240_i32 dim 1 : vector<4x256xf32>, i32 -> vector<4x256xf32>
    %c240_i32_113 = arith.constant 240 : i32
    %338 = tpu.dynamic_rotate %23 by %c240_i32_113 dim 1 : vector<4x256xf32>, i32 -> vector<4x256xf32>
    %c31 = arith.constant 31 : index
    %c0_114 = arith.constant 0 : index
    %339 = vector.load %arg4[%c31, %c0_114] : memref<98x256xf32, #tpu.memory_space<vmem>>, vector<1x256xf32>
    %c80 = arith.constant 80 : index
    %c0_115 = arith.constant 0 : index
    %340 = vector.load %arg4[%c80, %c0_115] : memref<98x256xf32, #tpu.memory_space<vmem>>, vector<1x256xf32>
    %341 = vector.broadcast %339 : vector<1x256xf32> to vector<4x256xf32>
    %342 = arith.mulf %337, %341 : vector<4x256xf32>
    %343 = arith.addf %306, %342 : vector<4x256xf32>
    %344 = vector.broadcast %340 : vector<1x256xf32> to vector<4x256xf32>
    %345 = arith.mulf %338, %344 : vector<4x256xf32>
    %346 = arith.addf %343, %345 : vector<4x256xf32>
    %c239_i32 = arith.constant 239 : i32
    %347 = tpu.dynamic_rotate %22 by %c239_i32 dim 1 : vector<4x256xf32>, i32 -> vector<4x256xf32>
    %c239_i32_116 = arith.constant 239 : i32
    %348 = tpu.dynamic_rotate %23 by %c239_i32_116 dim 1 : vector<4x256xf32>, i32 -> vector<4x256xf32>
    %c32 = arith.constant 32 : index
    %c0_117 = arith.constant 0 : index
    %349 = vector.load %arg4[%c32, %c0_117] : memref<98x256xf32, #tpu.memory_space<vmem>>, vector<1x256xf32>
    %c81 = arith.constant 81 : index
    %c0_118 = arith.constant 0 : index
    %350 = vector.load %arg4[%c81, %c0_118] : memref<98x256xf32, #tpu.memory_space<vmem>>, vector<1x256xf32>
    %351 = vector.broadcast %349 : vector<1x256xf32> to vector<4x256xf32>
    %352 = arith.mulf %347, %351 : vector<4x256xf32>
    %353 = arith.addf %316, %352 : vector<4x256xf32>
    %354 = vector.broadcast %350 : vector<1x256xf32> to vector<4x256xf32>
    %355 = arith.mulf %348, %354 : vector<4x256xf32>
    %356 = arith.addf %353, %355 : vector<4x256xf32>
    %c238_i32 = arith.constant 238 : i32
    %357 = tpu.dynamic_rotate %22 by %c238_i32 dim 1 : vector<4x256xf32>, i32 -> vector<4x256xf32>
    %c238_i32_119 = arith.constant 238 : i32
    %358 = tpu.dynamic_rotate %23 by %c238_i32_119 dim 1 : vector<4x256xf32>, i32 -> vector<4x256xf32>
    %c33 = arith.constant 33 : index
    %c0_120 = arith.constant 0 : index
    %359 = vector.load %arg4[%c33, %c0_120] : memref<98x256xf32, #tpu.memory_space<vmem>>, vector<1x256xf32>
    %c82 = arith.constant 82 : index
    %c0_121 = arith.constant 0 : index
    %360 = vector.load %arg4[%c82, %c0_121] : memref<98x256xf32, #tpu.memory_space<vmem>>, vector<1x256xf32>
    %361 = vector.broadcast %359 : vector<1x256xf32> to vector<4x256xf32>
    %362 = arith.mulf %357, %361 : vector<4x256xf32>
    %363 = arith.addf %326, %362 : vector<4x256xf32>
    %364 = vector.broadcast %360 : vector<1x256xf32> to vector<4x256xf32>
    %365 = arith.mulf %358, %364 : vector<4x256xf32>
    %366 = arith.addf %363, %365 : vector<4x256xf32>
    %c237_i32 = arith.constant 237 : i32
    %367 = tpu.dynamic_rotate %22 by %c237_i32 dim 1 : vector<4x256xf32>, i32 -> vector<4x256xf32>
    %c237_i32_122 = arith.constant 237 : i32
    %368 = tpu.dynamic_rotate %23 by %c237_i32_122 dim 1 : vector<4x256xf32>, i32 -> vector<4x256xf32>
    %c34 = arith.constant 34 : index
    %c0_123 = arith.constant 0 : index
    %369 = vector.load %arg4[%c34, %c0_123] : memref<98x256xf32, #tpu.memory_space<vmem>>, vector<1x256xf32>
    %c83 = arith.constant 83 : index
    %c0_124 = arith.constant 0 : index
    %370 = vector.load %arg4[%c83, %c0_124] : memref<98x256xf32, #tpu.memory_space<vmem>>, vector<1x256xf32>
    %371 = vector.broadcast %369 : vector<1x256xf32> to vector<4x256xf32>
    %372 = arith.mulf %367, %371 : vector<4x256xf32>
    %373 = arith.addf %336, %372 : vector<4x256xf32>
    %374 = vector.broadcast %370 : vector<1x256xf32> to vector<4x256xf32>
    %375 = arith.mulf %368, %374 : vector<4x256xf32>
    %376 = arith.addf %373, %375 : vector<4x256xf32>
    %c227_i32 = arith.constant 227 : i32
    %377 = tpu.dynamic_rotate %22 by %c227_i32 dim 1 : vector<4x256xf32>, i32 -> vector<4x256xf32>
    %c227_i32_125 = arith.constant 227 : i32
    %378 = tpu.dynamic_rotate %23 by %c227_i32_125 dim 1 : vector<4x256xf32>, i32 -> vector<4x256xf32>
    %c35 = arith.constant 35 : index
    %c0_126 = arith.constant 0 : index
    %379 = vector.load %arg4[%c35, %c0_126] : memref<98x256xf32, #tpu.memory_space<vmem>>, vector<1x256xf32>
    %c84 = arith.constant 84 : index
    %c0_127 = arith.constant 0 : index
    %380 = vector.load %arg4[%c84, %c0_127] : memref<98x256xf32, #tpu.memory_space<vmem>>, vector<1x256xf32>
    %381 = vector.broadcast %379 : vector<1x256xf32> to vector<4x256xf32>
    %382 = arith.mulf %377, %381 : vector<4x256xf32>
    %383 = arith.addf %346, %382 : vector<4x256xf32>
    %384 = vector.broadcast %380 : vector<1x256xf32> to vector<4x256xf32>
    %385 = arith.mulf %378, %384 : vector<4x256xf32>
    %386 = arith.addf %383, %385 : vector<4x256xf32>
    %c226_i32 = arith.constant 226 : i32
    %387 = tpu.dynamic_rotate %22 by %c226_i32 dim 1 : vector<4x256xf32>, i32 -> vector<4x256xf32>
    %c226_i32_128 = arith.constant 226 : i32
    %388 = tpu.dynamic_rotate %23 by %c226_i32_128 dim 1 : vector<4x256xf32>, i32 -> vector<4x256xf32>
    %c36 = arith.constant 36 : index
    %c0_129 = arith.constant 0 : index
    %389 = vector.load %arg4[%c36, %c0_129] : memref<98x256xf32, #tpu.memory_space<vmem>>, vector<1x256xf32>
    %c85 = arith.constant 85 : index
    %c0_130 = arith.constant 0 : index
    %390 = vector.load %arg4[%c85, %c0_130] : memref<98x256xf32, #tpu.memory_space<vmem>>, vector<1x256xf32>
    %391 = vector.broadcast %389 : vector<1x256xf32> to vector<4x256xf32>
    %392 = arith.mulf %387, %391 : vector<4x256xf32>
    %393 = arith.addf %356, %392 : vector<4x256xf32>
    %394 = vector.broadcast %390 : vector<1x256xf32> to vector<4x256xf32>
    %395 = arith.mulf %388, %394 : vector<4x256xf32>
    %396 = arith.addf %393, %395 : vector<4x256xf32>
    %c225_i32 = arith.constant 225 : i32
    %397 = tpu.dynamic_rotate %22 by %c225_i32 dim 1 : vector<4x256xf32>, i32 -> vector<4x256xf32>
    %c225_i32_131 = arith.constant 225 : i32
    %398 = tpu.dynamic_rotate %23 by %c225_i32_131 dim 1 : vector<4x256xf32>, i32 -> vector<4x256xf32>
    %c37 = arith.constant 37 : index
    %c0_132 = arith.constant 0 : index
    %399 = vector.load %arg4[%c37, %c0_132] : memref<98x256xf32, #tpu.memory_space<vmem>>, vector<1x256xf32>
    %c86 = arith.constant 86 : index
    %c0_133 = arith.constant 0 : index
    %400 = vector.load %arg4[%c86, %c0_133] : memref<98x256xf32, #tpu.memory_space<vmem>>, vector<1x256xf32>
    %401 = vector.broadcast %399 : vector<1x256xf32> to vector<4x256xf32>
    %402 = arith.mulf %397, %401 : vector<4x256xf32>
    %403 = arith.addf %366, %402 : vector<4x256xf32>
    %404 = vector.broadcast %400 : vector<1x256xf32> to vector<4x256xf32>
    %405 = arith.mulf %398, %404 : vector<4x256xf32>
    %406 = arith.addf %403, %405 : vector<4x256xf32>
    %c224_i32 = arith.constant 224 : i32
    %407 = tpu.dynamic_rotate %22 by %c224_i32 dim 1 : vector<4x256xf32>, i32 -> vector<4x256xf32>
    %c224_i32_134 = arith.constant 224 : i32
    %408 = tpu.dynamic_rotate %23 by %c224_i32_134 dim 1 : vector<4x256xf32>, i32 -> vector<4x256xf32>
    %c38 = arith.constant 38 : index
    %c0_135 = arith.constant 0 : index
    %409 = vector.load %arg4[%c38, %c0_135] : memref<98x256xf32, #tpu.memory_space<vmem>>, vector<1x256xf32>
    %c87 = arith.constant 87 : index
    %c0_136 = arith.constant 0 : index
    %410 = vector.load %arg4[%c87, %c0_136] : memref<98x256xf32, #tpu.memory_space<vmem>>, vector<1x256xf32>
    %411 = vector.broadcast %409 : vector<1x256xf32> to vector<4x256xf32>
    %412 = arith.mulf %407, %411 : vector<4x256xf32>
    %413 = arith.addf %376, %412 : vector<4x256xf32>
    %414 = vector.broadcast %410 : vector<1x256xf32> to vector<4x256xf32>
    %415 = arith.mulf %408, %414 : vector<4x256xf32>
    %416 = arith.addf %413, %415 : vector<4x256xf32>
    %c223_i32 = arith.constant 223 : i32
    %417 = tpu.dynamic_rotate %22 by %c223_i32 dim 1 : vector<4x256xf32>, i32 -> vector<4x256xf32>
    %c223_i32_137 = arith.constant 223 : i32
    %418 = tpu.dynamic_rotate %23 by %c223_i32_137 dim 1 : vector<4x256xf32>, i32 -> vector<4x256xf32>
    %c39 = arith.constant 39 : index
    %c0_138 = arith.constant 0 : index
    %419 = vector.load %arg4[%c39, %c0_138] : memref<98x256xf32, #tpu.memory_space<vmem>>, vector<1x256xf32>
    %c88 = arith.constant 88 : index
    %c0_139 = arith.constant 0 : index
    %420 = vector.load %arg4[%c88, %c0_139] : memref<98x256xf32, #tpu.memory_space<vmem>>, vector<1x256xf32>
    %421 = vector.broadcast %419 : vector<1x256xf32> to vector<4x256xf32>
    %422 = arith.mulf %417, %421 : vector<4x256xf32>
    %423 = arith.addf %386, %422 : vector<4x256xf32>
    %424 = vector.broadcast %420 : vector<1x256xf32> to vector<4x256xf32>
    %425 = arith.mulf %418, %424 : vector<4x256xf32>
    %426 = arith.addf %423, %425 : vector<4x256xf32>
    %c222_i32 = arith.constant 222 : i32
    %427 = tpu.dynamic_rotate %22 by %c222_i32 dim 1 : vector<4x256xf32>, i32 -> vector<4x256xf32>
    %c222_i32_140 = arith.constant 222 : i32
    %428 = tpu.dynamic_rotate %23 by %c222_i32_140 dim 1 : vector<4x256xf32>, i32 -> vector<4x256xf32>
    %c40 = arith.constant 40 : index
    %c0_141 = arith.constant 0 : index
    %429 = vector.load %arg4[%c40, %c0_141] : memref<98x256xf32, #tpu.memory_space<vmem>>, vector<1x256xf32>
    %c89 = arith.constant 89 : index
    %c0_142 = arith.constant 0 : index
    %430 = vector.load %arg4[%c89, %c0_142] : memref<98x256xf32, #tpu.memory_space<vmem>>, vector<1x256xf32>
    %431 = vector.broadcast %429 : vector<1x256xf32> to vector<4x256xf32>
    %432 = arith.mulf %427, %431 : vector<4x256xf32>
    %433 = arith.addf %396, %432 : vector<4x256xf32>
    %434 = vector.broadcast %430 : vector<1x256xf32> to vector<4x256xf32>
    %435 = arith.mulf %428, %434 : vector<4x256xf32>
    %436 = arith.addf %433, %435 : vector<4x256xf32>
    %c221_i32 = arith.constant 221 : i32
    %437 = tpu.dynamic_rotate %22 by %c221_i32 dim 1 : vector<4x256xf32>, i32 -> vector<4x256xf32>
    %c221_i32_143 = arith.constant 221 : i32
    %438 = tpu.dynamic_rotate %23 by %c221_i32_143 dim 1 : vector<4x256xf32>, i32 -> vector<4x256xf32>
    %c41 = arith.constant 41 : index
    %c0_144 = arith.constant 0 : index
    %439 = vector.load %arg4[%c41, %c0_144] : memref<98x256xf32, #tpu.memory_space<vmem>>, vector<1x256xf32>
    %c90 = arith.constant 90 : index
    %c0_145 = arith.constant 0 : index
    %440 = vector.load %arg4[%c90, %c0_145] : memref<98x256xf32, #tpu.memory_space<vmem>>, vector<1x256xf32>
    %441 = vector.broadcast %439 : vector<1x256xf32> to vector<4x256xf32>
    %442 = arith.mulf %437, %441 : vector<4x256xf32>
    %443 = arith.addf %406, %442 : vector<4x256xf32>
    %444 = vector.broadcast %440 : vector<1x256xf32> to vector<4x256xf32>
    %445 = arith.mulf %438, %444 : vector<4x256xf32>
    %446 = arith.addf %443, %445 : vector<4x256xf32>
    %c211_i32 = arith.constant 211 : i32
    %447 = tpu.dynamic_rotate %22 by %c211_i32 dim 1 : vector<4x256xf32>, i32 -> vector<4x256xf32>
    %c211_i32_146 = arith.constant 211 : i32
    %448 = tpu.dynamic_rotate %23 by %c211_i32_146 dim 1 : vector<4x256xf32>, i32 -> vector<4x256xf32>
    %c42 = arith.constant 42 : index
    %c0_147 = arith.constant 0 : index
    %449 = vector.load %arg4[%c42, %c0_147] : memref<98x256xf32, #tpu.memory_space<vmem>>, vector<1x256xf32>
    %c91 = arith.constant 91 : index
    %c0_148 = arith.constant 0 : index
    %450 = vector.load %arg4[%c91, %c0_148] : memref<98x256xf32, #tpu.memory_space<vmem>>, vector<1x256xf32>
    %451 = vector.broadcast %449 : vector<1x256xf32> to vector<4x256xf32>
    %452 = arith.mulf %447, %451 : vector<4x256xf32>
    %453 = arith.addf %416, %452 : vector<4x256xf32>
    %454 = vector.broadcast %450 : vector<1x256xf32> to vector<4x256xf32>
    %455 = arith.mulf %448, %454 : vector<4x256xf32>
    %456 = arith.addf %453, %455 : vector<4x256xf32>
    %c210_i32 = arith.constant 210 : i32
    %457 = tpu.dynamic_rotate %22 by %c210_i32 dim 1 : vector<4x256xf32>, i32 -> vector<4x256xf32>
    %c210_i32_149 = arith.constant 210 : i32
    %458 = tpu.dynamic_rotate %23 by %c210_i32_149 dim 1 : vector<4x256xf32>, i32 -> vector<4x256xf32>
    %c43 = arith.constant 43 : index
    %c0_150 = arith.constant 0 : index
    %459 = vector.load %arg4[%c43, %c0_150] : memref<98x256xf32, #tpu.memory_space<vmem>>, vector<1x256xf32>
    %c92 = arith.constant 92 : index
    %c0_151 = arith.constant 0 : index
    %460 = vector.load %arg4[%c92, %c0_151] : memref<98x256xf32, #tpu.memory_space<vmem>>, vector<1x256xf32>
    %461 = vector.broadcast %459 : vector<1x256xf32> to vector<4x256xf32>
    %462 = arith.mulf %457, %461 : vector<4x256xf32>
    %463 = arith.addf %426, %462 : vector<4x256xf32>
    %464 = vector.broadcast %460 : vector<1x256xf32> to vector<4x256xf32>
    %465 = arith.mulf %458, %464 : vector<4x256xf32>
    %466 = arith.addf %463, %465 : vector<4x256xf32>
    %c209_i32 = arith.constant 209 : i32
    %467 = tpu.dynamic_rotate %22 by %c209_i32 dim 1 : vector<4x256xf32>, i32 -> vector<4x256xf32>
    %c209_i32_152 = arith.constant 209 : i32
    %468 = tpu.dynamic_rotate %23 by %c209_i32_152 dim 1 : vector<4x256xf32>, i32 -> vector<4x256xf32>
    %c44 = arith.constant 44 : index
    %c0_153 = arith.constant 0 : index
    %469 = vector.load %arg4[%c44, %c0_153] : memref<98x256xf32, #tpu.memory_space<vmem>>, vector<1x256xf32>
    %c93 = arith.constant 93 : index
    %c0_154 = arith.constant 0 : index
    %470 = vector.load %arg4[%c93, %c0_154] : memref<98x256xf32, #tpu.memory_space<vmem>>, vector<1x256xf32>
    %471 = vector.broadcast %469 : vector<1x256xf32> to vector<4x256xf32>
    %472 = arith.mulf %467, %471 : vector<4x256xf32>
    %473 = arith.addf %436, %472 : vector<4x256xf32>
    %474 = vector.broadcast %470 : vector<1x256xf32> to vector<4x256xf32>
    %475 = arith.mulf %468, %474 : vector<4x256xf32>
    %476 = arith.addf %473, %475 : vector<4x256xf32>
    %c208_i32 = arith.constant 208 : i32
    %477 = tpu.dynamic_rotate %22 by %c208_i32 dim 1 : vector<4x256xf32>, i32 -> vector<4x256xf32>
    %c208_i32_155 = arith.constant 208 : i32
    %478 = tpu.dynamic_rotate %23 by %c208_i32_155 dim 1 : vector<4x256xf32>, i32 -> vector<4x256xf32>
    %c45 = arith.constant 45 : index
    %c0_156 = arith.constant 0 : index
    %479 = vector.load %arg4[%c45, %c0_156] : memref<98x256xf32, #tpu.memory_space<vmem>>, vector<1x256xf32>
    %c94 = arith.constant 94 : index
    %c0_157 = arith.constant 0 : index
    %480 = vector.load %arg4[%c94, %c0_157] : memref<98x256xf32, #tpu.memory_space<vmem>>, vector<1x256xf32>
    %481 = vector.broadcast %479 : vector<1x256xf32> to vector<4x256xf32>
    %482 = arith.mulf %477, %481 : vector<4x256xf32>
    %483 = arith.addf %446, %482 : vector<4x256xf32>
    %484 = vector.broadcast %480 : vector<1x256xf32> to vector<4x256xf32>
    %485 = arith.mulf %478, %484 : vector<4x256xf32>
    %486 = arith.addf %483, %485 : vector<4x256xf32>
    %c207_i32 = arith.constant 207 : i32
    %487 = tpu.dynamic_rotate %22 by %c207_i32 dim 1 : vector<4x256xf32>, i32 -> vector<4x256xf32>
    %c207_i32_158 = arith.constant 207 : i32
    %488 = tpu.dynamic_rotate %23 by %c207_i32_158 dim 1 : vector<4x256xf32>, i32 -> vector<4x256xf32>
    %c46 = arith.constant 46 : index
    %c0_159 = arith.constant 0 : index
    %489 = vector.load %arg4[%c46, %c0_159] : memref<98x256xf32, #tpu.memory_space<vmem>>, vector<1x256xf32>
    %c95 = arith.constant 95 : index
    %c0_160 = arith.constant 0 : index
    %490 = vector.load %arg4[%c95, %c0_160] : memref<98x256xf32, #tpu.memory_space<vmem>>, vector<1x256xf32>
    %491 = vector.broadcast %489 : vector<1x256xf32> to vector<4x256xf32>
    %492 = arith.mulf %487, %491 : vector<4x256xf32>
    %493 = arith.addf %456, %492 : vector<4x256xf32>
    %494 = vector.broadcast %490 : vector<1x256xf32> to vector<4x256xf32>
    %495 = arith.mulf %488, %494 : vector<4x256xf32>
    %496 = arith.addf %493, %495 : vector<4x256xf32>
    %c206_i32 = arith.constant 206 : i32
    %497 = tpu.dynamic_rotate %22 by %c206_i32 dim 1 : vector<4x256xf32>, i32 -> vector<4x256xf32>
    %c206_i32_161 = arith.constant 206 : i32
    %498 = tpu.dynamic_rotate %23 by %c206_i32_161 dim 1 : vector<4x256xf32>, i32 -> vector<4x256xf32>
    %c47 = arith.constant 47 : index
    %c0_162 = arith.constant 0 : index
    %499 = vector.load %arg4[%c47, %c0_162] : memref<98x256xf32, #tpu.memory_space<vmem>>, vector<1x256xf32>
    %c96 = arith.constant 96 : index
    %c0_163 = arith.constant 0 : index
    %500 = vector.load %arg4[%c96, %c0_163] : memref<98x256xf32, #tpu.memory_space<vmem>>, vector<1x256xf32>
    %501 = vector.broadcast %499 : vector<1x256xf32> to vector<4x256xf32>
    %502 = arith.mulf %497, %501 : vector<4x256xf32>
    %503 = arith.addf %466, %502 : vector<4x256xf32>
    %504 = vector.broadcast %500 : vector<1x256xf32> to vector<4x256xf32>
    %505 = arith.mulf %498, %504 : vector<4x256xf32>
    %506 = arith.addf %503, %505 : vector<4x256xf32>
    %c205_i32 = arith.constant 205 : i32
    %507 = tpu.dynamic_rotate %22 by %c205_i32 dim 1 : vector<4x256xf32>, i32 -> vector<4x256xf32>
    %c205_i32_164 = arith.constant 205 : i32
    %508 = tpu.dynamic_rotate %23 by %c205_i32_164 dim 1 : vector<4x256xf32>, i32 -> vector<4x256xf32>
    %c48 = arith.constant 48 : index
    %c0_165 = arith.constant 0 : index
    %509 = vector.load %arg4[%c48, %c0_165] : memref<98x256xf32, #tpu.memory_space<vmem>>, vector<1x256xf32>
    %c97 = arith.constant 97 : index
    %c0_166 = arith.constant 0 : index
    %510 = vector.load %arg4[%c97, %c0_166] : memref<98x256xf32, #tpu.memory_space<vmem>>, vector<1x256xf32>
    %511 = vector.broadcast %509 : vector<1x256xf32> to vector<4x256xf32>
    %512 = arith.mulf %507, %511 : vector<4x256xf32>
    %513 = arith.addf %476, %512 : vector<4x256xf32>
    %514 = vector.broadcast %510 : vector<1x256xf32> to vector<4x256xf32>
    %515 = arith.mulf %508, %514 : vector<4x256xf32>
    %516 = arith.addf %513, %515 : vector<4x256xf32>
    %517 = arith.addf %516, %486 : vector<4x256xf32>
    %518 = arith.addf %496, %506 : vector<4x256xf32>
    %519 = arith.addf %517, %518 : vector<4x256xf32>
    %520 = vector.broadcast %24 : f32 to vector<4x256xf32>
    %521 = arith.addf %519, %520 : vector<4x256xf32>
    %522 = arith.negf %521 : vector<4x256xf32>
    %523 = math.exp %522 : vector<4x256xf32>
    %cst_167 = arith.constant 1.000000e+00 : f32
    %524 = vector.broadcast %cst_167 : f32 to vector<4x256xf32>
    %525 = arith.addf %524, %523 : vector<4x256xf32>
    %526 = arith.divf %524, %525 : vector<4x256xf32>
    %527 = vector.shape_cast %19 : vector<4x16xf32> to vector<4x16x1xf32>
    %528 = vector.shape_cast %526 : vector<4x256xf32> to vector<4x1x256xf32>
    %529 = vector.broadcast %527 : vector<4x16x1xf32> to vector<4x16x256xf32>
    %530 = vector.broadcast %528 : vector<4x1x256xf32> to vector<4x16x256xf32>
    %531 = arith.addf %529, %530 : vector<4x16x256xf32>
    %cst_168 = arith.constant 3.000000e+00 : f32
    %532 = vector.broadcast %cst_168 : f32 to vector<4x16x256xf32>
    %533 = arith.addf %531, %532 : vector<4x16x256xf32>
    %534 = arith.mulf %533, %0 : vector<4x16x256xf32>
    %c0_169 = arith.constant 0 : index
    %c0_170 = arith.constant 0 : index
    %c0_171 = arith.constant 0 : index
    %535 = vector.load %arg6[%c0_169, %c0_170, %c0_171] : memref<4x16x256xf32, #tpu.memory_space<vmem>>, vector<4x16x256xf32>
    tpu.vector_store %arg6[%c0_169, %c0_170, %c0_171], %534 {strides = array<i32>} : memref<4x16x256xf32, #tpu.memory_space<vmem>>, vector<4x16x256xf32>,
    return
  }
  func.func @transform_0(%arg0: i32) -> (i32, i32, i32) {
    %c0_i32 = arith.constant 0 : i32
    %c0_i32_0 = arith.constant 0 : i32
    %c0_i32_1 = arith.constant 0 : i32
    return %arg0, %c0_i32, %c0_i32_0 : i32, i32, i32
  }
  func.func @transform_1(%arg0: i32) -> (i32, i32) {
    %c0_i32 = arith.constant 0 : i32
    %c0_i32_0 = arith.constant 0 : i32
    %c0_i32_1 = arith.constant 0 : i32
    return %c0_i32, %c0_i32_0 : i32, i32
  }
  func.func @transform_2(%arg0: i32) -> (i32, i32) {
    %c0_i32 = arith.constant 0 : i32
    %c0_i32_0 = arith.constant 0 : i32
    %c0_i32_1 = arith.constant 0 : i32
    return %c0_i32, %c0_i32_0 : i32, i32
  }
  func.func @transform_3(%arg0: i32) -> (i32, i32) {
    %c0_i32 = arith.constant 0 : i32
    %c0_i32_0 = arith.constant 0 : i32
    %c0_i32_1 = arith.constant 0 : i32
    return %c0_i32, %c0_i32_0 : i32, i32
  }
  func.func @transform_4(%arg0: i32) -> i32 {
    %c0_i32 = arith.constant 0 : i32
    %c0_i32_0 = arith.constant 0 : i32
    return %c0_i32 : i32
  }
  func.func @transform_5(%arg0: i32) -> (i32, i32, i32) {
    %c0_i32 = arith.constant 0 : i32
    %c0_i32_0 = arith.constant 0 : i32
    %c0_i32_1 = arith.constant 0 : i32
    return %arg0, %c0_i32, %c0_i32_0 : i32, i32, i32
  }
}

</mosaic_0001>

<llo_original>
// kernel: cbam_pallas.1
$region0: #{cbam_pallas.1}
  #allocation0 [shape = 'u32[]', space=smem, size = 0x4, offset = 0x4, fixed_abs, tag = 'smem constant byte address 0x4 - core index']
  #allocation1 [shape = 'u32[144,128]{1,0:T(1,128)}', space=vmem, size = 0x12000, scoped, tag = 'internal scratch']
  #allocation2 [shape = 'f32[1]{0:T(128)S(6)}', space=smem, size = 0x200, scoped, tag = 'scoped memory for cbam_pallas.1']
  %s0 = inlined_call_operand.vmem [shape: f32[4,16,256], index: 0, kind: input, shape index: {}]
  %s1 = inlined_call_operand.vmem [shape: f32[16,2], index: 1, kind: input, shape index: {}]
  %s2 = inlined_call_operand.vmem [shape: f32[2,16], index: 2, kind: input, shape index: {}]
  %s3 = inlined_call_operand.vmem [shape: f32[98,256], index: 3, kind: input, shape index: {}]
  %s4 = inlined_call_operand.<no memory space> [shape: f32[1], index: 4, kind: input, shape index: {}]
  %s5 = inlined_call_operand.vmem [shape: f32[4,16,256], index: 5, kind: output, shape index: {}]
  %s6 = sld [smem:[#allocation0]]
  $region30: #{cbam_pallas.1} parent=0
    _
  %s8 = ssub.s32 1, %s6
  %s9 = scalar_select 0, %s8, %s6
  %10 = sst [smem:[#allocation2]] %s4
  // Predicated region
  $region2: #{cbam_pallas.1} parent=0 // pred_check
    _
  $region3: #{cbam_pallas.1} parent=0 // pred_check_branch
    %12 = sbr.rel (0) target = $region5
  $region4: #{cbam_pallas.1} parent=0 // pred_region
    _
  $region5: #{cbam_pallas.1} parent=0 // pred_fallthru
    _
  // Predicated region
  $region6: #{cbam_pallas.1} parent=0 // pred_check
    _
  $region7: #{cbam_pallas.1} parent=0 // pred_check_branch
    %14 = sbr.rel (0) target = $region9
  $region8: #{cbam_pallas.1} parent=0 // pred_region
    _
  $region9: #{cbam_pallas.1} parent=0 // pred_fallthru
    _
  // Predicated region
  $region10: #{cbam_pallas.1} parent=0 // pred_check
    _
  $region11: #{cbam_pallas.1} parent=0 // pred_check_branch
    %16 = sbr.rel (0) target = $region13
  $region12: #{cbam_pallas.1} parent=0 // pred_region
    _
  $region13: #{cbam_pallas.1} parent=0 // pred_fallthru
    _
  // Predicated region
  $region14: #{cbam_pallas.1} parent=0 // pred_check
    _
  $region15: #{cbam_pallas.1} parent=0 // pred_check_branch
    %18 = sbr.rel (0) target = $region17
  $region16: #{cbam_pallas.1} parent=0 // pred_region
    _
  $region17: #{cbam_pallas.1} parent=0 // pred_fallthru
    _
  // Predicated region
  $region18: #{cbam_pallas.1} parent=0 // pred_check
    _
  $region19: #{cbam_pallas.1} parent=0 // pred_check_branch
    %20 = sbr.rel (0) target = $region21
  $region20: #{cbam_pallas.1} parent=0 // pred_region
    _
  $region21: #{cbam_pallas.1} parent=0 // pred_fallthru
    _
  %v21 = vld [vmem:[%s0] sm:$0xff]
  %v22 = vld [vmem:[%s0 + $0x8] sm:$0xff]
  %v23 = vld [vmem:[%s0 + $0x10] sm:$0xff]
  %v24 = vld [vmem:[%s0 + $0x18] sm:$0xff]
  %v25 = vld [vmem:[%s0 + $0x20] sm:$0xff]
  %v26 = vld [vmem:[%s0 + $0x28] sm:$0xff]
  %v27 = vld [vmem:[%s0 + $0x30] sm:$0xff]
  %v28 = vld [vmem:[%s0 + $0x38] sm:$0xff]
  %v29 = vld [vmem:[%s0 + $0x40] sm:$0xff]
  %v30 = vld [vmem:[%s0 + $0x48] sm:$0xff]
  %v31 = vld [vmem:[%s0 + $0x50] sm:$0xff]
  %v32 = vld [vmem:[%s0 + $0x58] sm:$0xff]
  %v33 = vld [vmem:[%s0 + $0x60] sm:$0xff]
  %v34 = vld [vmem:[%s0 + $0x68] sm:$0xff]
  %v35 = vld [vmem:[%s0 + $0x70] sm:$0xff]
  %v36 = vld [vmem:[%s0 + $0x78] sm:$0xff]
  %v37 = vadd.f32 %v21, %v22
  %38 = vadd.xlane.f32.xlu0 %v37
  %v39 = vpop.xlane.xlu0 %38
  %v40 = vadd.f32 %v23, %v24
  %41 = vadd.xlane.f32.xlu0 %v40
  %v42 = vpop.xlane.xlu0 %41
  %v43 = vadd.f32 %v25, %v26
  %44 = vadd.xlane.f32.xlu0 %v43
  %v45 = vpop.xlane.xlu0 %44
  %v46 = vadd.f32 %v27, %v28
  %47 = vadd.xlane.f32.xlu0 %v46
  %v48 = vpop.xlane.xlu0 %47
  %v49 = vadd.f32 %v29, %v30
  %50 = vadd.xlane.f32.xlu0 %v49
  %v51 = vpop.xlane.xlu0 %50
  %v52 = vadd.f32 %v31, %v32
  %53 = vadd.xlane.f32.xlu0 %v52
  %v54 = vpop.xlane.xlu0 %53
  %v55 = vadd.f32 %v33, %v34
  %56 = vadd.xlane.f32.xlu0 %v55
  %v57 = vpop.xlane.xlu0 %56
  %v58 = vadd.f32 %v35, %v36
  %59 = vadd.xlane.f32.xlu0 %v58
  %v60 = vpop.xlane.xlu0 %59
  %v61 = vrcp.pop 256.0
  %v62 = vmul.f32 %v39, %v61
  %v63 = vmul.f32 %v42, %v61
  %v64 = vmul.f32 %v45, %v61
  %v65 = vmul.f32 %v48, %v61
  %v66 = vmul.f32 %v51, %v61
  %v67 = vmul.f32 %v54, %v61
  %v68 = vmul.f32 %v57, %v61
  %v69 = vmul.f32 %v60, %v61
  %v70 = vmax.f32 %v21, %v22
  %71 = vmax.xlane.f32.xlu0 %v70
  %v72 = vpop.xlane.xlu0 %71
  %v73 = vmax.f32 %v23, %v24
  %74 = vmax.xlane.f32.xlu0 %v73
  %v75 = vpop.xlane.xlu0 %74
  %v76 = vmax.f32 %v25, %v26
  %77 = vmax.xlane.f32.xlu0 %v76
  %v78 = vpop.xlane.xlu0 %77
  %v79 = vmax.f32 %v27, %v28
  %80 = vmax.xlane.f32.xlu0 %v79
  %v81 = vpop.xlane.xlu0 %80
  %v82 = vmax.f32 %v29, %v30
  %83 = vmax.xlane.f32.xlu0 %v82
  %v84 = vpop.xlane.xlu0 %83
  %v85 = vmax.f32 %v31, %v32
  %86 = vmax.xlane.f32.xlu0 %v85
  %v87 = vpop.xlane.xlu0 %86
  %v88 = vmax.f32 %v33, %v34
  %89 = vmax.xlane.f32.xlu0 %v88
  %v90 = vpop.xlane.xlu0 %89
  %v91 = vmax.f32 %v35, %v36
  %92 = vmax.xlane.f32.xlu0 %v91
  %v93 = vpop.xlane.xlu0 %92
  %v102 = vlaneseq
  %v103 = vand.u32 %v102, 127
  %v104 = vlaneseq
  %v105 = vshrl.u32 %v104, 7
  %v106 = vsub.s32 %v103, %v105
  %v107 = vrot.slane %v62, %v106
  %v108 = vadd.s32 %v103, 4294967288
  %v109 = vlaneseq
  %v110 = vshrl.u32 %v109, 7
  %v111 = vsub.s32 %v108, %v110
  %v112 = vrot.slane %v63, %v111
  %vm113 = vcmask 130112
  %v114 = vsel %vm113, %v112, %v107
  %v115 = vlaneseq
  %v116 = vshrl.u32 %v115, 7
  %v117 = vsub.s32 %v103, %v116
  %v118 = vrot.slane %v64, %v117
  %v119 = vlaneseq
  %v120 = vshrl.u32 %v119, 7
  %v121 = vsub.s32 %v108, %v120
  %v122 = vrot.slane %v65, %v121
  %v123 = vsel %vm113, %v122, %v118
  %v124 = vlaneseq
  %v125 = vshrl.u32 %v124, 7
  %v126 = vsub.s32 %v103, %v125
  %v127 = vrot.slane %v66, %v126
  %v128 = vlaneseq
  %v129 = vshrl.u32 %v128, 7
  %v130 = vsub.s32 %v108, %v129
  %v131 = vrot.slane %v67, %v130
  %v132 = vsel %vm113, %v131, %v127
  %v133 = vlaneseq
  %v134 = vshrl.u32 %v133, 7
  %v135 = vsub.s32 %v103, %v134
  %v136 = vrot.slane %v68, %v135
  %v137 = vlaneseq
  %v138 = vshrl.u32 %v137, 7
  %v139 = vsub.s32 %v108, %v138
  %v140 = vrot.slane %v69, %v139
  %v141 = vsel %vm113, %v140, %v136
  %vm142 = vcmask 1041409
  %v143 = vsel %vm142, %v123, %v114
  %vm144 = vcmask 1042434
  %v145 = vsel %vm144, %v132, %v143
  %vm146 = vcmask 1043459
  %v147 = vsel %vm146, %v141, %v145
  %v157 = vlaneseq
  %v158 = vshrl.u32 %v157, 7
  %v159 = vsub.s32 %v103, %v158
  %v160 = vrot.slane %v72, %v159
  %v161 = vlaneseq
  %v162 = vshrl.u32 %v161, 7
  %v163 = vsub.s32 %v108, %v162
  %v164 = vrot.slane %v75, %v163
  %v165 = vsel %vm113, %v164, %v160
  %v166 = vlaneseq
  %v167 = vshrl.u32 %v166, 7
  %v168 = vsub.s32 %v103, %v167
  %v169 = vrot.slane %v78, %v168
  %v170 = vlaneseq
  %v171 = vshrl.u32 %v170, 7
  %v172 = vsub.s32 %v108, %v171
  %v173 = vrot.slane %v81, %v172
  %v174 = vsel %vm113, %v173, %v169
  %v175 = vlaneseq
  %v176 = vshrl.u32 %v175, 7
  %v177 = vsub.s32 %v103, %v176
  %v178 = vrot.slane %v84, %v177
  %v179 = vlaneseq
  %v180 = vshrl.u32 %v179, 7
  %v181 = vsub.s32 %v108, %v180
  %v182 = vrot.slane %v87, %v181
  %v183 = vsel %vm113, %v182, %v178
  %v184 = vlaneseq
  %v185 = vshrl.u32 %v184, 7
  %v186 = vsub.s32 %v103, %v185
  %v187 = vrot.slane %v90, %v186
  %v188 = vlaneseq
  %v189 = vshrl.u32 %v188, 7
  %v190 = vsub.s32 %v108, %v189
  %v191 = vrot.slane %v93, %v190
  %v192 = vsel %vm113, %v191, %v187
  %vm193 = vcmask 1045509
  %v194 = vsel %vm193, %v174, %v165
  %vm195 = vcmask 1046534
  %v196 = vsel %vm195, %v183, %v194
  %vm197 = vcmask 1047559
  %v198 = vsel %vm197, %v192, %v196
  %vm200 = vcmask 1043456
  %v201 = vsel %vm200, %v147, %v198
  %v202 = vld [vmem:[%s1] sm:$0xff]
  %v203 = vld [vmem:[%s1 + $0x8] sm:$0xff]
  %vm204 = vcmask 130048
  %v206 = vsel %vm204, %v201, 0
  %208 = vmatprep.subr.mxu0 0.0
  %209 = vmatpush1.msra.mxu0 0.0
  %210 = vmatprep.subr.mxu0 0.0
  %211 = vmatpush1.msra.mxu0 0.0
  %212 = vmatprep.subr.mxu0 0.0
  %213 = vmatpush1.msra.mxu0 0.0
  %214 = vmatprep.subr.mxu0 0.0
  %215 = vmatpush1.msra.mxu0 0.0
  %216 = vmatprep.subr.mxu0 0.0
  %217 = vmatpush1.msra.mxu0 0.0
  %218 = vmatprep.subr.mxu0 0.0
  %219 = vmatpush1.msra.mxu0 0.0
  %220 = vmatprep.subr.mxu0 0.0
  %221 = vmatpush1.msra.mxu0 0.0
  %222 = vmatprep.subr.mxu0 0.0
  %223 = vmatpush1.msra.mxu0 0.0
  %224 = vmatprep.subr.mxu0 0.0
  %225 = vmatpush1.msra.mxu0 0.0
  %226 = vmatprep.subr.mxu0 0.0
  %227 = vmatpush1.msra.mxu0 0.0
  %228 = vmatprep.subr.mxu0 0.0
  %229 = vmatpush1.msra.mxu0 0.0
  %230 = vmatprep.subr.mxu0 0.0
  %231 = vmatpush1.msra.mxu0 0.0
  %232 = vmatprep.subr.mxu0 0.0
  %233 = vmatpush1.msra.mxu0 0.0
  %234 = vmatprep.subr.mxu0 0.0
  %235 = vmatpush1.msra.mxu0 0.0
  %236 = vmatprep.subr.mxu0 0.0
  %237 = vmatpush1.msra.mxu0 %v203
  %238 = vmatprep.subr.mxu0 0.0
  %239 = vmatpush1.msra.mxu0 %v202
  %240 = vmatprep.subr.mxu0 0.0
  %241 = vmatpush2.msra.mxu0 0.0
  %242 = vmatprep.subr.mxu0 0.0
  %243 = vmatpush2.msra.mxu0 0.0
  %244 = vmatprep.subr.mxu0 0.0
  %245 = vmatpush2.msra.mxu0 0.0
  %246 = vmatprep.subr.mxu0 0.0
  %247 = vmatpush2.msra.mxu0 0.0
  %248 = vmatprep.subr.mxu0 0.0
  %249 = vmatpush2.msra.mxu0 0.0
  %250 = vmatprep.subr.mxu0 0.0
  %251 = vmatpush2.msra.mxu0 0.0
  %252 = vmatprep.subr.mxu0 0.0
  %253 = vmatpush2.msra.mxu0 0.0
  %254 = vmatprep.subr.mxu0 0.0
  %255 = vmatpush2.msra.mxu0 0.0
  %256 = vmatprep.subr.mxu0 0.0
  %257 = vmatpush2.msra.mxu0 0.0
  %258 = vmatprep.subr.mxu0 0.0
  %259 = vmatpush2.msra.mxu0 0.0
  %260 = vmatprep.subr.mxu0 0.0
  %261 = vmatpush2.msra.mxu0 0.0
  %262 = vmatprep.subr.mxu0 0.0
  %263 = vmatpush2.msra.mxu0 0.0
  %264 = vmatprep.subr.mxu0 0.0
  %265 = vmatpush2.msra.mxu0 0.0
  %266 = vmatprep.subr.mxu0 0.0
  %267 = vmatpush2.msra.mxu0 0.0
  %268 = vmatprep.subr.mxu0 0.0
  %269 = vmatpush2.msra.mxu0 0.0
  %270 = vmatprep.subr.mxu0 0.0
  %271 = vmatpush2.msra.mxu0 0.0
  %272 = vmatprep.mubr.f32.mxu0 0.0
  %273 = vmatmul.mubr.f32.gmra.mxu0 %v206
  %v274 = vpop.f32.mrf.mxu0
  %v275 = vadd.f32 0.0, %v274
  %v276 = vpop.f32.mrf.mxu0
  %277 = vdwg.mxu0
  %v278 = vmax.f32 %v275, 0.0
  %v279 = vld [vmem:[%s2] sm:$0x3]
  %vm280 = vcmask 15360
  %v282 = vsel %vm280, %v278, 0
  %vm284 = vcmask 1041408
  %v286 = vsel %vm284, %v279, 0
  %288 = vmatprep.subr.mxu0 0.0
  %289 = vmatpush1.msra.mxu0 0.0
  %290 = vmatprep.subr.mxu0 0.0
  %291 = vmatpush1.msra.mxu0 0.0
  %292 = vmatprep.subr.mxu0 0.0
  %293 = vmatpush1.msra.mxu0 0.0
  %294 = vmatprep.subr.mxu0 0.0
  %295 = vmatpush1.msra.mxu0 0.0
  %296 = vmatprep.subr.mxu0 0.0
  %297 = vmatpush1.msra.mxu0 0.0
  %298 = vmatprep.subr.mxu0 0.0
  %299 = vmatpush1.msra.mxu0 0.0
  %300 = vmatprep.subr.mxu0 0.0
  %301 = vmatpush1.msra.mxu0 0.0
  %302 = vmatprep.subr.mxu0 0.0
  %303 = vmatpush1.msra.mxu0 0.0
  %304 = vmatprep.subr.mxu0 0.0
  %305 = vmatpush1.msra.mxu0 0.0
  %306 = vmatprep.subr.mxu0 0.0
  %307 = vmatpush1.msra.mxu0 0.0
  %308 = vmatprep.subr.mxu0 0.0
  %309 = vmatpush1.msra.mxu0 0.0
  %310 = vmatprep.subr.mxu0 0.0
  %311 = vmatpush1.msra.mxu0 0.0
  %312 = vmatprep.subr.mxu0 0.0
  %313 = vmatpush1.msra.mxu0 0.0
  %314 = vmatprep.subr.mxu0 0.0
  %315 = vmatpush1.msra.mxu0 0.0
  %316 = vmatprep.subr.mxu0 0.0
  %317 = vmatpush1.msra.mxu0 0.0
  %318 = vmatprep.subr.mxu0 0.0
  %319 = vmatpush1.msra.mxu0 %v286
  %320 = vmatprep.subr.mxu0 0.0
  %321 = vmatpush2.msra.mxu0 0.0
  %322 = vmatprep.subr.mxu0 0.0
  %323 = vmatpush2.msra.mxu0 0.0
  %324 = vmatprep.subr.mxu0 0.0
  %325 = vmatpush2.msra.mxu0 0.0
  %326 = vmatprep.subr.mxu0 0.0
  %327 = vmatpush2.msra.mxu0 0.0
  %328 = vmatprep.subr.mxu0 0.0
  %329 = vmatpush2.msra.mxu0 0.0
  %330 = vmatprep.subr.mxu0 0.0
  %331 = vmatpush2.msra.mxu0 0.0
  %332 = vmatprep.subr.mxu0 0.0
  %333 = vmatpush2.msra.mxu0 0.0
  %334 = vmatprep.subr.mxu0 0.0
  %335 = vmatpush2.msra.mxu0 0.0
  %336 = vmatprep.subr.mxu0 0.0
  %337 = vmatpush2.msra.mxu0 0.0
  %338 = vmatprep.subr.mxu0 0.0
  %339 = vmatpush2.msra.mxu0 0.0
  %340 = vmatprep.subr.mxu0 0.0
  %341 = vmatpush2.msra.mxu0 0.0
  %342 = vmatprep.subr.mxu0 0.0
  %343 = vmatpush2.msra.mxu0 0.0
  %344 = vmatprep.subr.mxu0 0.0
  %345 = vmatpush2.msra.mxu0 0.0
  %346 = vmatprep.subr.mxu0 0.0
  %347 = vmatpush2.msra.mxu0 0.0
  %348 = vmatprep.subr.mxu0 0.0
  %349 = vmatpush2.msra.mxu0 0.0
  %350 = vmatprep.subr.mxu0 0.0
  %351 = vmatpush2.msra.mxu0 0.0
  %352 = vmatprep.mubr.f32.mxu0 0.0
  %353 = vmatmul.mubr.f32.gmra.mxu0 %v282
  %v354 = vpop.f32.mrf.mxu0
  %v355 = vadd.f32 0.0, %v354
  %v356 = vpop.f32.mrf.mxu0
  %357 = vdwg.mxu0
  %v359 = vrot.slane %v355, 4
  %v361 = vadd.f32 %v355, %v359
  %v362 = vxor.u32 %v361, 2147483648
  %v363 = vmul.f32 %v362, 1.442695
  %v364 = vpow.pop %v363
  %v365 = vadd.f32 %v364, 1.0
  %v366 = vrcp.pop %v365
  %v367 = vmul.f32 1.0, %v366
  %v368 = vadd.f32 %v21, %v23
  %v369 = vrot.slane %v368, 4
  %v370 = vadd.f32 %v368, %v369
  %v371 = vrot.slane %v370, 2
  %v372 = vadd.f32 %v370, %v371
  %v373 = vrot.slane %v372, 1
  %v374 = vadd.f32 %v372, %v373
  %v375 = vadd.f32 %v22, %v24
  %v376 = vrot.slane %v375, 4
  %v377 = vadd.f32 %v375, %v376
  %v378 = vrot.slane %v377, 2
  %v379 = vadd.f32 %v377, %v378
  %v380 = vrot.slane %v379, 1
  %v381 = vadd.f32 %v379, %v380
  %v382 = vadd.f32 %v25, %v27
  %v383 = vrot.slane %v382, 4
  %v384 = vadd.f32 %v382, %v383
  %v385 = vrot.slane %v384, 2
  %v386 = vadd.f32 %v384, %v385
  %v387 = vrot.slane %v386, 1
  %v388 = vadd.f32 %v386, %v387
  %v389 = vadd.f32 %v26, %v28
  %v390 = vrot.slane %v389, 4
  %v391 = vadd.f32 %v389, %v390
  %v392 = vrot.slane %v391, 2
  %v393 = vadd.f32 %v391, %v392
  %v394 = vrot.slane %v393, 1
  %v395 = vadd.f32 %v393, %v394
  %v396 = vadd.f32 %v29, %v31
  %v397 = vrot.slane %v396, 4
  %v398 = vadd.f32 %v396, %v397
  %v399 = vrot.slane %v398, 2
  %v400 = vadd.f32 %v398, %v399
  %v401 = vrot.slane %v400, 1
  %v402 = vadd.f32 %v400, %v401
  %v403 = vadd.f32 %v30, %v32
  %v404 = vrot.slane %v403, 4
  %v405 = vadd.f32 %v403, %v404
  %v406 = vrot.slane %v405, 2
  %v407 = vadd.f32 %v405, %v406
  %v408 = vrot.slane %v407, 1
  %v409 = vadd.f32 %v407, %v408
  %v410 = vadd.f32 %v33, %v35
  %v411 = vrot.slane %v410, 4
  %v412 = vadd.f32 %v410, %v411
  %v413 = vrot.slane %v412, 2
  %v414 = vadd.f32 %v412, %v413
  %v415 = vrot.slane %v414, 1
  %v416 = vadd.f32 %v414, %v415
  %v417 = vadd.f32 %v34, %v36
  %v418 = vrot.slane %v417, 4
  %v419 = vadd.f32 %v417, %v418
  %v420 = vrot.slane %v419, 2
  %v421 = vadd.f32 %v419, %v420
  %v422 = vrot.slane %v421, 1
  %v423 = vadd.f32 %v421, %v422
  %v424 = vrcp.pop 16.0
  %v425 = vmul.f32 %v374, %v424
  %v426 = vmul.f32 %v381, %v424
  %v427 = vmul.f32 %v388, %v424
  %v428 = vmul.f32 %v395, %v424
  %v429 = vmul.f32 %v402, %v424
  %v430 = vmul.f32 %v409, %v424
  %v431 = vmul.f32 %v416, %v424
  %v432 = vmul.f32 %v423, %v424
  %v433 = vmax.f32 %v21, %v23
  %v434 = vrot.slane %v433, 4
  %v435 = vmax.f32 %v433, %v434
  %v436 = vrot.slane %v435, 2
  %v437 = vmax.f32 %v435, %v436
  %v438 = vrot.slane %v437, 1
  %v439 = vmax.f32 %v437, %v438
  %v440 = vmax.f32 %v22, %v24
  %v441 = vrot.slane %v440, 4
  %v442 = vmax.f32 %v440, %v441
  %v443 = vrot.slane %v442, 2
  %v444 = vmax.f32 %v442, %v443
  %v445 = vrot.slane %v444, 1
  %v446 = vmax.f32 %v444, %v445
  %v447 = vmax.f32 %v25, %v27
  %v448 = vrot.slane %v447, 4
  %v449 = vmax.f32 %v447, %v448
  %v450 = vrot.slane %v449, 2
  %v451 = vmax.f32 %v449, %v450
  %v452 = vrot.slane %v451, 1
  %v453 = vmax.f32 %v451, %v452
  %v454 = vmax.f32 %v26, %v28
  %v455 = vrot.slane %v454, 4
  %v456 = vmax.f32 %v454, %v455
  %v457 = vrot.slane %v456, 2
  %v458 = vmax.f32 %v456, %v457
  %v459 = vrot.slane %v458, 1
  %v460 = vmax.f32 %v458, %v459
  %v461 = vmax.f32 %v29, %v31
  %v462 = vrot.slane %v461, 4
  %v463 = vmax.f32 %v461, %v462
  %v464 = vrot.slane %v463, 2
  %v465 = vmax.f32 %v463, %v464
  %v466 = vrot.slane %v465, 1
  %v467 = vmax.f32 %v465, %v466
  %v468 = vmax.f32 %v30, %v32
  %v469 = vrot.slane %v468, 4
  %v470 = vmax.f32 %v468, %v469
  %v471 = vrot.slane %v470, 2
  %v472 = vmax.f32 %v470, %v471
  %v473 = vrot.slane %v472, 1
  %v474 = vmax.f32 %v472, %v473
  %v475 = vmax.f32 %v33, %v35
  %v476 = vrot.slane %v475, 4
  %v477 = vmax.f32 %v475, %v476
  %v478 = vrot.slane %v477, 2
  %v479 = vmax.f32 %v477, %v478
  %v480 = vrot.slane %v479, 1
  %v481 = vmax.f32 %v479, %v480
  %v482 = vmax.f32 %v34, %v36
  %v483 = vrot.slane %v482, 4
  %v484 = vmax.f32 %v482, %v483
  %v485 = vrot.slane %v484, 2
  %v486 = vmax.f32 %v484, %v485
  %v487 = vrot.slane %v486, 1
  %v488 = vmax.f32 %v486, %v487
  %s489 = sld [smem:[#allocation2]]
  %v498 = vsel %vm142, %v427, %v425
  %v499 = vsel %vm144, %v429, %v498
  %v500 = vsel %vm146, %v431, %v499
  %v501 = vsel %vm142, %v428, %v426
  %v502 = vsel %vm144, %v430, %v501
  %v503 = vsel %vm146, %v432, %v502
  %506 = vrot.lane.b32.xlu0 %v500, 51
  %v507 = vpop.permute.xlu0 %506
  %508 = vrot.lane.b32.xlu0 %v503, 51
  %v509 = vpop.permute.xlu0 %508
  %vm510 = vcmp.lt.s32.totalorder %v103, 51
  %v511 = vsel %vm510, %v507, %v509
  %v512 = vsel %vm510, %v509, %v507
  %v521 = vsel %vm142, %v453, %v439
  %v522 = vsel %vm144, %v467, %v521
  %v523 = vsel %vm146, %v481, %v522
  %v524 = vsel %vm142, %v460, %v446
  %v525 = vsel %vm144, %v474, %v524
  %v526 = vsel %vm146, %v488, %v525
  %529 = vrot.lane.b32.xlu0 %v523, 51
  %v530 = vpop.permute.xlu0 %529
  %531 = vrot.lane.b32.xlu0 %v526, 51
  %v532 = vpop.permute.xlu0 %531
  %v533 = vsel %vm510, %v530, %v532
  %v534 = vsel %vm510, %v532, %v530
  %v535 = vld [vmem:[%s3] ss:$8 sm:$0x3]
  %s536 = scalar_lea.vmem %s3, 97
  %v537 = vld [vmem:[%s536] ss:$8 sm:$0x3]
  %v539 = vlaneseq
  %v540 = vshrl.u32 %v539, 7
  %v541 = vsub.s32 0, %v540
  %v542 = vrot.slane %v535, %v541
  %v543 = vlaneseq
  %v544 = vshrl.u32 %v543, 7
  %v545 = vsub.s32 1, %v544
  %v546 = vrot.slane %v535, %v545
  %v549 = vmul.f32 %v512, %v542
  %v550 = vmul.f32 %v511, %v546
  %v551 = vadd.f32 %v549, 0.0
  %v552 = vadd.f32 %v550, 0.0
  %v554 = vlaneseq
  %v555 = vshrl.u32 %v554, 7
  %v556 = vsub.s32 0, %v555
  %v557 = vrot.slane %v537, %v556
  %v558 = vlaneseq
  %v559 = vshrl.u32 %v558, 7
  %v560 = vsub.s32 1, %v559
  %v561 = vrot.slane %v537, %v560
  %v564 = vmul.f32 %v534, %v557
  %v565 = vmul.f32 %v533, %v561
  %v566 = vadd.f32 %v551, %v564
  %v567 = vadd.f32 %v552, %v565
  %568 = vrot.lane.b32.xlu0 %v500, 50
  %v569 = vpop.permute.xlu0 %568
  %570 = vrot.lane.b32.xlu0 %v503, 50
  %v571 = vpop.permute.xlu0 %570
  %vm572 = vcmp.lt.s32.totalorder %v103, 50
  %v573 = vsel %vm572, %v569, %v571
  %v574 = vsel %vm572, %v571, %v569
  %575 = vrot.lane.b32.xlu0 %v523, 50
  %v576 = vpop.permute.xlu0 %575
  %577 = vrot.lane.b32.xlu0 %v526, 50
  %v578 = vpop.permute.xlu0 %577
  %v579 = vsel %vm572, %v576, %v578
  %v580 = vsel %vm572, %v578, %v576
  %s581 = scalar_lea.vmem %s3, 1
  %v582 = vld [vmem:[%s581] ss:$8 sm:$0x3]
  %s583 = scalar_lea.vmem %s3, 98
  %v584 = vld [vmem:[%s583] ss:$8 sm:$0x3]
  %v586 = vlaneseq
  %v587 = vshrl.u32 %v586, 7
  %v588 = vsub.s32 0, %v587
  %v589 = vrot.slane %v582, %v588
  %v590 = vlaneseq
  %v591 = vshrl.u32 %v590, 7
  %v592 = vsub.s32 1, %v591
  %v593 = vrot.slane %v582, %v592
  %v596 = vmul.f32 %v574, %v589
  %v597 = vmul.f32 %v573, %v593
  %v598 = vadd.f32 %v596, 0.0
  %v599 = vadd.f32 %v597, 0.0
  %v601 = vlaneseq
  %v602 = vshrl.u32 %v601, 7
  %v603 = vsub.s32 0, %v602
  %v604 = vrot.slane %v584, %v603
  %v605 = vlaneseq
  %v606 = vshrl.u32 %v605, 7
  %v607 = vsub.s32 1, %v606
  %v608 = vrot.slane %v584, %v607
  %v611 = vmul.f32 %v580, %v604
  %v612 = vmul.f32 %v579, %v608
  %v613 = vadd.f32 %v598, %v611
  %v614 = vadd.f32 %v599, %v612
  %615 = vrot.lane.b32.xlu0 %v500, 49
  %v616 = vpop.permute.xlu0 %615
  %617 = vrot.lane.b32.xlu0 %v503, 49
  %v618 = vpop.permute.xlu0 %617
  %vm619 = vcmp.lt.s32.totalorder %v103, 49
  %v620 = vsel %vm619, %v616, %v618
  %v621 = vsel %vm619, %v618, %v616
  %622 = vrot.lane.b32.xlu0 %v523, 49
  %v623 = vpop.permute.xlu0 %622
  %624 = vrot.lane.b32.xlu0 %v526, 49
  %v625 = vpop.permute.xlu0 %624
  %v626 = vsel %vm619, %v623, %v625
  %v627 = vsel %vm619, %v625, %v623
  %s628 = scalar_lea.vmem %s3, 2
  %v629 = vld [vmem:[%s628] ss:$8 sm:$0x3]
  %s630 = scalar_lea.vmem %s3, 99
  %v631 = vld [vmem:[%s630] ss:$8 sm:$0x3]
  %v633 = vlaneseq
  %v634 = vshrl.u32 %v633, 7
  %v635 = vsub.s32 0, %v634
  %v636 = vrot.slane %v629, %v635
  %v637 = vlaneseq
  %v638 = vshrl.u32 %v637, 7
  %v639 = vsub.s32 1, %v638
  %v640 = vrot.slane %v629, %v639
  %v643 = vmul.f32 %v621, %v636
  %v644 = vmul.f32 %v620, %v640
  %v645 = vadd.f32 %v643, 0.0
  %v646 = vadd.f32 %v644, 0.0
  %v648 = vlaneseq
  %v649 = vshrl.u32 %v648, 7
  %v650 = vsub.s32 0, %v649
  %v651 = vrot.slane %v631, %v650
  %v652 = vlaneseq
  %v653 = vshrl.u32 %v652, 7
  %v654 = vsub.s32 1, %v653
  %v655 = vrot.slane %v631, %v654
  %v658 = vmul.f32 %v627, %v651
  %v659 = vmul.f32 %v626, %v655
  %v660 = vadd.f32 %v645, %v658
  %v661 = vadd.f32 %v646, %v659
  %662 = vrot.lane.b32.xlu0 %v500, 48
  %v663 = vpop.permute.xlu0 %662
  %664 = vrot.lane.b32.xlu0 %v503, 48
  %v665 = vpop.permute.xlu0 %664
  %vm666 = vcmp.lt.s32.totalorder %v103, 48
  %v667 = vsel %vm666, %v663, %v665
  %v668 = vsel %vm666, %v665, %v663
  %669 = vrot.lane.b32.xlu0 %v523, 48
  %v670 = vpop.permute.xlu0 %669
  %671 = vrot.lane.b32.xlu0 %v526, 48
  %v672 = vpop.permute.xlu0 %671
  %v673 = vsel %vm666, %v670, %v672
  %v674 = vsel %vm666, %v672, %v670
  %s675 = scalar_lea.vmem %s3, 3
  %v676 = vld [vmem:[%s675] ss:$8 sm:$0x3]
  %s677 = scalar_lea.vmem %s3, 100
  %v678 = vld [vmem:[%s677] ss:$8 sm:$0x3]
  %v680 = vlaneseq
  %v681 = vshrl.u32 %v680, 7
  %v682 = vsub.s32 0, %v681
  %v683 = vrot.slane %v676, %v682
  %v684 = vlaneseq
  %v685 = vshrl.u32 %v684, 7
  %v686 = vsub.s32 1, %v685
  %v687 = vrot.slane %v676, %v686
  %v690 = vmul.f32 %v668, %v683
  %v691 = vmul.f32 %v667, %v687
  %v692 = vadd.f32 %v690, 0.0
  %v693 = vadd.f32 %v691, 0.0
  %v695 = vlaneseq
  %v696 = vshrl.u32 %v695, 7
  %v697 = vsub.s32 0, %v696
  %v698 = vrot.slane %v678, %v697
  %v699 = vlaneseq
  %v700 = vshrl.u32 %v699, 7
  %v701 = vsub.s32 1, %v700
  %v702 = vrot.slane %v678, %v701
  %v705 = vmul.f32 %v674, %v698
  %v706 = vmul.f32 %v673, %v702
  %v707 = vadd.f32 %v692, %v705
  %v708 = vadd.f32 %v693, %v706
  %709 = vrot.lane.b32.xlu0 %v500, 47
  %v710 = vpop.permute.xlu0 %709
  %711 = vrot.lane.b32.xlu0 %v503, 47
  %v712 = vpop.permute.xlu0 %711
  %vm713 = vcmp.lt.s32.totalorder %v103, 47
  %v714 = vsel %vm713, %v710, %v712
  %v715 = vsel %vm713, %v712, %v710
  %716 = vrot.lane.b32.xlu0 %v523, 47
  %v717 = vpop.permute.xlu0 %716
  %718 = vrot.lane.b32.xlu0 %v526, 47
  %v719 = vpop.permute.xlu0 %718
  %v720 = vsel %vm713, %v717, %v719
  %v721 = vsel %vm713, %v719, %v717
  %s722 = scalar_lea.vmem %s3, 4
  %v723 = vld [vmem:[%s722] ss:$8 sm:$0x3]
  %s724 = scalar_lea.vmem %s3, 101
  %v725 = vld [vmem:[%s724] ss:$8 sm:$0x3]
  %v727 = vlaneseq
  %v728 = vshrl.u32 %v727, 7
  %v729 = vsub.s32 0, %v728
  %v730 = vrot.slane %v723, %v729
  %v731 = vlaneseq
  %v732 = vshrl.u32 %v731, 7
  %v733 = vsub.s32 1, %v732
  %v734 = vrot.slane %v723, %v733
  %v737 = vmul.f32 %v715, %v730
  %v738 = vmul.f32 %v714, %v734
  %v739 = vadd.f32 %v566, %v737
  %v740 = vadd.f32 %v567, %v738
  %v742 = vlaneseq
  %v743 = vshrl.u32 %v742, 7
  %v744 = vsub.s32 0, %v743
  %v745 = vrot.slane %v725, %v744
  %v746 = vlaneseq
  %v747 = vshrl.u32 %v746, 7
  %v748 = vsub.s32 1, %v747
  %v749 = vrot.slane %v725, %v748
  %v752 = vmul.f32 %v721, %v745
  %v753 = vmul.f32 %v720, %v749
  %v754 = vadd.f32 %v739, %v752
  %v755 = vadd.f32 %v740, %v753
  %756 = vrot.lane.b32.xlu0 %v500, 46
  %v757 = vpop.permute.xlu0 %756
  %758 = vrot.lane.b32.xlu0 %v503, 46
  %v759 = vpop.permute.xlu0 %758
  %vm760 = vcmp.lt.s32.totalorder %v103, 46
  %v761 = vsel %vm760, %v757, %v759
  %v762 = vsel %vm760, %v759, %v757
  %763 = vrot.lane.b32.xlu0 %v523, 46
  %v764 = vpop.permute.xlu0 %763
  %765 = vrot.lane.b32.xlu0 %v526, 46
  %v766 = vpop.permute.xlu0 %765
  %v767 = vsel %vm760, %v764, %v766
  %v768 = vsel %vm760, %v766, %v764
  %s769 = scalar_lea.vmem %s3, 5
  %v770 = vld [vmem:[%s769] ss:$8 sm:$0x3]
  %s771 = scalar_lea.vmem %s3, 102
  %v772 = vld [vmem:[%s771] ss:$8 sm:$0x3]
  %v774 = vlaneseq
  %v775 = vshrl.u32 %v774, 7
  %v776 = vsub.s32 0, %v775
  %v777 = vrot.slane %v770, %v776
  %v778 = vlaneseq
  %v779 = vshrl.u32 %v778, 7
  %v780 = vsub.s32 1, %v779
  %v781 = vrot.slane %v770, %v780
  %v784 = vmul.f32 %v762, %v777
  %v785 = vmul.f32 %v761, %v781
  %v786 = vadd.f32 %v613, %v784
  %v787 = vadd.f32 %v614, %v785
  %v789 = vlaneseq
  %v790 = vshrl.u32 %v789, 7
  %v791 = vsub.s32 0, %v790
  %v792 = vrot.slane %v772, %v791
  %v793 = vlaneseq
  %v794 = vshrl.u32 %v793, 7
  %v795 = vsub.s32 1, %v794
  %v796 = vrot.slane %v772, %v795
  %v799 = vmul.f32 %v768, %v792
  %v800 = vmul.f32 %v767, %v796
  %v801 = vadd.f32 %v786, %v799
  %v802 = vadd.f32 %v787, %v800
  %803 = vrot.lane.b32.xlu0 %v500, 45
  %v804 = vpop.permute.xlu0 %803
  %805 = vrot.lane.b32.xlu0 %v503, 45
  %v806 = vpop.permute.xlu0 %805
  %vm807 = vcmp.lt.s32.totalorder %v103, 45
  %v808 = vsel %vm807, %v804, %v806
  %v809 = vsel %vm807, %v806, %v804
  %810 = vrot.lane.b32.xlu0 %v523, 45
  %v811 = vpop.permute.xlu0 %810
  %812 = vrot.lane.b32.xlu0 %v526, 45
  %v813 = vpop.permute.xlu0 %812
  %v814 = vsel %vm807, %v811, %v813
  %v815 = vsel %vm807, %v813, %v811
  %s816 = scalar_lea.vmem %s3, 6
  %v817 = vld [vmem:[%s816] ss:$8 sm:$0x3]
  %s818 = scalar_lea.vmem %s3, 103
  %v819 = vld [vmem:[%s818] ss:$8 sm:$0x3]
  %v821 = vlaneseq
  %v822 = vshrl.u32 %v821, 7
  %v823 = vsub.s32 0, %v822
  %v824 = vrot.slane %v817, %v823
  %v825 = vlaneseq
  %v826 = vshrl.u32 %v825, 7
  %v827 = vsub.s32 1, %v826
  %v828 = vrot.slane %v817, %v827
  %v831 = vmul.f32 %v809, %v824
  %v832 = vmul.f32 %v808, %v828
  %v833 = vadd.f32 %v660, %v831
  %v834 = vadd.f32 %v661, %v832
  %v836 = vlaneseq
  %v837 = vshrl.u32 %v836, 7
  %v838 = vsub.s32 0, %v837
  %v839 = vrot.slane %v819, %v838
  %v840 = vlaneseq
  %v841 = vshrl.u32 %v840, 7
  %v842 = vsub.s32 1, %v841
  %v843 = vrot.slane %v819, %v842
  %v846 = vmul.f32 %v815, %v839
  %v847 = vmul.f32 %v814, %v843
  %v848 = vadd.f32 %v833, %v846
  %v849 = vadd.f32 %v834, %v847
  %850 = vrot.lane.b32.xlu0 %v500, 35
  %v851 = vpop.permute.xlu0 %850
  %852 = vrot.lane.b32.xlu0 %v503, 35
  %v853 = vpop.permute.xlu0 %852
  %vm854 = vcmp.lt.s32.totalorder %v103, 35
  %v855 = vsel %vm854, %v851, %v853
  %v856 = vsel %vm854, %v853, %v851
  %857 = vrot.lane.b32.xlu0 %v523, 35
  %v858 = vpop.permute.xlu0 %857
  %859 = vrot.lane.b32.xlu0 %v526, 35
  %v860 = vpop.permute.xlu0 %859
  %v861 = vsel %vm854, %v858, %v860
  %v862 = vsel %vm854, %v860, %v858
  %s863 = scalar_lea.vmem %s3, 7
  %v864 = vld [vmem:[%s863] ss:$8 sm:$0x3]
  %s865 = scalar_lea.vmem %s3, 112
  %v866 = vld [vmem:[%s865] ss:$8 sm:$0x3]
  %v868 = vlaneseq
  %v869 = vshrl.u32 %v868, 7
  %v870 = vsub.s32 0, %v869
  %v871 = vrot.slane %v864, %v870
  %v872 = vlaneseq
  %v873 = vshrl.u32 %v872, 7
  %v874 = vsub.s32 1, %v873
  %v875 = vrot.slane %v864, %v874
  %v878 = vmul.f32 %v856, %v871
  %v879 = vmul.f32 %v855, %v875
  %v880 = vadd.f32 %v707, %v878
  %v881 = vadd.f32 %v708, %v879
  %v883 = vlaneseq
  %v884 = vshrl.u32 %v883, 7
  %v885 = vsub.s32 0, %v884
  %v886 = vrot.slane %v866, %v885
  %v887 = vlaneseq
  %v888 = vshrl.u32 %v887, 7
  %v889 = vsub.s32 1, %v888
  %v890 = vrot.slane %v866, %v889
  %v893 = vmul.f32 %v862, %v886
  %v894 = vmul.f32 %v861, %v890
  %v895 = vadd.f32 %v880, %v893
  %v896 = vadd.f32 %v881, %v894
  %897 = vrot.lane.b32.xlu0 %v500, 34
  %v898 = vpop.permute.xlu0 %897
  %899 = vrot.lane.b32.xlu0 %v503, 34
  %v900 = vpop.permute.xlu0 %899
  %vm901 = vcmp.lt.s32.totalorder %v103, 34
  %v902 = vsel %vm901, %v898, %v900
  %v903 = vsel %vm901, %v900, %v898
  %904 = vrot.lane.b32.xlu0 %v523, 34
  %v905 = vpop.permute.xlu0 %904
  %906 = vrot.lane.b32.xlu0 %v526, 34
  %v907 = vpop.permute.xlu0 %906
  %v908 = vsel %vm901, %v905, %v907
  %v909 = vsel %vm901, %v907, %v905
  %s910 = scalar_lea.vmem %s3, 16
  %v911 = vld [vmem:[%s910] ss:$8 sm:$0x3]
  %s912 = scalar_lea.vmem %s3, 113
  %v913 = vld [vmem:[%s912] ss:$8 sm:$0x3]
  %v915 = vlaneseq
  %v916 = vshrl.u32 %v915, 7
  %v917 = vsub.s32 0, %v916
  %v918 = vrot.slane %v911, %v917
  %v919 = vlaneseq
  %v920 = vshrl.u32 %v919, 7
  %v921 = vsub.s32 1, %v920
  %v922 = vrot.slane %v911, %v921
  %v925 = vmul.f32 %v903, %v918
  %v926 = vmul.f32 %v902, %v922
  %v927 = vadd.f32 %v754, %v925
  %v928 = vadd.f32 %v755, %v926
  %v930 = vlaneseq
  %v931 = vshrl.u32 %v930, 7
  %v932 = vsub.s32 0, %v931
  %v933 = vrot.slane %v913, %v932
  %v934 = vlaneseq
  %v935 = vshrl.u32 %v934, 7
  %v936 = vsub.s32 1, %v935
  %v937 = vrot.slane %v913, %v936
  %v940 = vmul.f32 %v909, %v933
  %v941 = vmul.f32 %v908, %v937
  %v942 = vadd.f32 %v927, %v940
  %v943 = vadd.f32 %v928, %v941
  %944 = vrot.lane.b32.xlu0 %v500, 33
  %v945 = vpop.permute.xlu0 %944
  %946 = vrot.lane.b32.xlu0 %v503, 33
  %v947 = vpop.permute.xlu0 %946
  %vm948 = vcmp.lt.s32.totalorder %v103, 33
  %v949 = vsel %vm948, %v945, %v947
  %v950 = vsel %vm948, %v947, %v945
  %951 = vrot.lane.b32.xlu0 %v523, 33
  %v952 = vpop.permute.xlu0 %951
  %953 = vrot.lane.b32.xlu0 %v526, 33
  %v954 = vpop.permute.xlu0 %953
  %v955 = vsel %vm948, %v952, %v954
  %v956 = vsel %vm948, %v954, %v952
  %s957 = scalar_lea.vmem %s3, 17
  %v958 = vld [vmem:[%s957] ss:$8 sm:$0x3]
  %s959 = scalar_lea.vmem %s3, 114
  %v960 = vld [vmem:[%s959] ss:$8 sm:$0x3]
  %v962 = vlaneseq
  %v963 = vshrl.u32 %v962, 7
  %v964 = vsub.s32 0, %v963
  %v965 = vrot.slane %v958, %v964
  %v966 = vlaneseq
  %v967 = vshrl.u32 %v966, 7
  %v968 = vsub.s32 1, %v967
  %v969 = vrot.slane %v958, %v968
  %v972 = vmul.f32 %v950, %v965
  %v973 = vmul.f32 %v949, %v969
  %v974 = vadd.f32 %v801, %v972
  %v975 = vadd.f32 %v802, %v973
  %v977 = vlaneseq
  %v978 = vshrl.u32 %v977, 7
  %v979 = vsub.s32 0, %v978
  %v980 = vrot.slane %v960, %v979
  %v981 = vlaneseq
  %v982 = vshrl.u32 %v981, 7
  %v983 = vsub.s32 1, %v982
  %v984 = vrot.slane %v960, %v983
  %v987 = vmul.f32 %v956, %v980
  %v988 = vmul.f32 %v955, %v984
  %v989 = vadd.f32 %v974, %v987
  %v990 = vadd.f32 %v975, %v988
  %991 = vrot.lane.b32.xlu0 %v500, 32
  %v992 = vpop.permute.xlu0 %991
  %993 = vrot.lane.b32.xlu0 %v503, 32
  %v994 = vpop.permute.xlu0 %993
  %vm995 = vcmp.lt.s32.totalorder %v103, 32
  %v996 = vsel %vm995, %v992, %v994
  %v997 = vsel %vm995, %v994, %v992
  %998 = vrot.lane.b32.xlu0 %v523, 32
  %v999 = vpop.permute.xlu0 %998
  %1000 = vrot.lane.b32.xlu0 %v526, 32
  %v1001 = vpop.permute.xlu0 %1000
  %v1002 = vsel %vm995, %v999, %v1001
  %v1003 = vsel %vm995, %v1001, %v999
  %s1004 = scalar_lea.vmem %s3, 18
  %v1005 = vld [vmem:[%s1004] ss:$8 sm:$0x3]
  %s1006 = scalar_lea.vmem %s3, 115
  %v1007 = vld [vmem:[%s1006] ss:$8 sm:$0x3]
  %v1009 = vlaneseq
  %v1010 = vshrl.u32 %v1009, 7
  %v1011 = vsub.s32 0, %v1010
  %v1012 = vrot.slane %v1005, %v1011
  %v1013 = vlaneseq
  %v1014 = vshrl.u32 %v1013, 7
  %v1015 = vsub.s32 1, %v1014
  %v1016 = vrot.slane %v1005, %v1015
  %v1019 = vmul.f32 %v997, %v1012
  %v1020 = vmul.f32 %v996, %v1016
  %v1021 = vadd.f32 %v848, %v1019
  %v1022 = vadd.f32 %v849, %v1020
  %v1024 = vlaneseq
  %v1025 = vshrl.u32 %v1024, 7
  %v1026 = vsub.s32 0, %v1025
  %v1027 = vrot.slane %v1007, %v1026
  %v1028 = vlaneseq
  %v1029 = vshrl.u32 %v1028, 7
  %v1030 = vsub.s32 1, %v1029
  %v1031 = vrot.slane %v1007, %v1030
  %v1034 = vmul.f32 %v1003, %v1027
  %v1035 = vmul.f32 %v1002, %v1031
  %v1036 = vadd.f32 %v1021, %v1034
  %v1037 = vadd.f32 %v1022, %v1035
  %1038 = vrot.lane.b32.xlu0 %v500, 31
  %v1039 = vpop.permute.xlu0 %1038
  %1040 = vrot.lane.b32.xlu0 %v503, 31
  %v1041 = vpop.permute.xlu0 %1040
  %vm1042 = vcmp.lt.s32.totalorder %v103, 31
  %v1043 = vsel %vm1042, %v1039, %v1041
  %v1044 = vsel %vm1042, %v1041, %v1039
  %1045 = vrot.lane.b32.xlu0 %v523, 31
  %v1046 = vpop.permute.xlu0 %1045
  %1047 = vrot.lane.b32.xlu0 %v526, 31
  %v1048 = vpop.permute.xlu0 %1047
  %v1049 = vsel %vm1042, %v1046, %v1048
  %v1050 = vsel %vm1042, %v1048, %v1046
  %s1051 = scalar_lea.vmem %s3, 19
  %v1052 = vld [vmem:[%s1051] ss:$8 sm:$0x3]
  %s1053 = scalar_lea.vmem %s3, 116
  %v1054 = vld [vmem:[%s1053] ss:$8 sm:$0x3]
  %v1056 = vlaneseq
  %v1057 = vshrl.u32 %v1056, 7
  %v1058 = vsub.s32 0, %v1057
  %v1059 = vrot.slane %v1052, %v1058
  %v1060 = vlaneseq
  %v1061 = vshrl.u32 %v1060, 7
  %v1062 = vsub.s32 1, %v1061
  %v1063 = vrot.slane %v1052, %v1062
  %v1066 = vmul.f32 %v1044, %v1059
  %v1067 = vmul.f32 %v1043, %v1063
  %v1068 = vadd.f32 %v895, %v1066
  %v1069 = vadd.f32 %v896, %v1067
  %v1071 = vlaneseq
  %v1072 = vshrl.u32 %v1071, 7
  %v1073 = vsub.s32 0, %v1072
  %v1074 = vrot.slane %v1054, %v1073
  %v1075 = vlaneseq
  %v1076 = vshrl.u32 %v1075, 7
  %v1077 = vsub.s32 1, %v1076
  %v1078 = vrot.slane %v1054, %v1077
  %v1081 = vmul.f32 %v1050, %v1074
  %v1082 = vmul.f32 %v1049, %v1078
  %v1083 = vadd.f32 %v1068, %v1081
  %v1084 = vadd.f32 %v1069, %v1082
  %1085 = vrot.lane.b32.xlu0 %v500, 30
  %v1086 = vpop.permute.xlu0 %1085
  %1087 = vrot.lane.b32.xlu0 %v503, 30
  %v1088 = vpop.permute.xlu0 %1087
  %vm1089 = vcmp.lt.s32.totalorder %v103, 30
  %v1090 = vsel %vm1089, %v1086, %v1088
  %v1091 = vsel %vm1089, %v1088, %v1086
  %1092 = vrot.lane.b32.xlu0 %v523, 30
  %v1093 = vpop.permute.xlu0 %1092
  %1094 = vrot.lane.b32.xlu0 %v526, 30
  %v1095 = vpop.permute.xlu0 %1094
  %v1096 = vsel %vm1089, %v1093, %v1095
  %v1097 = vsel %vm1089, %v1095, %v1093
  %s1098 = scalar_lea.vmem %s3, 20
  %v1099 = vld [vmem:[%s1098] ss:$8 sm:$0x3]
  %s1100 = scalar_lea.vmem %s3, 117
  %v1101 = vld [vmem:[%s1100] ss:$8 sm:$0x3]
  %v1103 = vlaneseq
  %v1104 = vshrl.u32 %v1103, 7
  %v1105 = vsub.s32 0, %v1104
  %v1106 = vrot.slane %v1099, %v1105
  %v1107 = vlaneseq
  %v1108 = vshrl.u32 %v1107, 7
  %v1109 = vsub.s32 1, %v1108
  %v1110 = vrot.slane %v1099, %v1109
  %v1113 = vmul.f32 %v1091, %v1106
  %v1114 = vmul.f32 %v1090, %v1110
  %v1115 = vadd.f32 %v942, %v1113
  %v1116 = vadd.f32 %v943, %v1114
  %v1118 = vlaneseq
  %v1119 = vshrl.u32 %v1118, 7
  %v1120 = vsub.s32 0, %v1119
  %v1121 = vrot.slane %v1101, %v1120
  %v1122 = vlaneseq
  %v1123 = vshrl.u32 %v1122, 7
  %v1124 = vsub.s32 1, %v1123
  %v1125 = vrot.slane %v1101, %v1124
  %v1128 = vmul.f32 %v1097, %v1121
  %v1129 = vmul.f32 %v1096, %v1125
  %v1130 = vadd.f32 %v1115, %v1128
  %v1131 = vadd.f32 %v1116, %v1129
  %1132 = vrot.lane.b32.xlu0 %v500, 29
  %v1133 = vpop.permute.xlu0 %1132
  %1134 = vrot.lane.b32.xlu0 %v503, 29
  %v1135 = vpop.permute.xlu0 %1134
  %vm1136 = vcmp.lt.s32.totalorder %v103, 29
  %v1137 = vsel %vm1136, %v1133, %v1135
  %v1138 = vsel %vm1136, %v1135, %v1133
  %1139 = vrot.lane.b32.xlu0 %v523, 29
  %v1140 = vpop.permute.xlu0 %1139
  %1141 = vrot.lane.b32.xlu0 %v526, 29
  %v1142 = vpop.permute.xlu0 %1141
  %v1143 = vsel %vm1136, %v1140, %v1142
  %v1144 = vsel %vm1136, %v1142, %v1140
  %s1145 = scalar_lea.vmem %s3, 21
  %v1146 = vld [vmem:[%s1145] ss:$8 sm:$0x3]
  %s1147 = scalar_lea.vmem %s3, 118
  %v1148 = vld [vmem:[%s1147] ss:$8 sm:$0x3]
  %v1150 = vlaneseq
  %v1151 = vshrl.u32 %v1150, 7
  %v1152 = vsub.s32 0, %v1151
  %v1153 = vrot.slane %v1146, %v1152
  %v1154 = vlaneseq
  %v1155 = vshrl.u32 %v1154, 7
  %v1156 = vsub.s32 1, %v1155
  %v1157 = vrot.slane %v1146, %v1156
  %v1160 = vmul.f32 %v1138, %v1153
  %v1161 = vmul.f32 %v1137, %v1157
  %v1162 = vadd.f32 %v989, %v1160
  %v1163 = vadd.f32 %v990, %v1161
  %v1165 = vlaneseq
  %v1166 = vshrl.u32 %v1165, 7
  %v1167 = vsub.s32 0, %v1166
  %v1168 = vrot.slane %v1148, %v1167
  %v1169 = vlaneseq
  %v1170 = vshrl.u32 %v1169, 7
  %v1171 = vsub.s32 1, %v1170
  %v1172 = vrot.slane %v1148, %v1171
  %v1175 = vmul.f32 %v1144, %v1168
  %v1176 = vmul.f32 %v1143, %v1172
  %v1177 = vadd.f32 %v1162, %v1175
  %v1178 = vadd.f32 %v1163, %v1176
  %1179 = vrot.lane.b32.xlu0 %v500, 19
  %v1180 = vpop.permute.xlu0 %1179
  %1181 = vrot.lane.b32.xlu0 %v503, 19
  %v1182 = vpop.permute.xlu0 %1181
  %vm1183 = vcmp.lt.s32.totalorder %v103, 19
  %v1184 = vsel %vm1183, %v1180, %v1182
  %v1185 = vsel %vm1183, %v1182, %v1180
  %1186 = vrot.lane.b32.xlu0 %v523, 19
  %v1187 = vpop.permute.xlu0 %1186
  %1188 = vrot.lane.b32.xlu0 %v526, 19
  %v1189 = vpop.permute.xlu0 %1188
  %v1190 = vsel %vm1183, %v1187, %v1189
  %v1191 = vsel %vm1183, %v1189, %v1187
  %s1192 = scalar_lea.vmem %s3, 22
  %v1193 = vld [vmem:[%s1192] ss:$8 sm:$0x3]
  %s1194 = scalar_lea.vmem %s3, 119
  %v1195 = vld [vmem:[%s1194] ss:$8 sm:$0x3]
  %v1197 = vlaneseq
  %v1198 = vshrl.u32 %v1197, 7
  %v1199 = vsub.s32 0, %v1198
  %v1200 = vrot.slane %v1193, %v1199
  %v1201 = vlaneseq
  %v1202 = vshrl.u32 %v1201, 7
  %v1203 = vsub.s32 1, %v1202
  %v1204 = vrot.slane %v1193, %v1203
  %v1207 = vmul.f32 %v1185, %v1200
  %v1208 = vmul.f32 %v1184, %v1204
  %v1209 = vadd.f32 %v1036, %v1207
  %v1210 = vadd.f32 %v1037, %v1208
  %v1212 = vlaneseq
  %v1213 = vshrl.u32 %v1212, 7
  %v1214 = vsub.s32 0, %v1213
  %v1215 = vrot.slane %v1195, %v1214
  %v1216 = vlaneseq
  %v1217 = vshrl.u32 %v1216, 7
  %v1218 = vsub.s32 1, %v1217
  %v1219 = vrot.slane %v1195, %v1218
  %v1222 = vmul.f32 %v1191, %v1215
  %v1223 = vmul.f32 %v1190, %v1219
  %v1224 = vadd.f32 %v1209, %v1222
  %v1225 = vadd.f32 %v1210, %v1223
  %1226 = vrot.lane.b32.xlu0 %v500, 18
  %v1227 = vpop.permute.xlu0 %1226
  %1228 = vrot.lane.b32.xlu0 %v503, 18
  %v1229 = vpop.permute.xlu0 %1228
  %vm1230 = vcmp.lt.s32.totalorder %v103, 18
  %v1231 = vsel %vm1230, %v1227, %v1229
  %v1232 = vsel %vm1230, %v1229, %v1227
  %1233 = vrot.lane.b32.xlu0 %v523, 18
  %v1234 = vpop.permute.xlu0 %1233
  %1235 = vrot.lane.b32.xlu0 %v526, 18
  %v1236 = vpop.permute.xlu0 %1235
  %v1237 = vsel %vm1230, %v1234, %v1236
  %v1238 = vsel %vm1230, %v1236, %v1234
  %s1239 = scalar_lea.vmem %s3, 23
  %v1240 = vld [vmem:[%s1239] ss:$8 sm:$0x3]
  %s1241 = scalar_lea.vmem %s3, 128
  %v1242 = vld [vmem:[%s1241] ss:$8 sm:$0x3]
  %v1244 = vlaneseq
  %v1245 = vshrl.u32 %v1244, 7
  %v1246 = vsub.s32 0, %v1245
  %v1247 = vrot.slane %v1240, %v1246
  %v1248 = vlaneseq
  %v1249 = vshrl.u32 %v1248, 7
  %v1250 = vsub.s32 1, %v1249
  %v1251 = vrot.slane %v1240, %v1250
  %v1254 = vmul.f32 %v1232, %v1247
  %v1255 = vmul.f32 %v1231, %v1251
  %v1256 = vadd.f32 %v1083, %v1254
  %v1257 = vadd.f32 %v1084, %v1255
  %v1259 = vlaneseq
  %v1260 = vshrl.u32 %v1259, 7
  %v1261 = vsub.s32 0, %v1260
  %v1262 = vrot.slane %v1242, %v1261
  %v1263 = vlaneseq
  %v1264 = vshrl.u32 %v1263, 7
  %v1265 = vsub.s32 1, %v1264
  %v1266 = vrot.slane %v1242, %v1265
  %v1269 = vmul.f32 %v1238, %v1262
  %v1270 = vmul.f32 %v1237, %v1266
  %v1271 = vadd.f32 %v1256, %v1269
  %v1272 = vadd.f32 %v1257, %v1270
  %1273 = vrot.lane.b32.xlu0 %v500, 17
  %v1274 = vpop.permute.xlu0 %1273
  %1275 = vrot.lane.b32.xlu0 %v503, 17
  %v1276 = vpop.permute.xlu0 %1275
  %vm1277 = vcmp.lt.s32.totalorder %v103, 17
  %v1278 = vsel %vm1277, %v1274, %v1276
  %v1279 = vsel %vm1277, %v1276, %v1274
  %1280 = vrot.lane.b32.xlu0 %v523, 17
  %v1281 = vpop.permute.xlu0 %1280
  %1282 = vrot.lane.b32.xlu0 %v526, 17
  %v1283 = vpop.permute.xlu0 %1282
  %v1284 = vsel %vm1277, %v1281, %v1283
  %v1285 = vsel %vm1277, %v1283, %v1281
  %s1286 = scalar_lea.vmem %s3, 32
  %v1287 = vld [vmem:[%s1286] ss:$8 sm:$0x3]
  %s1288 = scalar_lea.vmem %s3, 129
  %v1289 = vld [vmem:[%s1288] ss:$8 sm:$0x3]
  %v1291 = vlaneseq
  %v1292 = vshrl.u32 %v1291, 7
  %v1293 = vsub.s32 0, %v1292
  %v1294 = vrot.slane %v1287, %v1293
  %v1295 = vlaneseq
  %v1296 = vshrl.u32 %v1295, 7
  %v1297 = vsub.s32 1, %v1296
  %v1298 = vrot.slane %v1287, %v1297
  %v1301 = vmul.f32 %v1279, %v1294
  %v1302 = vmul.f32 %v1278, %v1298
  %v1303 = vadd.f32 %v1130, %v1301
  %v1304 = vadd.f32 %v1131, %v1302
  %v1306 = vlaneseq
  %v1307 = vshrl.u32 %v1306, 7
  %v1308 = vsub.s32 0, %v1307
  %v1309 = vrot.slane %v1289, %v1308
  %v1310 = vlaneseq
  %v1311 = vshrl.u32 %v1310, 7
  %v1312 = vsub.s32 1, %v1311
  %v1313 = vrot.slane %v1289, %v1312
  %v1316 = vmul.f32 %v1285, %v1309
  %v1317 = vmul.f32 %v1284, %v1313
  %v1318 = vadd.f32 %v1303, %v1316
  %v1319 = vadd.f32 %v1304, %v1317
  %1320 = vrot.lane.b32.xlu0 %v500, 16
  %v1321 = vpop.permute.xlu0 %1320
  %1322 = vrot.lane.b32.xlu0 %v503, 16
  %v1323 = vpop.permute.xlu0 %1322
  %vm1324 = vcmp.lt.s32.totalorder %v103, 16
  %v1325 = vsel %vm1324, %v1321, %v1323
  %v1326 = vsel %vm1324, %v1323, %v1321
  %1327 = vrot.lane.b32.xlu0 %v523, 16
  %v1328 = vpop.permute.xlu0 %1327
  %1329 = vrot.lane.b32.xlu0 %v526, 16
  %v1330 = vpop.permute.xlu0 %1329
  %v1331 = vsel %vm1324, %v1328, %v1330
  %v1332 = vsel %vm1324, %v1330, %v1328
  %s1333 = scalar_lea.vmem %s3, 33
  %v1334 = vld [vmem:[%s1333] ss:$8 sm:$0x3]
  %s1335 = scalar_lea.vmem %s3, 130
  %v1336 = vld [vmem:[%s1335] ss:$8 sm:$0x3]
  %v1338 = vlaneseq
  %v1339 = vshrl.u32 %v1338, 7
  %v1340 = vsub.s32 0, %v1339
  %v1341 = vrot.slane %v1334, %v1340
  %v1342 = vlaneseq
  %v1343 = vshrl.u32 %v1342, 7
  %v1344 = vsub.s32 1, %v1343
  %v1345 = vrot.slane %v1334, %v1344
  %v1348 = vmul.f32 %v1326, %v1341
  %v1349 = vmul.f32 %v1325, %v1345
  %v1350 = vadd.f32 %v1177, %v1348
  %v1351 = vadd.f32 %v1178, %v1349
  %v1353 = vlaneseq
  %v1354 = vshrl.u32 %v1353, 7
  %v1355 = vsub.s32 0, %v1354
  %v1356 = vrot.slane %v1336, %v1355
  %v1357 = vlaneseq
  %v1358 = vshrl.u32 %v1357, 7
  %v1359 = vsub.s32 1, %v1358
  %v1360 = vrot.slane %v1336, %v1359
  %v1363 = vmul.f32 %v1332, %v1356
  %v1364 = vmul.f32 %v1331, %v1360
  %v1365 = vadd.f32 %v1350, %v1363
  %v1366 = vadd.f32 %v1351, %v1364
  %1367 = vrot.lane.b32.xlu0 %v500, 15
  %v1368 = vpop.permute.xlu0 %1367
  %1369 = vrot.lane.b32.xlu0 %v503, 15
  %v1370 = vpop.permute.xlu0 %1369
  %vm1371 = vcmp.lt.s32.totalorder %v103, 15
  %v1372 = vsel %vm1371, %v1368, %v1370
  %v1373 = vsel %vm1371, %v1370, %v1368
  %1374 = vrot.lane.b32.xlu0 %v523, 15
  %v1375 = vpop.permute.xlu0 %1374
  %1376 = vrot.lane.b32.xlu0 %v526, 15
  %v1377 = vpop.permute.xlu0 %1376
  %v1378 = vsel %vm1371, %v1375, %v1377
  %v1379 = vsel %vm1371, %v1377, %v1375
  %s1380 = scalar_lea.vmem %s3, 34
  %v1381 = vld [vmem:[%s1380] ss:$8 sm:$0x3]
  %s1382 = scalar_lea.vmem %s3, 131
  %v1383 = vld [vmem:[%s1382] ss:$8 sm:$0x3]
  %v1385 = vlaneseq
  %v1386 = vshrl.u32 %v1385, 7
  %v1387 = vsub.s32 0, %v1386
  %v1388 = vrot.slane %v1381, %v1387
  %v1389 = vlaneseq
  %v1390 = vshrl.u32 %v1389, 7
  %v1391 = vsub.s32 1, %v1390
  %v1392 = vrot.slane %v1381, %v1391
  %v1395 = vmul.f32 %v1373, %v1388
  %v1396 = vmul.f32 %v1372, %v1392
  %v1397 = vadd.f32 %v1224, %v1395
  %v1398 = vadd.f32 %v1225, %v1396
  %v1400 = vlaneseq
  %v1401 = vshrl.u32 %v1400, 7
  %v1402 = vsub.s32 0, %v1401
  %v1403 = vrot.slane %v1383, %v1402
  %v1404 = vlaneseq
  %v1405 = vshrl.u32 %v1404, 7
  %v1406 = vsub.s32 1, %v1405
  %v1407 = vrot.slane %v1383, %v1406
  %v1410 = vmul.f32 %v1379, %v1403
  %v1411 = vmul.f32 %v1378, %v1407
  %v1412 = vadd.f32 %v1397, %v1410
  %v1413 = vadd.f32 %v1398, %v1411
  %1414 = vrot.lane.b32.xlu0 %v500, 14
  %v1415 = vpop.permute.xlu0 %1414
  %1416 = vrot.lane.b32.xlu0 %v503, 14
  %v1417 = vpop.permute.xlu0 %1416
  %vm1418 = vcmp.lt.s32.totalorder %v103, 14
  %v1419 = vsel %vm1418, %v1415, %v1417
  %v1420 = vsel %vm1418, %v1417, %v1415
  %1421 = vrot.lane.b32.xlu0 %v523, 14
  %v1422 = vpop.permute.xlu0 %1421
  %1423 = vrot.lane.b32.xlu0 %v526, 14
  %v1424 = vpop.permute.xlu0 %1423
  %v1425 = vsel %vm1418, %v1422, %v1424
  %v1426 = vsel %vm1418, %v1424, %v1422
  %s1427 = scalar_lea.vmem %s3, 35
  %v1428 = vld [vmem:[%s1427] ss:$8 sm:$0x3]
  %s1429 = scalar_lea.vmem %s3, 132
  %v1430 = vld [vmem:[%s1429] ss:$8 sm:$0x3]
  %v1432 = vlaneseq
  %v1433 = vshrl.u32 %v1432, 7
  %v1434 = vsub.s32 0, %v1433
  %v1435 = vrot.slane %v1428, %v1434
  %v1436 = vlaneseq
  %v1437 = vshrl.u32 %v1436, 7
  %v1438 = vsub.s32 1, %v1437
  %v1439 = vrot.slane %v1428, %v1438
  %v1442 = vmul.f32 %v1420, %v1435
  %v1443 = vmul.f32 %v1419, %v1439
  %v1444 = vadd.f32 %v1271, %v1442
  %v1445 = vadd.f32 %v1272, %v1443
  %v1447 = vlaneseq
  %v1448 = vshrl.u32 %v1447, 7
  %v1449 = vsub.s32 0, %v1448
  %v1450 = vrot.slane %v1430, %v1449
  %v1451 = vlaneseq
  %v1452 = vshrl.u32 %v1451, 7
  %v1453 = vsub.s32 1, %v1452
  %v1454 = vrot.slane %v1430, %v1453
  %v1457 = vmul.f32 %v1426, %v1450
  %v1458 = vmul.f32 %v1425, %v1454
  %v1459 = vadd.f32 %v1444, %v1457
  %v1460 = vadd.f32 %v1445, %v1458
  %1461 = vrot.lane.b32.xlu0 %v500, 13
  %v1462 = vpop.permute.xlu0 %1461
  %1463 = vrot.lane.b32.xlu0 %v503, 13
  %v1464 = vpop.permute.xlu0 %1463
  %vm1465 = vcmp.lt.s32.totalorder %v103, 13
  %v1466 = vsel %vm1465, %v1462, %v1464
  %v1467 = vsel %vm1465, %v1464, %v1462
  %1468 = vrot.lane.b32.xlu0 %v523, 13
  %v1469 = vpop.permute.xlu0 %1468
  %1470 = vrot.lane.b32.xlu0 %v526, 13
  %v1471 = vpop.permute.xlu0 %1470
  %v1472 = vsel %vm1465, %v1469, %v1471
  %v1473 = vsel %vm1465, %v1471, %v1469
  %s1474 = scalar_lea.vmem %s3, 36
  %v1475 = vld [vmem:[%s1474] ss:$8 sm:$0x3]
  %s1476 = scalar_lea.vmem %s3, 133
  %v1477 = vld [vmem:[%s1476] ss:$8 sm:$0x3]
  %v1479 = vlaneseq
  %v1480 = vshrl.u32 %v1479, 7
  %v1481 = vsub.s32 0, %v1480
  %v1482 = vrot.slane %v1475, %v1481
  %v1483 = vlaneseq
  %v1484 = vshrl.u32 %v1483, 7
  %v1485 = vsub.s32 1, %v1484
  %v1486 = vrot.slane %v1475, %v1485
  %v1489 = vmul.f32 %v1467, %v1482
  %v1490 = vmul.f32 %v1466, %v1486
  %v1491 = vadd.f32 %v1318, %v1489
  %v1492 = vadd.f32 %v1319, %v1490
  %v1494 = vlaneseq
  %v1495 = vshrl.u32 %v1494, 7
  %v1496 = vsub.s32 0, %v1495
  %v1497 = vrot.slane %v1477, %v1496
  %v1498 = vlaneseq
  %v1499 = vshrl.u32 %v1498, 7
  %v1500 = vsub.s32 1, %v1499
  %v1501 = vrot.slane %v1477, %v1500
  %v1504 = vmul.f32 %v1473, %v1497
  %v1505 = vmul.f32 %v1472, %v1501
  %v1506 = vadd.f32 %v1491, %v1504
  %v1507 = vadd.f32 %v1492, %v1505
  %1508 = vrot.lane.b32.xlu0 %v500, 3
  %v1509 = vpop.permute.xlu0 %1508
  %1510 = vrot.lane.b32.xlu0 %v503, 3
  %v1511 = vpop.permute.xlu0 %1510
  %vm1512 = vcmp.lt.s32.totalorder %v103, 3
  %v1513 = vsel %vm1512, %v1509, %v1511
  %v1514 = vsel %vm1512, %v1511, %v1509
  %1515 = vrot.lane.b32.xlu0 %v523, 3
  %v1516 = vpop.permute.xlu0 %1515
  %1517 = vrot.lane.b32.xlu0 %v526, 3
  %v1518 = vpop.permute.xlu0 %1517
  %v1519 = vsel %vm1512, %v1516, %v1518
  %v1520 = vsel %vm1512, %v1518, %v1516
  %s1521 = scalar_lea.vmem %s3, 37
  %v1522 = vld [vmem:[%s1521] ss:$8 sm:$0x3]
  %s1523 = scalar_lea.vmem %s3, 134
  %v1524 = vld [vmem:[%s1523] ss:$8 sm:$0x3]
  %v1526 = vlaneseq
  %v1527 = vshrl.u32 %v1526, 7
  %v1528 = vsub.s32 0, %v1527
  %v1529 = vrot.slane %v1522, %v1528
  %v1530 = vlaneseq
  %v1531 = vshrl.u32 %v1530, 7
  %v1532 = vsub.s32 1, %v1531
  %v1533 = vrot.slane %v1522, %v1532
  %v1536 = vmul.f32 %v1514, %v1529
  %v1537 = vmul.f32 %v1513, %v1533
  %v1538 = vadd.f32 %v1365, %v1536
  %v1539 = vadd.f32 %v1366, %v1537
  %v1541 = vlaneseq
  %v1542 = vshrl.u32 %v1541, 7
  %v1543 = vsub.s32 0, %v1542
  %v1544 = vrot.slane %v1524, %v1543
  %v1545 = vlaneseq
  %v1546 = vshrl.u32 %v1545, 7
  %v1547 = vsub.s32 1, %v1546
  %v1548 = vrot.slane %v1524, %v1547
  %v1551 = vmul.f32 %v1520, %v1544
  %v1552 = vmul.f32 %v1519, %v1548
  %v1553 = vadd.f32 %v1538, %v1551
  %v1554 = vadd.f32 %v1539, %v1552
  %1555 = vrot.lane.b32.xlu0 %v500, 2
  %v1556 = vpop.permute.xlu0 %1555
  %1557 = vrot.lane.b32.xlu0 %v503, 2
  %v1558 = vpop.permute.xlu0 %1557
  %vm1559 = vcmp.lt.s32.totalorder %v103, 2
  %v1560 = vsel %vm1559, %v1556, %v1558
  %v1561 = vsel %vm1559, %v1558, %v1556
  %1562 = vrot.lane.b32.xlu0 %v523, 2
  %v1563 = vpop.permute.xlu0 %1562
  %1564 = vrot.lane.b32.xlu0 %v526, 2
  %v1565 = vpop.permute.xlu0 %1564
  %v1566 = vsel %vm1559, %v1563, %v1565
  %v1567 = vsel %vm1559, %v1565, %v1563
  %s1568 = scalar_lea.vmem %s3, 38
  %v1569 = vld [vmem:[%s1568] ss:$8 sm:$0x3]
  %s1570 = scalar_lea.vmem %s3, 135
  %v1571 = vld [vmem:[%s1570] ss:$8 sm:$0x3]
  %v1573 = vlaneseq
  %v1574 = vshrl.u32 %v1573, 7
  %v1575 = vsub.s32 0, %v1574
  %v1576 = vrot.slane %v1569, %v1575
  %v1577 = vlaneseq
  %v1578 = vshrl.u32 %v1577, 7
  %v1579 = vsub.s32 1, %v1578
  %v1580 = vrot.slane %v1569, %v1579
  %v1583 = vmul.f32 %v1561, %v1576
  %v1584 = vmul.f32 %v1560, %v1580
  %v1585 = vadd.f32 %v1412, %v1583
  %v1586 = vadd.f32 %v1413, %v1584
  %v1588 = vlaneseq
  %v1589 = vshrl.u32 %v1588, 7
  %v1590 = vsub.s32 0, %v1589
  %v1591 = vrot.slane %v1571, %v1590
  %v1592 = vlaneseq
  %v1593 = vshrl.u32 %v1592, 7
  %v1594 = vsub.s32 1, %v1593
  %v1595 = vrot.slane %v1571, %v1594
  %v1598 = vmul.f32 %v1567, %v1591
  %v1599 = vmul.f32 %v1566, %v1595
  %v1600 = vadd.f32 %v1585, %v1598
  %v1601 = vadd.f32 %v1586, %v1599
  %1602 = vrot.lane.b32.xlu0 %v500, 1
  %v1603 = vpop.permute.xlu0 %1602
  %1604 = vrot.lane.b32.xlu0 %v503, 1
  %v1605 = vpop.permute.xlu0 %1604
  %vm1606 = vcmp.lt.s32.totalorder %v103, 1
  %v1607 = vsel %vm1606, %v1603, %v1605
  %v1608 = vsel %vm1606, %v1605, %v1603
  %1609 = vrot.lane.b32.xlu0 %v523, 1
  %v1610 = vpop.permute.xlu0 %1609
  %1611 = vrot.lane.b32.xlu0 %v526, 1
  %v1612 = vpop.permute.xlu0 %1611
  %v1613 = vsel %vm1606, %v1610, %v1612
  %v1614 = vsel %vm1606, %v1612, %v1610
  %s1615 = scalar_lea.vmem %s3, 39
  %v1616 = vld [vmem:[%s1615] ss:$8 sm:$0x3]
  %s1617 = scalar_lea.vmem %s3, 144
  %v1618 = vld [vmem:[%s1617] ss:$8 sm:$0x3]
  %v1620 = vlaneseq
  %v1621 = vshrl.u32 %v1620, 7
  %v1622 = vsub.s32 0, %v1621
  %v1623 = vrot.slane %v1616, %v1622
  %v1624 = vlaneseq
  %v1625 = vshrl.u32 %v1624, 7
  %v1626 = vsub.s32 1, %v1625
  %v1627 = vrot.slane %v1616, %v1626
  %v1630 = vmul.f32 %v1608, %v1623
  %v1631 = vmul.f32 %v1607, %v1627
  %v1632 = vadd.f32 %v1459, %v1630
  %v1633 = vadd.f32 %v1460, %v1631
  %v1635 = vlaneseq
  %v1636 = vshrl.u32 %v1635, 7
  %v1637 = vsub.s32 0, %v1636
  %v1638 = vrot.slane %v1618, %v1637
  %v1639 = vlaneseq
  %v1640 = vshrl.u32 %v1639, 7
  %v1641 = vsub.s32 1, %v1640
  %v1642 = vrot.slane %v1618, %v1641
  %v1645 = vmul.f32 %v1614, %v1638
  %v1646 = vmul.f32 %v1613, %v1642
  %v1647 = vadd.f32 %v1632, %v1645
  %v1648 = vadd.f32 %v1633, %v1646
  %s1649 = scalar_lea.vmem %s3, 48
  %v1650 = vld [vmem:[%s1649] ss:$8 sm:$0x3]
  %s1651 = scalar_lea.vmem %s3, 145
  %v1652 = vld [vmem:[%s1651] ss:$8 sm:$0x3]
  %v1654 = vlaneseq
  %v1655 = vshrl.u32 %v1654, 7
  %v1656 = vsub.s32 0, %v1655
  %v1657 = vrot.slane %v1650, %v1656
  %v1658 = vlaneseq
  %v1659 = vshrl.u32 %v1658, 7
  %v1660 = vsub.s32 1, %v1659
  %v1661 = vrot.slane %v1650, %v1660
  %v1664 = vmul.f32 %v425, %v1657
  %v1665 = vmul.f32 %v426, %v1661
  %v1666 = vmul.f32 %v427, %v1657
  %v1667 = vmul.f32 %v428, %v1661
  %v1668 = vmul.f32 %v429, %v1657
  %v1669 = vmul.f32 %v430, %v1661
  %v1670 = vmul.f32 %v431, %v1657
  %v1671 = vmul.f32 %v432, %v1661
  %v1680 = vrot.slane %v1666, 7
  %v1681 = vsel %vm142, %v1680, %v1664
  %v1682 = vrot.slane %v1668, 6
  %v1683 = vsel %vm144, %v1682, %v1681
  %v1684 = vrot.slane %v1670, 5
  %v1685 = vsel %vm146, %v1684, %v1683
  %v1686 = vrot.slane %v1667, 7
  %v1687 = vsel %vm142, %v1686, %v1665
  %v1688 = vrot.slane %v1669, 6
  %v1689 = vsel %vm144, %v1688, %v1687
  %v1690 = vrot.slane %v1671, 5
  %v1691 = vsel %vm146, %v1690, %v1689
  %v1694 = vadd.f32 %v1506, %v1685
  %v1695 = vadd.f32 %v1507, %v1691
  %v1697 = vlaneseq
  %v1698 = vshrl.u32 %v1697, 7
  %v1699 = vsub.s32 0, %v1698
  %v1700 = vrot.slane %v1652, %v1699
  %v1701 = vlaneseq
  %v1702 = vshrl.u32 %v1701, 7
  %v1703 = vsub.s32 1, %v1702
  %v1704 = vrot.slane %v1652, %v1703
  %v1707 = vmul.f32 %v439, %v1700
  %v1708 = vmul.f32 %v446, %v1704
  %v1709 = vmul.f32 %v453, %v1700
  %v1710 = vmul.f32 %v460, %v1704
  %v1711 = vmul.f32 %v467, %v1700
  %v1712 = vmul.f32 %v474, %v1704
  %v1713 = vmul.f32 %v481, %v1700
  %v1714 = vmul.f32 %v488, %v1704
  %v1723 = vrot.slane %v1709, 7
  %v1724 = vsel %vm142, %v1723, %v1707
  %v1725 = vrot.slane %v1711, 6
  %v1726 = vsel %vm144, %v1725, %v1724
  %v1727 = vrot.slane %v1713, 5
  %v1728 = vsel %vm146, %v1727, %v1726
  %v1729 = vrot.slane %v1710, 7
  %v1730 = vsel %vm142, %v1729, %v1708
  %v1731 = vrot.slane %v1712, 6
  %v1732 = vsel %vm144, %v1731, %v1730
  %v1733 = vrot.slane %v1714, 5
  %v1734 = vsel %vm146, %v1733, %v1732
  %v1737 = vadd.f32 %v1694, %v1728
  %v1738 = vadd.f32 %v1695, %v1734
  %1739 = vrot.lane.b32.xlu0 %v500, 127
  %v1740 = vpop.permute.xlu0 %1739
  %1741 = vrot.lane.b32.xlu0 %v503, 127
  %v1742 = vpop.permute.xlu0 %1741
  %vm1743 = vcmp.lt.s32.totalorder %v103, 127
  %v1744 = vsel %vm1743, %v1740, %v1742
  %v1745 = vsel %vm1743, %v1742, %v1740
  %1746 = vrot.lane.b32.xlu0 %v523, 127
  %v1747 = vpop.permute.xlu0 %1746
  %1748 = vrot.lane.b32.xlu0 %v526, 127
  %v1749 = vpop.permute.xlu0 %1748
  %v1750 = vsel %vm1743, %v1747, %v1749
  %v1751 = vsel %vm1743, %v1749, %v1747
  %s1752 = scalar_lea.vmem %s3, 49
  %v1753 = vld [vmem:[%s1752] ss:$8 sm:$0x3]
  %s1754 = scalar_lea.vmem %s3, 146
  %v1755 = vld [vmem:[%s1754] ss:$8 sm:$0x3]
  %v1757 = vlaneseq
  %v1758 = vshrl.u32 %v1757, 7
  %v1759 = vsub.s32 0, %v1758
  %v1760 = vrot.slane %v1753, %v1759
  %v1761 = vlaneseq
  %v1762 = vshrl.u32 %v1761, 7
  %v1763 = vsub.s32 1, %v1762
  %v1764 = vrot.slane %v1753, %v1763
  %v1767 = vmul.f32 %v1744, %v1760
  %v1768 = vmul.f32 %v1745, %v1764
  %v1769 = vadd.f32 %v1553, %v1767
  %v1770 = vadd.f32 %v1554, %v1768
  %v1772 = vlaneseq
  %v1773 = vshrl.u32 %v1772, 7
  %v1774 = vsub.s32 0, %v1773
  %v1775 = vrot.slane %v1755, %v1774
  %v1776 = vlaneseq
  %v1777 = vshrl.u32 %v1776, 7
  %v1778 = vsub.s32 1, %v1777
  %v1779 = vrot.slane %v1755, %v1778
  %v1782 = vmul.f32 %v1750, %v1775
  %v1783 = vmul.f32 %v1751, %v1779
  %v1784 = vadd.f32 %v1769, %v1782
  %v1785 = vadd.f32 %v1770, %v1783
  %1786 = vrot.lane.b32.xlu0 %v500, 126
  %v1787 = vpop.permute.xlu0 %1786
  %1788 = vrot.lane.b32.xlu0 %v503, 126
  %v1789 = vpop.permute.xlu0 %1788
  %vm1790 = vcmp.lt.s32.totalorder %v103, 126
  %v1791 = vsel %vm1790, %v1787, %v1789
  %v1792 = vsel %vm1790, %v1789, %v1787
  %1793 = vrot.lane.b32.xlu0 %v523, 126
  %v1794 = vpop.permute.xlu0 %1793
  %1795 = vrot.lane.b32.xlu0 %v526, 126
  %v1796 = vpop.permute.xlu0 %1795
  %v1797 = vsel %vm1790, %v1794, %v1796
  %v1798 = vsel %vm1790, %v1796, %v1794
  %s1799 = scalar_lea.vmem %s3, 50
  %v1800 = vld [vmem:[%s1799] ss:$8 sm:$0x3]
  %s1801 = scalar_lea.vmem %s3, 147
  %v1802 = vld [vmem:[%s1801] ss:$8 sm:$0x3]
  %v1804 = vlaneseq
  %v1805 = vshrl.u32 %v1804, 7
  %v1806 = vsub.s32 0, %v1805
  %v1807 = vrot.slane %v1800, %v1806
  %v1808 = vlaneseq
  %v1809 = vshrl.u32 %v1808, 7
  %v1810 = vsub.s32 1, %v1809
  %v1811 = vrot.slane %v1800, %v1810
  %v1814 = vmul.f32 %v1791, %v1807
  %v1815 = vmul.f32 %v1792, %v1811
  %v1816 = vadd.f32 %v1600, %v1814
  %v1817 = vadd.f32 %v1601, %v1815
  %v1819 = vlaneseq
  %v1820 = vshrl.u32 %v1819, 7
  %v1821 = vsub.s32 0, %v1820
  %v1822 = vrot.slane %v1802, %v1821
  %v1823 = vlaneseq
  %v1824 = vshrl.u32 %v1823, 7
  %v1825 = vsub.s32 1, %v1824
  %v1826 = vrot.slane %v1802, %v1825
  %v1829 = vmul.f32 %v1797, %v1822
  %v1830 = vmul.f32 %v1798, %v1826
  %v1831 = vadd.f32 %v1816, %v1829
  %v1832 = vadd.f32 %v1817, %v1830
  %1833 = vrot.lane.b32.xlu0 %v500, 125
  %v1834 = vpop.permute.xlu0 %1833
  %1835 = vrot.lane.b32.xlu0 %v503, 125
  %v1836 = vpop.permute.xlu0 %1835
  %vm1837 = vcmp.lt.s32.totalorder %v103, 125
  %v1838 = vsel %vm1837, %v1834, %v1836
  %v1839 = vsel %vm1837, %v1836, %v1834
  %1840 = vrot.lane.b32.xlu0 %v523, 125
  %v1841 = vpop.permute.xlu0 %1840
  %1842 = vrot.lane.b32.xlu0 %v526, 125
  %v1843 = vpop.permute.xlu0 %1842
  %v1844 = vsel %vm1837, %v1841, %v1843
  %v1845 = vsel %vm1837, %v1843, %v1841
  %s1846 = scalar_lea.vmem %s3, 51
  %v1847 = vld [vmem:[%s1846] ss:$8 sm:$0x3]
  %s1848 = scalar_lea.vmem %s3, 148
  %v1849 = vld [vmem:[%s1848] ss:$8 sm:$0x3]
  %v1851 = vlaneseq
  %v1852 = vshrl.u32 %v1851, 7
  %v1853 = vsub.s32 0, %v1852
  %v1854 = vrot.slane %v1847, %v1853
  %v1855 = vlaneseq
  %v1856 = vshrl.u32 %v1855, 7
  %v1857 = vsub.s32 1, %v1856
  %v1858 = vrot.slane %v1847, %v1857
  %v1861 = vmul.f32 %v1838, %v1854
  %v1862 = vmul.f32 %v1839, %v1858
  %v1863 = vadd.f32 %v1647, %v1861
  %v1864 = vadd.f32 %v1648, %v1862
  %v1866 = vlaneseq
  %v1867 = vshrl.u32 %v1866, 7
  %v1868 = vsub.s32 0, %v1867
  %v1869 = vrot.slane %v1849, %v1868
  %v1870 = vlaneseq
  %v1871 = vshrl.u32 %v1870, 7
  %v1872 = vsub.s32 1, %v1871
  %v1873 = vrot.slane %v1849, %v1872
  %v1876 = vmul.f32 %v1844, %v1869
  %v1877 = vmul.f32 %v1845, %v1873
  %v1878 = vadd.f32 %v1863, %v1876
  %v1879 = vadd.f32 %v1864, %v1877
  %1880 = vrot.lane.b32.xlu0 %v500, 115
  %v1881 = vpop.permute.xlu0 %1880
  %1882 = vrot.lane.b32.xlu0 %v503, 115
  %v1883 = vpop.permute.xlu0 %1882
  %vm1884 = vcmp.lt.s32.totalorder %v103, 115
  %v1885 = vsel %vm1884, %v1881, %v1883
  %v1886 = vsel %vm1884, %v1883, %v1881
  %1887 = vrot.lane.b32.xlu0 %v523, 115
  %v1888 = vpop.permute.xlu0 %1887
  %1889 = vrot.lane.b32.xlu0 %v526, 115
  %v1890 = vpop.permute.xlu0 %1889
  %v1891 = vsel %vm1884, %v1888, %v1890
  %v1892 = vsel %vm1884, %v1890, %v1888
  %s1893 = scalar_lea.vmem %s3, 52
  %v1894 = vld [vmem:[%s1893] ss:$8 sm:$0x3]
  %s1895 = scalar_lea.vmem %s3, 149
  %v1896 = vld [vmem:[%s1895] ss:$8 sm:$0x3]
  %v1898 = vlaneseq
  %v1899 = vshrl.u32 %v1898, 7
  %v1900 = vsub.s32 0, %v1899
  %v1901 = vrot.slane %v1894, %v1900
  %v1902 = vlaneseq
  %v1903 = vshrl.u32 %v1902, 7
  %v1904 = vsub.s32 1, %v1903
  %v1905 = vrot.slane %v1894, %v1904
  %v1908 = vmul.f32 %v1885, %v1901
  %v1909 = vmul.f32 %v1886, %v1905
  %v1910 = vadd.f32 %v1737, %v1908
  %v1911 = vadd.f32 %v1738, %v1909
  %v1913 = vlaneseq
  %v1914 = vshrl.u32 %v1913, 7
  %v1915 = vsub.s32 0, %v1914
  %v1916 = vrot.slane %v1896, %v1915
  %v1917 = vlaneseq
  %v1918 = vshrl.u32 %v1917, 7
  %v1919 = vsub.s32 1, %v1918
  %v1920 = vrot.slane %v1896, %v1919
  %v1923 = vmul.f32 %v1891, %v1916
  %v1924 = vmul.f32 %v1892, %v1920
  %v1925 = vadd.f32 %v1910, %v1923
  %v1926 = vadd.f32 %v1911, %v1924
  %1927 = vrot.lane.b32.xlu0 %v500, 114
  %v1928 = vpop.permute.xlu0 %1927
  %1929 = vrot.lane.b32.xlu0 %v503, 114
  %v1930 = vpop.permute.xlu0 %1929
  %vm1931 = vcmp.lt.s32.totalorder %v103, 114
  %v1932 = vsel %vm1931, %v1928, %v1930
  %v1933 = vsel %vm1931, %v1930, %v1928
  %1934 = vrot.lane.b32.xlu0 %v523, 114
  %v1935 = vpop.permute.xlu0 %1934
  %1936 = vrot.lane.b32.xlu0 %v526, 114
  %v1937 = vpop.permute.xlu0 %1936
  %v1938 = vsel %vm1931, %v1935, %v1937
  %v1939 = vsel %vm1931, %v1937, %v1935
  %s1940 = scalar_lea.vmem %s3, 53
  %v1941 = vld [vmem:[%s1940] ss:$8 sm:$0x3]
  %s1942 = scalar_lea.vmem %s3, 150
  %v1943 = vld [vmem:[%s1942] ss:$8 sm:$0x3]
  %v1945 = vlaneseq
  %v1946 = vshrl.u32 %v1945, 7
  %v1947 = vsub.s32 0, %v1946
  %v1948 = vrot.slane %v1941, %v1947
  %v1949 = vlaneseq
  %v1950 = vshrl.u32 %v1949, 7
  %v1951 = vsub.s32 1, %v1950
  %v1952 = vrot.slane %v1941, %v1951
  %v1955 = vmul.f32 %v1932, %v1948
  %v1956 = vmul.f32 %v1933, %v1952
  %v1957 = vadd.f32 %v1784, %v1955
  %v1958 = vadd.f32 %v1785, %v1956
  %v1960 = vlaneseq
  %v1961 = vshrl.u32 %v1960, 7
  %v1962 = vsub.s32 0, %v1961
  %v1963 = vrot.slane %v1943, %v1962
  %v1964 = vlaneseq
  %v1965 = vshrl.u32 %v1964, 7
  %v1966 = vsub.s32 1, %v1965
  %v1967 = vrot.slane %v1943, %v1966
  %v1970 = vmul.f32 %v1938, %v1963
  %v1971 = vmul.f32 %v1939, %v1967
  %v1972 = vadd.f32 %v1957, %v1970
  %v1973 = vadd.f32 %v1958, %v1971
  %1974 = vrot.lane.b32.xlu0 %v500, 113
  %v1975 = vpop.permute.xlu0 %1974
  %1976 = vrot.lane.b32.xlu0 %v503, 113
  %v1977 = vpop.permute.xlu0 %1976
  %vm1978 = vcmp.lt.s32.totalorder %v103, 113
  %v1979 = vsel %vm1978, %v1975, %v1977
  %v1980 = vsel %vm1978, %v1977, %v1975
  %1981 = vrot.lane.b32.xlu0 %v523, 113
  %v1982 = vpop.permute.xlu0 %1981
  %1983 = vrot.lane.b32.xlu0 %v526, 113
  %v1984 = vpop.permute.xlu0 %1983
  %v1985 = vsel %vm1978, %v1982, %v1984
  %v1986 = vsel %vm1978, %v1984, %v1982
  %s1987 = scalar_lea.vmem %s3, 54
  %v1988 = vld [vmem:[%s1987] ss:$8 sm:$0x3]
  %s1989 = scalar_lea.vmem %s3, 151
  %v1990 = vld [vmem:[%s1989] ss:$8 sm:$0x3]
  %v1992 = vlaneseq
  %v1993 = vshrl.u32 %v1992, 7
  %v1994 = vsub.s32 0, %v1993
  %v1995 = vrot.slane %v1988, %v1994
  %v1996 = vlaneseq
  %v1997 = vshrl.u32 %v1996, 7
  %v1998 = vsub.s32 1, %v1997
  %v1999 = vrot.slane %v1988, %v1998
  %v2002 = vmul.f32 %v1979, %v1995
  %v2003 = vmul.f32 %v1980, %v1999
  %v2004 = vadd.f32 %v1831, %v2002
  %v2005 = vadd.f32 %v1832, %v2003
  %v2007 = vlaneseq
  %v2008 = vshrl.u32 %v2007, 7
  %v2009 = vsub.s32 0, %v2008
  %v2010 = vrot.slane %v1990, %v2009
  %v2011 = vlaneseq
  %v2012 = vshrl.u32 %v2011, 7
  %v2013 = vsub.s32 1, %v2012
  %v2014 = vrot.slane %v1990, %v2013
  %v2017 = vmul.f32 %v1985, %v2010
  %v2018 = vmul.f32 %v1986, %v2014
  %v2019 = vadd.f32 %v2004, %v2017
  %v2020 = vadd.f32 %v2005, %v2018
  %2021 = vrot.lane.b32.xlu0 %v500, 112
  %v2022 = vpop.permute.xlu0 %2021
  %2023 = vrot.lane.b32.xlu0 %v503, 112
  %v2024 = vpop.permute.xlu0 %2023
  %vm2025 = vcmp.lt.s32.totalorder %v103, 112
  %v2026 = vsel %vm2025, %v2022, %v2024
  %v2027 = vsel %vm2025, %v2024, %v2022
  %2028 = vrot.lane.b32.xlu0 %v523, 112
  %v2029 = vpop.permute.xlu0 %2028
  %2030 = vrot.lane.b32.xlu0 %v526, 112
  %v2031 = vpop.permute.xlu0 %2030
  %v2032 = vsel %vm2025, %v2029, %v2031
  %v2033 = vsel %vm2025, %v2031, %v2029
  %s2034 = scalar_lea.vmem %s3, 55
  %v2035 = vld [vmem:[%s2034] ss:$8 sm:$0x3]
  %s2036 = scalar_lea.vmem %s3, 160
  %v2037 = vld [vmem:[%s2036] ss:$8 sm:$0x3]
  %v2039 = vlaneseq
  %v2040 = vshrl.u32 %v2039, 7
  %v2041 = vsub.s32 0, %v2040
  %v2042 = vrot.slane %v2035, %v2041
  %v2043 = vlaneseq
  %v2044 = vshrl.u32 %v2043, 7
  %v2045 = vsub.s32 1, %v2044
  %v2046 = vrot.slane %v2035, %v2045
  %v2049 = vmul.f32 %v2026, %v2042
  %v2050 = vmul.f32 %v2027, %v2046
  %v2051 = vadd.f32 %v1878, %v2049
  %v2052 = vadd.f32 %v1879, %v2050
  %v2054 = vlaneseq
  %v2055 = vshrl.u32 %v2054, 7
  %v2056 = vsub.s32 0, %v2055
  %v2057 = vrot.slane %v2037, %v2056
  %v2058 = vlaneseq
  %v2059 = vshrl.u32 %v2058, 7
  %v2060 = vsub.s32 1, %v2059
  %v2061 = vrot.slane %v2037, %v2060
  %v2064 = vmul.f32 %v2032, %v2057
  %v2065 = vmul.f32 %v2033, %v2061
  %v2066 = vadd.f32 %v2051, %v2064
  %v2067 = vadd.f32 %v2052, %v2065
  %2068 = vrot.lane.b32.xlu0 %v500, 111
  %v2069 = vpop.permute.xlu0 %2068
  %2070 = vrot.lane.b32.xlu0 %v503, 111
  %v2071 = vpop.permute.xlu0 %2070
  %vm2072 = vcmp.lt.s32.totalorder %v103, 111
  %v2073 = vsel %vm2072, %v2069, %v2071
  %v2074 = vsel %vm2072, %v2071, %v2069
  %2075 = vrot.lane.b32.xlu0 %v523, 111
  %v2076 = vpop.permute.xlu0 %2075
  %2077 = vrot.lane.b32.xlu0 %v526, 111
  %v2078 = vpop.permute.xlu0 %2077
  %v2079 = vsel %vm2072, %v2076, %v2078
  %v2080 = vsel %vm2072, %v2078, %v2076
  %s2081 = scalar_lea.vmem %s3, 64
  %v2082 = vld [vmem:[%s2081] ss:$8 sm:$0x3]
  %s2083 = scalar_lea.vmem %s3, 161
  %v2084 = vld [vmem:[%s2083] ss:$8 sm:$0x3]
  %v2086 = vlaneseq
  %v2087 = vshrl.u32 %v2086, 7
  %v2088 = vsub.s32 0, %v2087
  %v2089 = vrot.slane %v2082, %v2088
  %v2090 = vlaneseq
  %v2091 = vshrl.u32 %v2090, 7
  %v2092 = vsub.s32 1, %v2091
  %v2093 = vrot.slane %v2082, %v2092
  %v2096 = vmul.f32 %v2073, %v2089
  %v2097 = vmul.f32 %v2074, %v2093
  %v2098 = vadd.f32 %v1925, %v2096
  %v2099 = vadd.f32 %v1926, %v2097
  %v2101 = vlaneseq
  %v2102 = vshrl.u32 %v2101, 7
  %v2103 = vsub.s32 0, %v2102
  %v2104 = vrot.slane %v2084, %v2103
  %v2105 = vlaneseq
  %v2106 = vshrl.u32 %v2105, 7
  %v2107 = vsub.s32 1, %v2106
  %v2108 = vrot.slane %v2084, %v2107
  %v2111 = vmul.f32 %v2079, %v2104
  %v2112 = vmul.f32 %v2080, %v2108
  %v2113 = vadd.f32 %v2098, %v2111
  %v2114 = vadd.f32 %v2099, %v2112
  %2115 = vrot.lane.b32.xlu0 %v500, 110
  %v2116 = vpop.permute.xlu0 %2115
  %2117 = vrot.lane.b32.xlu0 %v503, 110
  %v2118 = vpop.permute.xlu0 %2117
  %vm2119 = vcmp.lt.s32.totalorder %v103, 110
  %v2120 = vsel %vm2119, %v2116, %v2118
  %v2121 = vsel %vm2119, %v2118, %v2116
  %2122 = vrot.lane.b32.xlu0 %v523, 110
  %v2123 = vpop.permute.xlu0 %2122
  %2124 = vrot.lane.b32.xlu0 %v526, 110
  %v2125 = vpop.permute.xlu0 %2124
  %v2126 = vsel %vm2119, %v2123, %v2125
  %v2127 = vsel %vm2119, %v2125, %v2123
  %s2128 = scalar_lea.vmem %s3, 65
  %v2129 = vld [vmem:[%s2128] ss:$8 sm:$0x3]
  %s2130 = scalar_lea.vmem %s3, 162
  %v2131 = vld [vmem:[%s2130] ss:$8 sm:$0x3]
  %v2133 = vlaneseq
  %v2134 = vshrl.u32 %v2133, 7
  %v2135 = vsub.s32 0, %v2134
  %v2136 = vrot.slane %v2129, %v2135
  %v2137 = vlaneseq
  %v2138 = vshrl.u32 %v2137, 7
  %v2139 = vsub.s32 1, %v2138
  %v2140 = vrot.slane %v2129, %v2139
  %v2143 = vmul.f32 %v2120, %v2136
  %v2144 = vmul.f32 %v2121, %v2140
  %v2145 = vadd.f32 %v1972, %v2143
  %v2146 = vadd.f32 %v1973, %v2144
  %v2148 = vlaneseq
  %v2149 = vshrl.u32 %v2148, 7
  %v2150 = vsub.s32 0, %v2149
  %v2151 = vrot.slane %v2131, %v2150
  %v2152 = vlaneseq
  %v2153 = vshrl.u32 %v2152, 7
  %v2154 = vsub.s32 1, %v2153
  %v2155 = vrot.slane %v2131, %v2154
  %v2158 = vmul.f32 %v2126, %v2151
  %v2159 = vmul.f32 %v2127, %v2155
  %v2160 = vadd.f32 %v2145, %v2158
  %v2161 = vadd.f32 %v2146, %v2159
  %2162 = vrot.lane.b32.xlu0 %v500, 109
  %v2163 = vpop.permute.xlu0 %2162
  %2164 = vrot.lane.b32.xlu0 %v503, 109
  %v2165 = vpop.permute.xlu0 %2164
  %vm2166 = vcmp.lt.s32.totalorder %v103, 109
  %v2167 = vsel %vm2166, %v2163, %v2165
  %v2168 = vsel %vm2166, %v2165, %v2163
  %2169 = vrot.lane.b32.xlu0 %v523, 109
  %v2170 = vpop.permute.xlu0 %2169
  %2171 = vrot.lane.b32.xlu0 %v526, 109
  %v2172 = vpop.permute.xlu0 %2171
  %v2173 = vsel %vm2166, %v2170, %v2172
  %v2174 = vsel %vm2166, %v2172, %v2170
  %s2175 = scalar_lea.vmem %s3, 66
  %v2176 = vld [vmem:[%s2175] ss:$8 sm:$0x3]
  %s2177 = scalar_lea.vmem %s3, 163
  %v2178 = vld [vmem:[%s2177] ss:$8 sm:$0x3]
  %v2180 = vlaneseq
  %v2181 = vshrl.u32 %v2180, 7
  %v2182 = vsub.s32 0, %v2181
  %v2183 = vrot.slane %v2176, %v2182
  %v2184 = vlaneseq
  %v2185 = vshrl.u32 %v2184, 7
  %v2186 = vsub.s32 1, %v2185
  %v2187 = vrot.slane %v2176, %v2186
  %v2190 = vmul.f32 %v2167, %v2183
  %v2191 = vmul.f32 %v2168, %v2187
  %v2192 = vadd.f32 %v2019, %v2190
  %v2193 = vadd.f32 %v2020, %v2191
  %v2195 = vlaneseq
  %v2196 = vshrl.u32 %v2195, 7
  %v2197 = vsub.s32 0, %v2196
  %v2198 = vrot.slane %v2178, %v2197
  %v2199 = vlaneseq
  %v2200 = vshrl.u32 %v2199, 7
  %v2201 = vsub.s32 1, %v2200
  %v2202 = vrot.slane %v2178, %v2201
  %v2205 = vmul.f32 %v2173, %v2198
  %v2206 = vmul.f32 %v2174, %v2202
  %v2207 = vadd.f32 %v2192, %v2205
  %v2208 = vadd.f32 %v2193, %v2206
  %2209 = vrot.lane.b32.xlu0 %v500, 99
  %v2210 = vpop.permute.xlu0 %2209
  %2211 = vrot.lane.b32.xlu0 %v503, 99
  %v2212 = vpop.permute.xlu0 %2211
  %vm2213 = vcmp.lt.s32.totalorder %v103, 99
  %v2214 = vsel %vm2213, %v2210, %v2212
  %v2215 = vsel %vm2213, %v2212, %v2210
  %2216 = vrot.lane.b32.xlu0 %v523, 99
  %v2217 = vpop.permute.xlu0 %2216
  %2218 = vrot.lane.b32.xlu0 %v526, 99
  %v2219 = vpop.permute.xlu0 %2218
  %v2220 = vsel %vm2213, %v2217, %v2219
  %v2221 = vsel %vm2213, %v2219, %v2217
  %s2222 = scalar_lea.vmem %s3, 67
  %v2223 = vld [vmem:[%s2222] ss:$8 sm:$0x3]
  %s2224 = scalar_lea.vmem %s3, 164
  %v2225 = vld [vmem:[%s2224] ss:$8 sm:$0x3]
  %v2227 = vlaneseq
  %v2228 = vshrl.u32 %v2227, 7
  %v2229 = vsub.s32 0, %v2228
  %v2230 = vrot.slane %v2223, %v2229
  %v2231 = vlaneseq
  %v2232 = vshrl.u32 %v2231, 7
  %v2233 = vsub.s32 1, %v2232
  %v2234 = vrot.slane %v2223, %v2233
  %v2237 = vmul.f32 %v2214, %v2230
  %v2238 = vmul.f32 %v2215, %v2234
  %v2239 = vadd.f32 %v2066, %v2237
  %v2240 = vadd.f32 %v2067, %v2238
  %v2242 = vlaneseq
  %v2243 = vshrl.u32 %v2242, 7
  %v2244 = vsub.s32 0, %v2243
  %v2245 = vrot.slane %v2225, %v2244
  %v2246 = vlaneseq
  %v2247 = vshrl.u32 %v2246, 7
  %v2248 = vsub.s32 1, %v2247
  %v2249 = vrot.slane %v2225, %v2248
  %v2252 = vmul.f32 %v2220, %v2245
  %v2253 = vmul.f32 %v2221, %v2249
  %v2254 = vadd.f32 %v2239, %v2252
  %v2255 = vadd.f32 %v2240, %v2253
  %2256 = vrot.lane.b32.xlu0 %v500, 98
  %v2257 = vpop.permute.xlu0 %2256
  %2258 = vrot.lane.b32.xlu0 %v503, 98
  %v2259 = vpop.permute.xlu0 %2258
  %vm2260 = vcmp.lt.s32.totalorder %v103, 98
  %v2261 = vsel %vm2260, %v2257, %v2259
  %v2262 = vsel %vm2260, %v2259, %v2257
  %2263 = vrot.lane.b32.xlu0 %v523, 98
  %v2264 = vpop.permute.xlu0 %2263
  %2265 = vrot.lane.b32.xlu0 %v526, 98
  %v2266 = vpop.permute.xlu0 %2265
  %v2267 = vsel %vm2260, %v2264, %v2266
  %v2268 = vsel %vm2260, %v2266, %v2264
  %s2269 = scalar_lea.vmem %s3, 68
  %v2270 = vld [vmem:[%s2269] ss:$8 sm:$0x3]
  %s2271 = scalar_lea.vmem %s3, 165
  %v2272 = vld [vmem:[%s2271] ss:$8 sm:$0x3]
  %v2274 = vlaneseq
  %v2275 = vshrl.u32 %v2274, 7
  %v2276 = vsub.s32 0, %v2275
  %v2277 = vrot.slane %v2270, %v2276
  %v2278 = vlaneseq
  %v2279 = vshrl.u32 %v2278, 7
  %v2280 = vsub.s32 1, %v2279
  %v2281 = vrot.slane %v2270, %v2280
  %v2284 = vmul.f32 %v2261, %v2277
  %v2285 = vmul.f32 %v2262, %v2281
  %v2286 = vadd.f32 %v2113, %v2284
  %v2287 = vadd.f32 %v2114, %v2285
  %v2289 = vlaneseq
  %v2290 = vshrl.u32 %v2289, 7
  %v2291 = vsub.s32 0, %v2290
  %v2292 = vrot.slane %v2272, %v2291
  %v2293 = vlaneseq
  %v2294 = vshrl.u32 %v2293, 7
  %v2295 = vsub.s32 1, %v2294
  %v2296 = vrot.slane %v2272, %v2295
  %v2299 = vmul.f32 %v2267, %v2292
  %v2300 = vmul.f32 %v2268, %v2296
  %v2301 = vadd.f32 %v2286, %v2299
  %v2302 = vadd.f32 %v2287, %v2300
  %2303 = vrot.lane.b32.xlu0 %v500, 97
  %v2304 = vpop.permute.xlu0 %2303
  %2305 = vrot.lane.b32.xlu0 %v503, 97
  %v2306 = vpop.permute.xlu0 %2305
  %vm2307 = vcmp.lt.s32.totalorder %v103, 97
  %v2308 = vsel %vm2307, %v2304, %v2306
  %v2309 = vsel %vm2307, %v2306, %v2304
  %2310 = vrot.lane.b32.xlu0 %v523, 97
  %v2311 = vpop.permute.xlu0 %2310
  %2312 = vrot.lane.b32.xlu0 %v526, 97
  %v2313 = vpop.permute.xlu0 %2312
  %v2314 = vsel %vm2307, %v2311, %v2313
  %v2315 = vsel %vm2307, %v2313, %v2311
  %s2316 = scalar_lea.vmem %s3, 69
  %v2317 = vld [vmem:[%s2316] ss:$8 sm:$0x3]
  %s2318 = scalar_lea.vmem %s3, 166
  %v2319 = vld [vmem:[%s2318] ss:$8 sm:$0x3]
  %v2321 = vlaneseq
  %v2322 = vshrl.u32 %v2321, 7
  %v2323 = vsub.s32 0, %v2322
  %v2324 = vrot.slane %v2317, %v2323
  %v2325 = vlaneseq
  %v2326 = vshrl.u32 %v2325, 7
  %v2327 = vsub.s32 1, %v2326
  %v2328 = vrot.slane %v2317, %v2327
  %v2331 = vmul.f32 %v2308, %v2324
  %v2332 = vmul.f32 %v2309, %v2328
  %v2333 = vadd.f32 %v2160, %v2331
  %v2334 = vadd.f32 %v2161, %v2332
  %v2336 = vlaneseq
  %v2337 = vshrl.u32 %v2336, 7
  %v2338 = vsub.s32 0, %v2337
  %v2339 = vrot.slane %v2319, %v2338
  %v2340 = vlaneseq
  %v2341 = vshrl.u32 %v2340, 7
  %v2342 = vsub.s32 1, %v2341
  %v2343 = vrot.slane %v2319, %v2342
  %v2346 = vmul.f32 %v2314, %v2339
  %v2347 = vmul.f32 %v2315, %v2343
  %v2348 = vadd.f32 %v2333, %v2346
  %v2349 = vadd.f32 %v2334, %v2347
  %2350 = vrot.lane.b32.xlu0 %v500, 96
  %v2351 = vpop.permute.xlu0 %2350
  %2352 = vrot.lane.b32.xlu0 %v503, 96
  %v2353 = vpop.permute.xlu0 %2352
  %vm2354 = vcmp.lt.s32.totalorder %v103, 96
  %v2355 = vsel %vm2354, %v2351, %v2353
  %v2356 = vsel %vm2354, %v2353, %v2351
  %2357 = vrot.lane.b32.xlu0 %v523, 96
  %v2358 = vpop.permute.xlu0 %2357
  %2359 = vrot.lane.b32.xlu0 %v526, 96
  %v2360 = vpop.permute.xlu0 %2359
  %v2361 = vsel %vm2354, %v2358, %v2360
  %v2362 = vsel %vm2354, %v2360, %v2358
  %s2363 = scalar_lea.vmem %s3, 70
  %v2364 = vld [vmem:[%s2363] ss:$8 sm:$0x3]
  %s2365 = scalar_lea.vmem %s3, 167
  %v2366 = vld [vmem:[%s2365] ss:$8 sm:$0x3]
  %v2368 = vlaneseq
  %v2369 = vshrl.u32 %v2368, 7
  %v2370 = vsub.s32 0, %v2369
  %v2371 = vrot.slane %v2364, %v2370
  %v2372 = vlaneseq
  %v2373 = vshrl.u32 %v2372, 7
  %v2374 = vsub.s32 1, %v2373
  %v2375 = vrot.slane %v2364, %v2374
  %v2378 = vmul.f32 %v2355, %v2371
  %v2379 = vmul.f32 %v2356, %v2375
  %v2380 = vadd.f32 %v2207, %v2378
  %v2381 = vadd.f32 %v2208, %v2379
  %v2383 = vlaneseq
  %v2384 = vshrl.u32 %v2383, 7
  %v2385 = vsub.s32 0, %v2384
  %v2386 = vrot.slane %v2366, %v2385
  %v2387 = vlaneseq
  %v2388 = vshrl.u32 %v2387, 7
  %v2389 = vsub.s32 1, %v2388
  %v2390 = vrot.slane %v2366, %v2389
  %v2393 = vmul.f32 %v2361, %v2386
  %v2394 = vmul.f32 %v2362, %v2390
  %v2395 = vadd.f32 %v2380, %v2393
  %v2396 = vadd.f32 %v2381, %v2394
  %2397 = vrot.lane.b32.xlu0 %v500, 95
  %v2398 = vpop.permute.xlu0 %2397
  %2399 = vrot.lane.b32.xlu0 %v503, 95
  %v2400 = vpop.permute.xlu0 %2399
  %vm2401 = vcmp.lt.s32.totalorder %v103, 95
  %v2402 = vsel %vm2401, %v2398, %v2400
  %v2403 = vsel %vm2401, %v2400, %v2398
  %2404 = vrot.lane.b32.xlu0 %v523, 95
  %v2405 = vpop.permute.xlu0 %2404
  %2406 = vrot.lane.b32.xlu0 %v526, 95
  %v2407 = vpop.permute.xlu0 %2406
  %v2408 = vsel %vm2401, %v2405, %v2407
  %v2409 = vsel %vm2401, %v2407, %v2405
  %s2410 = scalar_lea.vmem %s3, 71
  %v2411 = vld [vmem:[%s2410] ss:$8 sm:$0x3]
  %s2412 = scalar_lea.vmem %s3, 176
  %v2413 = vld [vmem:[%s2412] ss:$8 sm:$0x3]
  %v2415 = vlaneseq
  %v2416 = vshrl.u32 %v2415, 7
  %v2417 = vsub.s32 0, %v2416
  %v2418 = vrot.slane %v2411, %v2417
  %v2419 = vlaneseq
  %v2420 = vshrl.u32 %v2419, 7
  %v2421 = vsub.s32 1, %v2420
  %v2422 = vrot.slane %v2411, %v2421
  %v2425 = vmul.f32 %v2402, %v2418
  %v2426 = vmul.f32 %v2403, %v2422
  %v2427 = vadd.f32 %v2254, %v2425
  %v2428 = vadd.f32 %v2255, %v2426
  %v2430 = vlaneseq
  %v2431 = vshrl.u32 %v2430, 7
  %v2432 = vsub.s32 0, %v2431
  %v2433 = vrot.slane %v2413, %v2432
  %v2434 = vlaneseq
  %v2435 = vshrl.u32 %v2434, 7
  %v2436 = vsub.s32 1, %v2435
  %v2437 = vrot.slane %v2413, %v2436
  %v2440 = vmul.f32 %v2408, %v2433
  %v2441 = vmul.f32 %v2409, %v2437
  %v2442 = vadd.f32 %v2427, %v2440
  %v2443 = vadd.f32 %v2428, %v2441
  %2444 = vrot.lane.b32.xlu0 %v500, 94
  %v2445 = vpop.permute.xlu0 %2444
  %2446 = vrot.lane.b32.xlu0 %v503, 94
  %v2447 = vpop.permute.xlu0 %2446
  %vm2448 = vcmp.lt.s32.totalorder %v103, 94
  %v2449 = vsel %vm2448, %v2445, %v2447
  %v2450 = vsel %vm2448, %v2447, %v2445
  %2451 = vrot.lane.b32.xlu0 %v523, 94
  %v2452 = vpop.permute.xlu0 %2451
  %2453 = vrot.lane.b32.xlu0 %v526, 94
  %v2454 = vpop.permute.xlu0 %2453
  %v2455 = vsel %vm2448, %v2452, %v2454
  %v2456 = vsel %vm2448, %v2454, %v2452
  %s2457 = scalar_lea.vmem %s3, 80
  %v2458 = vld [vmem:[%s2457] ss:$8 sm:$0x3]
  %s2459 = scalar_lea.vmem %s3, 177
  %v2460 = vld [vmem:[%s2459] ss:$8 sm:$0x3]
  %v2462 = vlaneseq
  %v2463 = vshrl.u32 %v2462, 7
  %v2464 = vsub.s32 0, %v2463
  %v2465 = vrot.slane %v2458, %v2464
  %v2466 = vlaneseq
  %v2467 = vshrl.u32 %v2466, 7
  %v2468 = vsub.s32 1, %v2467
  %v2469 = vrot.slane %v2458, %v2468
  %v2472 = vmul.f32 %v2449, %v2465
  %v2473 = vmul.f32 %v2450, %v2469
  %v2474 = vadd.f32 %v2301, %v2472
  %v2475 = vadd.f32 %v2302, %v2473
  %v2477 = vlaneseq
  %v2478 = vshrl.u32 %v2477, 7
  %v2479 = vsub.s32 0, %v2478
  %v2480 = vrot.slane %v2460, %v2479
  %v2481 = vlaneseq
  %v2482 = vshrl.u32 %v2481, 7
  %v2483 = vsub.s32 1, %v2482
  %v2484 = vrot.slane %v2460, %v2483
  %v2487 = vmul.f32 %v2455, %v2480
  %v2488 = vmul.f32 %v2456, %v2484
  %v2489 = vadd.f32 %v2474, %v2487
  %v2490 = vadd.f32 %v2475, %v2488
  %2491 = vrot.lane.b32.xlu0 %v500, 93
  %v2492 = vpop.permute.xlu0 %2491
  %2493 = vrot.lane.b32.xlu0 %v503, 93
  %v2494 = vpop.permute.xlu0 %2493
  %vm2495 = vcmp.lt.s32.totalorder %v103, 93
  %v2496 = vsel %vm2495, %v2492, %v2494
  %v2497 = vsel %vm2495, %v2494, %v2492
  %2498 = vrot.lane.b32.xlu0 %v523, 93
  %v2499 = vpop.permute.xlu0 %2498
  %2500 = vrot.lane.b32.xlu0 %v526, 93
  %v2501 = vpop.permute.xlu0 %2500
  %v2502 = vsel %vm2495, %v2499, %v2501
  %v2503 = vsel %vm2495, %v2501, %v2499
  %s2504 = scalar_lea.vmem %s3, 81
  %v2505 = vld [vmem:[%s2504] ss:$8 sm:$0x3]
  %s2506 = scalar_lea.vmem %s3, 178
  %v2507 = vld [vmem:[%s2506] ss:$8 sm:$0x3]
  %v2509 = vlaneseq
  %v2510 = vshrl.u32 %v2509, 7
  %v2511 = vsub.s32 0, %v2510
  %v2512 = vrot.slane %v2505, %v2511
  %v2513 = vlaneseq
  %v2514 = vshrl.u32 %v2513, 7
  %v2515 = vsub.s32 1, %v2514
  %v2516 = vrot.slane %v2505, %v2515
  %v2519 = vmul.f32 %v2496, %v2512
  %v2520 = vmul.f32 %v2497, %v2516
  %v2521 = vadd.f32 %v2348, %v2519
  %v2522 = vadd.f32 %v2349, %v2520
  %v2524 = vlaneseq
  %v2525 = vshrl.u32 %v2524, 7
  %v2526 = vsub.s32 0, %v2525
  %v2527 = vrot.slane %v2507, %v2526
  %v2528 = vlaneseq
  %v2529 = vshrl.u32 %v2528, 7
  %v2530 = vsub.s32 1, %v2529
  %v2531 = vrot.slane %v2507, %v2530
  %v2534 = vmul.f32 %v2502, %v2527
  %v2535 = vmul.f32 %v2503, %v2531
  %v2536 = vadd.f32 %v2521, %v2534
  %v2537 = vadd.f32 %v2522, %v2535
  %2538 = vrot.lane.b32.xlu0 %v500, 83
  %v2539 = vpop.permute.xlu0 %2538
  %2540 = vrot.lane.b32.xlu0 %v503, 83
  %v2541 = vpop.permute.xlu0 %2540
  %vm2542 = vcmp.lt.s32.totalorder %v103, 83
  %v2543 = vsel %vm2542, %v2539, %v2541
  %v2544 = vsel %vm2542, %v2541, %v2539
  %2545 = vrot.lane.b32.xlu0 %v523, 83
  %v2546 = vpop.permute.xlu0 %2545
  %2547 = vrot.lane.b32.xlu0 %v526, 83
  %v2548 = vpop.permute.xlu0 %2547
  %v2549 = vsel %vm2542, %v2546, %v2548
  %v2550 = vsel %vm2542, %v2548, %v2546
  %s2551 = scalar_lea.vmem %s3, 82
  %v2552 = vld [vmem:[%s2551] ss:$8 sm:$0x3]
  %s2553 = scalar_lea.vmem %s3, 179
  %v2554 = vld [vmem:[%s2553] ss:$8 sm:$0x3]
  %v2556 = vlaneseq
  %v2557 = vshrl.u32 %v2556, 7
  %v2558 = vsub.s32 0, %v2557
  %v2559 = vrot.slane %v2552, %v2558
  %v2560 = vlaneseq
  %v2561 = vshrl.u32 %v2560, 7
  %v2562 = vsub.s32 1, %v2561
  %v2563 = vrot.slane %v2552, %v2562
  %v2566 = vmul.f32 %v2543, %v2559
  %v2567 = vmul.f32 %v2544, %v2563
  %v2568 = vadd.f32 %v2395, %v2566
  %v2569 = vadd.f32 %v2396, %v2567
  %v2571 = vlaneseq
  %v2572 = vshrl.u32 %v2571, 7
  %v2573 = vsub.s32 0, %v2572
  %v2574 = vrot.slane %v2554, %v2573
  %v2575 = vlaneseq
  %v2576 = vshrl.u32 %v2575, 7
  %v2577 = vsub.s32 1, %v2576
  %v2578 = vrot.slane %v2554, %v2577
  %v2581 = vmul.f32 %v2549, %v2574
  %v2582 = vmul.f32 %v2550, %v2578
  %v2583 = vadd.f32 %v2568, %v2581
  %v2584 = vadd.f32 %v2569, %v2582
  %2585 = vrot.lane.b32.xlu0 %v500, 82
  %v2586 = vpop.permute.xlu0 %2585
  %2587 = vrot.lane.b32.xlu0 %v503, 82
  %v2588 = vpop.permute.xlu0 %2587
  %vm2589 = vcmp.lt.s32.totalorder %v103, 82
  %v2590 = vsel %vm2589, %v2586, %v2588
  %v2591 = vsel %vm2589, %v2588, %v2586
  %2592 = vrot.lane.b32.xlu0 %v523, 82
  %v2593 = vpop.permute.xlu0 %2592
  %2594 = vrot.lane.b32.xlu0 %v526, 82
  %v2595 = vpop.permute.xlu0 %2594
  %v2596 = vsel %vm2589, %v2593, %v2595
  %v2597 = vsel %vm2589, %v2595, %v2593
  %s2598 = scalar_lea.vmem %s3, 83
  %v2599 = vld [vmem:[%s2598] ss:$8 sm:$0x3]
  %s2600 = scalar_lea.vmem %s3, 180
  %v2601 = vld [vmem:[%s2600] ss:$8 sm:$0x3]
  %v2603 = vlaneseq
  %v2604 = vshrl.u32 %v2603, 7
  %v2605 = vsub.s32 0, %v2604
  %v2606 = vrot.slane %v2599, %v2605
  %v2607 = vlaneseq
  %v2608 = vshrl.u32 %v2607, 7
  %v2609 = vsub.s32 1, %v2608
  %v2610 = vrot.slane %v2599, %v2609
  %v2613 = vmul.f32 %v2590, %v2606
  %v2614 = vmul.f32 %v2591, %v2610
  %v2615 = vadd.f32 %v2442, %v2613
  %v2616 = vadd.f32 %v2443, %v2614
  %v2618 = vlaneseq
  %v2619 = vshrl.u32 %v2618, 7
  %v2620 = vsub.s32 0, %v2619
  %v2621 = vrot.slane %v2601, %v2620
  %v2622 = vlaneseq
  %v2623 = vshrl.u32 %v2622, 7
  %v2624 = vsub.s32 1, %v2623
  %v2625 = vrot.slane %v2601, %v2624
  %v2628 = vmul.f32 %v2596, %v2621
  %v2629 = vmul.f32 %v2597, %v2625
  %v2630 = vadd.f32 %v2615, %v2628
  %v2631 = vadd.f32 %v2616, %v2629
  %2632 = vrot.lane.b32.xlu0 %v500, 81
  %v2633 = vpop.permute.xlu0 %2632
  %2634 = vrot.lane.b32.xlu0 %v503, 81
  %v2635 = vpop.permute.xlu0 %2634
  %vm2636 = vcmp.lt.s32.totalorder %v103, 81
  %v2637 = vsel %vm2636, %v2633, %v2635
  %v2638 = vsel %vm2636, %v2635, %v2633
  %2639 = vrot.lane.b32.xlu0 %v523, 81
  %v2640 = vpop.permute.xlu0 %2639
  %2641 = vrot.lane.b32.xlu0 %v526, 81
  %v2642 = vpop.permute.xlu0 %2641
  %v2643 = vsel %vm2636, %v2640, %v2642
  %v2644 = vsel %vm2636, %v2642, %v2640
  %s2645 = scalar_lea.vmem %s3, 84
  %v2646 = vld [vmem:[%s2645] ss:$8 sm:$0x3]
  %s2647 = scalar_lea.vmem %s3, 181
  %v2648 = vld [vmem:[%s2647] ss:$8 sm:$0x3]
  %v2650 = vlaneseq
  %v2651 = vshrl.u32 %v2650, 7
  %v2652 = vsub.s32 0, %v2651
  %v2653 = vrot.slane %v2646, %v2652
  %v2654 = vlaneseq
  %v2655 = vshrl.u32 %v2654, 7
  %v2656 = vsub.s32 1, %v2655
  %v2657 = vrot.slane %v2646, %v2656
  %v2660 = vmul.f32 %v2637, %v2653
  %v2661 = vmul.f32 %v2638, %v2657
  %v2662 = vadd.f32 %v2489, %v2660
  %v2663 = vadd.f32 %v2490, %v2661
  %v2665 = vlaneseq
  %v2666 = vshrl.u32 %v2665, 7
  %v2667 = vsub.s32 0, %v2666
  %v2668 = vrot.slane %v2648, %v2667
  %v2669 = vlaneseq
  %v2670 = vshrl.u32 %v2669, 7
  %v2671 = vsub.s32 1, %v2670
  %v2672 = vrot.slane %v2648, %v2671
  %v2675 = vmul.f32 %v2643, %v2668
  %v2676 = vmul.f32 %v2644, %v2672
  %v2677 = vadd.f32 %v2662, %v2675
  %v2678 = vadd.f32 %v2663, %v2676
  %2679 = vrot.lane.b32.xlu0 %v500, 80
  %v2680 = vpop.permute.xlu0 %2679
  %2681 = vrot.lane.b32.xlu0 %v503, 80
  %v2682 = vpop.permute.xlu0 %2681
  %vm2683 = vcmp.lt.s32.totalorder %v103, 80
  %v2684 = vsel %vm2683, %v2680, %v2682
  %v2685 = vsel %vm2683, %v2682, %v2680
  %2686 = vrot.lane.b32.xlu0 %v523, 80
  %v2687 = vpop.permute.xlu0 %2686
  %2688 = vrot.lane.b32.xlu0 %v526, 80
  %v2689 = vpop.permute.xlu0 %2688
  %v2690 = vsel %vm2683, %v2687, %v2689
  %v2691 = vsel %vm2683, %v2689, %v2687
  %s2692 = scalar_lea.vmem %s3, 85
  %v2693 = vld [vmem:[%s2692] ss:$8 sm:$0x3]
  %s2694 = scalar_lea.vmem %s3, 182
  %v2695 = vld [vmem:[%s2694] ss:$8 sm:$0x3]
  %v2697 = vlaneseq
  %v2698 = vshrl.u32 %v2697, 7
  %v2699 = vsub.s32 0, %v2698
  %v2700 = vrot.slane %v2693, %v2699
  %v2701 = vlaneseq
  %v2702 = vshrl.u32 %v2701, 7
  %v2703 = vsub.s32 1, %v2702
  %v2704 = vrot.slane %v2693, %v2703
  %v2707 = vmul.f32 %v2684, %v2700
  %v2708 = vmul.f32 %v2685, %v2704
  %v2709 = vadd.f32 %v2536, %v2707
  %v2710 = vadd.f32 %v2537, %v2708
  %v2712 = vlaneseq
  %v2713 = vshrl.u32 %v2712, 7
  %v2714 = vsub.s32 0, %v2713
  %v2715 = vrot.slane %v2695, %v2714
  %v2716 = vlaneseq
  %v2717 = vshrl.u32 %v2716, 7
  %v2718 = vsub.s32 1, %v2717
  %v2719 = vrot.slane %v2695, %v2718
  %v2722 = vmul.f32 %v2690, %v2715
  %v2723 = vmul.f32 %v2691, %v2719
  %v2724 = vadd.f32 %v2709, %v2722
  %v2725 = vadd.f32 %v2710, %v2723
  %2726 = vrot.lane.b32.xlu0 %v500, 79
  %v2727 = vpop.permute.xlu0 %2726
  %2728 = vrot.lane.b32.xlu0 %v503, 79
  %v2729 = vpop.permute.xlu0 %2728
  %vm2730 = vcmp.lt.s32.totalorder %v103, 79
  %v2731 = vsel %vm2730, %v2727, %v2729
  %v2732 = vsel %vm2730, %v2729, %v2727
  %2733 = vrot.lane.b32.xlu0 %v523, 79
  %v2734 = vpop.permute.xlu0 %2733
  %2735 = vrot.lane.b32.xlu0 %v526, 79
  %v2736 = vpop.permute.xlu0 %2735
  %v2737 = vsel %vm2730, %v2734, %v2736
  %v2738 = vsel %vm2730, %v2736, %v2734
  %s2739 = scalar_lea.vmem %s3, 86
  %v2740 = vld [vmem:[%s2739] ss:$8 sm:$0x3]
  %s2741 = scalar_lea.vmem %s3, 183
  %v2742 = vld [vmem:[%s2741] ss:$8 sm:$0x3]
  %v2744 = vlaneseq
  %v2745 = vshrl.u32 %v2744, 7
  %v2746 = vsub.s32 0, %v2745
  %v2747 = vrot.slane %v2740, %v2746
  %v2748 = vlaneseq
  %v2749 = vshrl.u32 %v2748, 7
  %v2750 = vsub.s32 1, %v2749
  %v2751 = vrot.slane %v2740, %v2750
  %v2754 = vmul.f32 %v2731, %v2747
  %v2755 = vmul.f32 %v2732, %v2751
  %v2756 = vadd.f32 %v2583, %v2754
  %v2757 = vadd.f32 %v2584, %v2755
  %v2759 = vlaneseq
  %v2760 = vshrl.u32 %v2759, 7
  %v2761 = vsub.s32 0, %v2760
  %v2762 = vrot.slane %v2742, %v2761
  %v2763 = vlaneseq
  %v2764 = vshrl.u32 %v2763, 7
  %v2765 = vsub.s32 1, %v2764
  %v2766 = vrot.slane %v2742, %v2765
  %v2769 = vmul.f32 %v2737, %v2762
  %v2770 = vmul.f32 %v2738, %v2766
  %v2771 = vadd.f32 %v2756, %v2769
  %v2772 = vadd.f32 %v2757, %v2770
  %2773 = vrot.lane.b32.xlu0 %v500, 78
  %v2774 = vpop.permute.xlu0 %2773
  %2775 = vrot.lane.b32.xlu0 %v503, 78
  %v2776 = vpop.permute.xlu0 %2775
  %vm2777 = vcmp.lt.s32.totalorder %v103, 78
  %v2778 = vsel %vm2777, %v2774, %v2776
  %v2779 = vsel %vm2777, %v2776, %v2774
  %2780 = vrot.lane.b32.xlu0 %v523, 78
  %v2781 = vpop.permute.xlu0 %2780
  %2782 = vrot.lane.b32.xlu0 %v526, 78
  %v2783 = vpop.permute.xlu0 %2782
  %v2784 = vsel %vm2777, %v2781, %v2783
  %v2785 = vsel %vm2777, %v2783, %v2781
  %s2786 = scalar_lea.vmem %s3, 87
  %v2787 = vld [vmem:[%s2786] ss:$8 sm:$0x3]
  %s2788 = scalar_lea.vmem %s3, 192
  %v2789 = vld [vmem:[%s2788] ss:$8 sm:$0x3]
  %v2791 = vlaneseq
  %v2792 = vshrl.u32 %v2791, 7
  %v2793 = vsub.s32 0, %v2792
  %v2794 = vrot.slane %v2787, %v2793
  %v2795 = vlaneseq
  %v2796 = vshrl.u32 %v2795, 7
  %v2797 = vsub.s32 1, %v2796
  %v2798 = vrot.slane %v2787, %v2797
  %v2801 = vmul.f32 %v2778, %v2794
  %v2802 = vmul.f32 %v2779, %v2798
  %v2803 = vadd.f32 %v2630, %v2801
  %v2804 = vadd.f32 %v2631, %v2802
  %v2806 = vlaneseq
  %v2807 = vshrl.u32 %v2806, 7
  %v2808 = vsub.s32 0, %v2807
  %v2809 = vrot.slane %v2789, %v2808
  %v2810 = vlaneseq
  %v2811 = vshrl.u32 %v2810, 7
  %v2812 = vsub.s32 1, %v2811
  %v2813 = vrot.slane %v2789, %v2812
  %v2816 = vmul.f32 %v2784, %v2809
  %v2817 = vmul.f32 %v2785, %v2813
  %v2818 = vadd.f32 %v2803, %v2816
  %v2819 = vadd.f32 %v2804, %v2817
  %2820 = vrot.lane.b32.xlu0 %v500, 77
  %v2821 = vpop.permute.xlu0 %2820
  %2822 = vrot.lane.b32.xlu0 %v503, 77
  %v2823 = vpop.permute.xlu0 %2822
  %vm2824 = vcmp.lt.s32.totalorder %v103, 77
  %v2825 = vsel %vm2824, %v2821, %v2823
  %v2826 = vsel %vm2824, %v2823, %v2821
  %2827 = vrot.lane.b32.xlu0 %v523, 77
  %v2828 = vpop.permute.xlu0 %2827
  %2829 = vrot.lane.b32.xlu0 %v526, 77
  %v2830 = vpop.permute.xlu0 %2829
  %v2831 = vsel %vm2824, %v2828, %v2830
  %v2832 = vsel %vm2824, %v2830, %v2828
  %s2833 = scalar_lea.vmem %s3, 96
  %v2834 = vld [vmem:[%s2833] ss:$8 sm:$0x3]
  %s2835 = scalar_lea.vmem %s3, 193
  %v2836 = vld [vmem:[%s2835] ss:$8 sm:$0x3]
  %v2838 = vlaneseq
  %v2839 = vshrl.u32 %v2838, 7
  %v2840 = vsub.s32 0, %v2839
  %v2841 = vrot.slane %v2834, %v2840
  %v2842 = vlaneseq
  %v2843 = vshrl.u32 %v2842, 7
  %v2844 = vsub.s32 1, %v2843
  %v2845 = vrot.slane %v2834, %v2844
  %v2848 = vmul.f32 %v2825, %v2841
  %v2849 = vmul.f32 %v2826, %v2845
  %v2850 = vadd.f32 %v2677, %v2848
  %v2851 = vadd.f32 %v2678, %v2849
  %v2853 = vlaneseq
  %v2854 = vshrl.u32 %v2853, 7
  %v2855 = vsub.s32 0, %v2854
  %v2856 = vrot.slane %v2836, %v2855
  %v2857 = vlaneseq
  %v2858 = vshrl.u32 %v2857, 7
  %v2859 = vsub.s32 1, %v2858
  %v2860 = vrot.slane %v2836, %v2859
  %v2863 = vmul.f32 %v2831, %v2856
  %v2864 = vmul.f32 %v2832, %v2860
  %v2865 = vadd.f32 %v2850, %v2863
  %v2866 = vadd.f32 %v2851, %v2864
  %v2867 = vadd.f32 %v2865, %v2724
  %v2868 = vadd.f32 %v2866, %v2725
  %v2869 = vadd.f32 %v2771, %v2818
  %v2870 = vadd.f32 %v2772, %v2819
  %v2871 = vadd.f32 %v2867, %v2869
  %v2872 = vadd.f32 %v2868, %v2870
  %v2873 = vstv %s489
  %v2874 = vadd.f32 %v2871, %v2873
  %v2875 = vadd.f32 %v2872, %v2873
  %v2876 = vxor.u32 %v2874, 2147483648
  %v2877 = vxor.u32 %v2875, 2147483648
  %v2878 = vmul.f32 %v2876, 1.442695
  %v2879 = vpow.pop %v2878
  %v2880 = vmul.f32 %v2877, 1.442695
  %v2881 = vpow.pop %v2880
  %v2882 = vadd.f32 %v2879, 1.0
  %v2883 = vadd.f32 %v2881, 1.0
  %v2884 = vrcp.pop %v2882
  %v2885 = vmul.f32 1.0, %v2884
  %v2886 = vrcp.pop %v2883
  %v2887 = vmul.f32 1.0, %v2886
  %v2888 = vlaneseq
  %v2889 = vshrl.u32 %v2888, 7
  %v2890 = vsub.s32 0, %v2889
  %v2891 = vrot.slane %v367, %v2890
  %2893 = vbcast.lane.b32.xlu0 %v2891, 256
  %v2894 = vpop.permute.xlu0 %2893
  %s2896 = sor.u32 256, 8
  %2897 = vbcast.lane.b32.xlu0 %v2891, %s2896
  %v2898 = vpop.permute.xlu0 %2897
  %v2899 = vlaneseq
  %v2900 = vshrl.u32 %v2899, 7
  %v2901 = vsub.s32 1, %v2900
  %v2902 = vrot.slane %v367, %v2901
  %2904 = vbcast.lane.b32.xlu0 %v2902, 256
  %v2905 = vpop.permute.xlu0 %2904
  %s2907 = sor.u32 256, 8
  %2908 = vbcast.lane.b32.xlu0 %v2902, %s2907
  %v2909 = vpop.permute.xlu0 %2908
  %v2910 = vlaneseq
  %v2911 = vshrl.u32 %v2910, 7
  %v2912 = vsub.s32 2, %v2911
  %v2913 = vrot.slane %v367, %v2912
  %2915 = vbcast.lane.b32.xlu0 %v2913, 256
  %v2916 = vpop.permute.xlu0 %2915
  %s2918 = sor.u32 256, 8
  %2919 = vbcast.lane.b32.xlu0 %v2913, %s2918
  %v2920 = vpop.permute.xlu0 %2919
  %v2921 = vlaneseq
  %v2922 = vshrl.u32 %v2921, 7
  %v2923 = vsub.s32 3, %v2922
  %v2924 = vrot.slane %v367, %v2923
  %2926 = vbcast.lane.b32.xlu0 %v2924, 256
  %v2927 = vpop.permute.xlu0 %2926
  %s2929 = sor.u32 256, 8
  %2930 = vbcast.lane.b32.xlu0 %v2924, %s2929
  %v2931 = vpop.permute.xlu0 %2930
  %v2934 = vcombine.low %v2885, %v2887
  %v2936 = vunpack.c.l.s4 1966171168
  %v2937 = vunpack.c.0.s8 %v2936
  %v2938 = vlaneseq
  %v2939 = vshrl.u32 %v2938, 7
  %v2940 = vsub.s32 %v2937, %v2939
  %v2941 = vrot.slane %v2934, %v2940
  %v2942 = vcombine.high %v2941, %v2941
  %v2944 = vunpack.c.l.s4 1966171168
  %v2945 = vunpack.c.0.s8 %v2944
  %v2946 = vlaneseq
  %v2947 = vshrl.u32 %v2946, 7
  %v2948 = vsub.s32 %v2945, %v2947
  %v2949 = vrot.slane %v2941, %v2948
  %v2951 = vunpack.c.l.s4 1966171168
  %v2952 = vunpack.c.0.s8 %v2951
  %v2953 = vlaneseq
  %v2954 = vshrl.u32 %v2953, 7
  %v2955 = vsub.s32 %v2952, %v2954
  %v2956 = vrot.slane %v2942, %v2955
  %v2957 = vcombine.high %v2949, %v2949
  %v2958 = vcombine.high %v2956, %v2956
  %v2959 = vlaneseq
  %v2960 = vshrl.u32 %v2959, 7
  %v2961 = vsub.s32 0, %v2960
  %v2962 = vrot.slane %v2949, %v2961
  %v2963 = vlaneseq
  %v2964 = vshrl.u32 %v2963, 7
  %v2965 = vsub.s32 1, %v2964
  %v2966 = vrot.slane %v2949, %v2965
  %v2967 = vlaneseq
  %v2968 = vshrl.u32 %v2967, 7
  %v2969 = vsub.s32 0, %v2968
  %v2970 = vrot.slane %v2956, %v2969
  %v2971 = vlaneseq
  %v2972 = vshrl.u32 %v2971, 7
  %v2973 = vsub.s32 1, %v2972
  %v2974 = vrot.slane %v2956, %v2973
  %v2975 = vlaneseq
  %v2976 = vshrl.u32 %v2975, 7
  %v2977 = vsub.s32 0, %v2976
  %v2978 = vrot.slane %v2957, %v2977
  %v2979 = vlaneseq
  %v2980 = vshrl.u32 %v2979, 7
  %v2981 = vsub.s32 1, %v2980
  %v2982 = vrot.slane %v2957, %v2981
  %v2983 = vlaneseq
  %v2984 = vshrl.u32 %v2983, 7
  %v2985 = vsub.s32 0, %v2984
  %v2986 = vrot.slane %v2958, %v2985
  %v2987 = vlaneseq
  %v2988 = vshrl.u32 %v2987, 7
  %v2989 = vsub.s32 1, %v2988
  %v2990 = vrot.slane %v2958, %v2989
  %v2999 = vadd.f32 %v2894, %v2962
  %v3000 = vadd.f32 %v2894, %v2966
  %v3001 = vadd.f32 %v2898, %v2962
  %v3002 = vadd.f32 %v2898, %v2966
  %v3003 = vadd.f32 %v2905, %v2970
  %v3004 = vadd.f32 %v2905, %v2974
  %v3005 = vadd.f32 %v2909, %v2970
  %v3006 = vadd.f32 %v2909, %v2974
  %v3007 = vadd.f32 %v2916, %v2978
  %v3008 = vadd.f32 %v2916, %v2982
  %v3009 = vadd.f32 %v2920, %v2978
  %v3010 = vadd.f32 %v2920, %v2982
  %v3011 = vadd.f32 %v2927, %v2986
  %v3012 = vadd.f32 %v2927, %v2990
  %v3013 = vadd.f32 %v2931, %v2986
  %v3014 = vadd.f32 %v2931, %v2990
  %v3015 = vadd.f32 %v2999, 3.0
  %v3016 = vadd.f32 %v3000, 3.0
  %v3017 = vadd.f32 %v3001, 3.0
  %v3018 = vadd.f32 %v3002, 3.0
  %v3019 = vadd.f32 %v3003, 3.0
  %v3020 = vadd.f32 %v3004, 3.0
  %v3021 = vadd.f32 %v3005, 3.0
  %v3022 = vadd.f32 %v3006, 3.0
  %v3023 = vadd.f32 %v3007, 3.0
  %v3024 = vadd.f32 %v3008, 3.0
  %v3025 = vadd.f32 %v3009, 3.0
  %v3026 = vadd.f32 %v3010, 3.0
  %v3027 = vadd.f32 %v3011, 3.0
  %v3028 = vadd.f32 %v3012, 3.0
  %v3029 = vadd.f32 %v3013, 3.0
  %v3030 = vadd.f32 %v3014, 3.0
  %v3031 = vmul.f32 %v3015, %v21
  %v3032 = vmul.f32 %v3016, %v22
  %v3033 = vmul.f32 %v3017, %v23
  %v3034 = vmul.f32 %v3018, %v24
  %v3035 = vmul.f32 %v3019, %v25
  %v3036 = vmul.f32 %v3020, %v26
  %v3037 = vmul.f32 %v3021, %v27
  %v3038 = vmul.f32 %v3022, %v28
  %v3039 = vmul.f32 %v3023, %v29
  %v3040 = vmul.f32 %v3024, %v30
  %v3041 = vmul.f32 %v3025, %v31
  %v3042 = vmul.f32 %v3026, %v32
  %v3043 = vmul.f32 %v3027, %v33
  %v3044 = vmul.f32 %v3028, %v34
  %v3045 = vmul.f32 %v3029, %v35
  %v3046 = vmul.f32 %v3030, %v36
  %3047 = vst [vmem:[%s5] sm:$0xff] %v3031
  %3048 = vst [vmem:[%s5 + $0x8] sm:$0xff] %v3032
  %3049 = vst [vmem:[%s5 + $0x10] sm:$0xff] %v3033
  %3050 = vst [vmem:[%s5 + $0x18] sm:$0xff] %v3034
  %3051 = vst [vmem:[%s5 + $0x20] sm:$0xff] %v3035
  %3052 = vst [vmem:[%s5 + $0x28] sm:$0xff] %v3036
  %3053 = vst [vmem:[%s5 + $0x30] sm:$0xff] %v3037
  %3054 = vst [vmem:[%s5 + $0x38] sm:$0xff] %v3038
  %3055 = vst [vmem:[%s5 + $0x40] sm:$0xff] %v3039
  %3056 = vst [vmem:[%s5 + $0x48] sm:$0xff] %v3040
  %3057 = vst [vmem:[%s5 + $0x50] sm:$0xff] %v3041
  %3058 = vst [vmem:[%s5 + $0x58] sm:$0xff] %v3042
  %3059 = vst [vmem:[%s5 + $0x60] sm:$0xff] %v3043
  %3060 = vst [vmem:[%s5 + $0x68] sm:$0xff] %v3044
  %3061 = vst [vmem:[%s5 + $0x70] sm:$0xff] %v3045
  %3062 = vst [vmem:[%s5 + $0x78] sm:$0xff] %v3046
  // Predicated region
  $region22: #{cbam_pallas.1} parent=0 // pred_check
    _
  $region23: #{cbam_pallas.1} parent=0 // pred_check_branch
    %3064 = sbr.rel (0) target = $region25
  $region24: #{cbam_pallas.1} parent=0 // pred_region
    _
  $region25: #{cbam_pallas.1} parent=0 // pred_fallthru
    _
  // Predicated region
  $region26: #{cbam_pallas.1} parent=0 // pred_check
    _
  $region27: #{cbam_pallas.1} parent=0 // pred_check_branch
    %3066 = sbr.rel (0) target = $region29
  $region28: #{cbam_pallas.1} parent=0 // pred_region
    _
  $region29: #{cbam_pallas.1} parent=0 // pred_fallthru
    _

</llo_original>
